<compile_context>
chip_gen: v7x
topology: tpu7x:2x2x1
jax: 0.10.0
libtpu: 0.0.40
codegen_flags: <defaults>
</compile_context>

<pallas_src>
import jax
import jax.numpy as jnp
from jax.experimental import pallas as pl
from jax.experimental.pallas import tpu as pltpu

# ---- model hyperparameters (CnnLstmEncoder(dim_in=8, dim_out=16)) ----
DIM_IN = 8
DIM_OUT = 16
HIDDEN = (32, 32, 32, 32)
KSIZE = 3            # kernel=[3,3,3], padding = 1
B = 2
T = 16
TB = T * B
BN_EPS = 1e-5
NEG_SLOPE = 0.3      # LeakyReLU(0.3)
H = HIDDEN[3]
CMAX = 32            # conv channel width (input is zero-padded 8 -> 32)

# ---- static row offsets inside the two packed parameter buffers ----
# "mat" buffer, lane width 32 (BN eval scales already folded into weights):
_W1_R = 0            # (96, 32) fused conv1 weight (3 taps x 32 in-ch, unused rows 0)
_W2_R = 96           # (96, 32) fused conv2 weight
_W3_R = 192          # (96, 32) fused conv3 weight
_WL_R = 288          # (32, 32) final linear weight, cols [0:16) used
_SH_R = 320          # (8, 32) shift rows: [sh1, sh2, sh3, sh_out, 0, 0, 0, 0]
_MAT_ROWS = 328
# "lstm" buffer, lane width 256 (= 2 directions x 4H), gate order (i,f,o,g):
_WIH_R = 0           # (32, 256) input->gates   [fwd | bwd]
_WHH_R = 32          # (32, 256) hidden->gates  [fwd | bwd]
_BIAS_R = 64         # row 64: (b_ih + b_hh)    [fwd | bwd]
_LSTM_ROWS = 72


def _leaky_relu(x):
    return jnp.where(x >= 0, x, NEG_SLOPE * x)


def _conv_bn_act(pad_ref, x2d, pmat_ref, w_row, shift):
    """Conv1d(k=3, pad=1) + BatchNorm(eval, scale pre-folded) + LeakyReLU as ONE matmul.

    The layer input is written into three 32-lane column blocks of a
    zero-padded (T+2)*B-row scratch at row offsets 2B / B / 0, so that reading
    rows [B : B+TB] yields [x_{t-1} | x_t | x_{t+1}] per output row; border
    rows are never written and stay zero (= 'same' padding).
    """
    pad_ref[2 * B:2 * B + TB, 0:CMAX] = x2d          # tap k=0 -> x_{t-1}
    pad_ref[B:B + TB, CMAX:2 * CMAX] = x2d           # tap k=1 -> x_t
    pad_ref[0:TB, 2 * CMAX:3 * CMAX] = x2d           # tap k=2 -> x_{t+1}
    x_cat = pad_ref[B:B + TB, :]                     # (TB, 96)
    w = pmat_ref[w_row:w_row + 3 * CMAX, :]          # (96, 32), BN scale folded
    y = jnp.dot(x_cat, w, preferred_element_type=jnp.float32)
    return _leaky_relu(y + shift)


def encoder_kernel(x_ref, pmat_ref, plstm_ref, out_ref, pad_ref):
    f32 = jnp.float32

    # ---- CNN: 3 x (Conv1d(k=3,pad=1) -> BatchNorm1d(eval) -> LeakyReLU(0.3)) ----
    pad_ref[...] = jnp.zeros(((T + 2) * B, 3 * CMAX), f32)
    sh = pmat_ref[_SH_R:_SH_R + 4, :]                # (4, 32) per-channel BN shifts
    h = _conv_bn_act(pad_ref, x_ref[...], pmat_ref, _W1_R, sh[0:1, :])
    h = _conv_bn_act(pad_ref, h, pmat_ref, _W2_R, sh[1:2, :])
    h = _conv_bn_act(pad_ref, h, pmat_ref, _W3_R, sh[2:3, :])
    # h: (TB, 32), time-major (row = t*B + b)

    # ---- BiLSTM: input projection hoisted out of the recurrence, biases folded ----
    xproj = jnp.dot(h, plstm_ref[_WIH_R:_WIH_R + HIDDEN[2], :],
                    preferred_element_type=f32) + plstm_ref[_BIAS_R:_BIAS_R + 1, :]
    whh_f = plstm_ref[_WHH_R:_WHH_R + H, 0:4 * H]        # (32, 128)
    whh_b = plstm_ref[_WHH_R:_WHH_R + H, 4 * H:8 * H]    # (32, 128)

    h_f = jnp.zeros((B, H), f32)
    c_f = jnp.zeros((B, H), f32)
    h_b = jnp.zeros((B, H), f32)
    c_b = jnp.zeros((B, H), f32)
    hsum = jnp.zeros((B, H), f32)

    # Fused fwd/bwd recurrence, fully unrolled (T is small and static): the two
    # independent chains interleave so MXU/EUP latency bubbles overlap.
    for t in range(T):
        gf = xproj[t * B:(t + 1) * B, 0:4 * H] + jnp.dot(
            h_f, whh_f, preferred_element_type=f32)
        gb = xproj[(T - 1 - t) * B:(T - t) * B, 4 * H:8 * H] + jnp.dot(
            h_b, whh_b, preferred_element_type=f32)
        # gate order (i, f, o, g): one wide sigmoid + one tanh per direction
        sf = jax.nn.sigmoid(gf[:, 0:3 * H])
        sb_g = jax.nn.sigmoid(gb[:, 0:3 * H])
        c_f = sf[:, H:2 * H] * c_f + sf[:, 0:H] * jnp.tanh(gf[:, 3 * H:4 * H])
        c_b = sb_g[:, H:2 * H] * c_b + sb_g[:, 0:H] * jnp.tanh(gb[:, 3 * H:4 * H])
        h_f = sf[:, 2 * H:3 * H] * jnp.tanh(c_f)
        h_b = sb_g[:, 2 * H:3 * H] * jnp.tanh(c_b)
        hsum = hsum + h_f + h_b

    embedded = hsum * (1.0 / T)       # mean over time of (h_fwd + h_bwd)

    # ---- DNN: Linear(no bias) -> BatchNorm1d(eval, scale pre-folded) -> Softmax(dim=1) ----
    y = jnp.dot(embedded, pmat_ref[_WL_R:_WL_R + H, 0:DIM_OUT],
                preferred_element_type=f32) + sh[3:4, 0:DIM_OUT]
    m = jnp.max(y, axis=1, keepdims=True)
    e = jnp.exp(y - m)
    out_ref[...] = e / jnp.sum(e, axis=1, keepdims=True)


def _full_spec(a):
    nd = a.ndim
    return pl.BlockSpec(a.shape, lambda i, _nd=nd: (0,) * _nd)


def cnn_lstm_encoder(x, p_mat, p_lstm):
    # x: (B, T, dim_in) as the PyTorch module consumes it; convert to a
    # time-major (T*B, 32) slab (channels zero-padded 8 -> 32) in the wrapper.
    x_tm = jnp.transpose(x, (1, 0, 2)).reshape(TB, DIM_IN)
    x_tm = jnp.zeros((TB, CMAX), jnp.float32).at[:, 0:DIM_IN].set(x_tm)
    args = (x_tm, p_mat, p_lstm)
    return pl.pallas_call(
        encoder_kernel,
        out_shape=jax.ShapeDtypeStruct((B, DIM_OUT), jnp.float32),
        grid=(1,),
        in_specs=[_full_spec(a) for a in args],
        out_specs=pl.BlockSpec((B, DIM_OUT), lambda i: (0, 0)),
        scratch_shapes=[pltpu.VMEM(((T + 2) * B, 3 * CMAX), jnp.float32)],
        compiler_params=pltpu.CompilerParams(dimension_semantics=("arbitrary",)),
    )(*args)


def init_params(key):
    """Random PyTorch-equivalent parameters packed into the two flat buffers."""
    ks = jax.random.split(key, 8)
    bn_scale = (1.0 + BN_EPS) ** -0.5     # BN(eval, default stats), bias = 0

    def kaiming(k, shape, fan_in):
        return jax.random.normal(k, shape, jnp.float32) * jnp.sqrt(2.0 / fan_in)

    def fused_conv_weight(k, cin, cout):
        w_pt = kaiming(k, (cout, cin, KSIZE), cin * KSIZE)   # PyTorch (Cout, Cin, K)
        wf = jnp.zeros((3 * CMAX, cout), jnp.float32)
        for tap in range(KSIZE):
            wf = wf.at[tap * CMAX:tap * CMAX + cin, :].set(w_pt[:, :, tap].T)
        return wf * bn_scale              # fold the eval-mode BN scale into the weight

    w1 = fused_conv_weight(ks[0], DIM_IN, HIDDEN[0])
    w2 = fused_conv_weight(ks[1], HIDDEN[0], HIDDEN[1])
    w3 = fused_conv_weight(ks[2], HIDDEN[1], HIDDEN[2])

    # Final linear (no bias): PyTorch weight (dim_out, H) -> (H, dim_out), lane-padded,
    # output BN scale folded in.
    w_lin = kaiming(ks[5], (DIM_OUT, H), H)
    wl_pad = jnp.zeros((H, CMAX), jnp.float32).at[:, 0:DIM_OUT].set(w_lin.T * bn_scale)

    # Shift rows [sh_conv1, sh_conv2, sh_conv3, sh_out, pad...]; all zero with
    # default BN stats (beta=0, running_mean=0) and zero conv biases.
    shblk = jnp.zeros((8, CMAX), jnp.float32)
    p_mat = jnp.concatenate([w1, w2, w3, wl_pad, shblk], axis=0)   # (328, 32)

    def reorder_ifgo_to_ifog(a):          # PyTorch gate order (i,f,g,o) -> (i,f,o,g)
        return jnp.concatenate([a[0:H], a[H:2 * H], a[3 * H:4 * H], a[2 * H:3 * H]],
                               axis=0)

    def lstm_dir(k):
        k1, k2, k3, k4 = jax.random.split(k, 4)
        bound = 1.0 / (H ** 0.5)
        wih = jax.random.uniform(k1, (4 * H, HIDDEN[2]), jnp.float32, -bound, bound)
        whh = jax.random.uniform(k2, (4 * H, H), jnp.float32, -bound, bound)
        bih = jax.random.uniform(k3, (4 * H,), jnp.float32, -bound, bound)
        bhh = jax.random.uniform(k4, (4 * H,), jnp.float32, -bound, bound)
        return (reorder_ifgo_to_ifog(wih).T,          # (C, 4H)
                reorder_ifgo_to_ifog(whh).T,          # (H, 4H)
                reorder_ifgo_to_ifog(bih + bhh))      # (4H,)

    wih_f, whh_f, b_f = lstm_dir(ks[3])
    wih_b, whh_b, b_b = lstm_dir(ks[4])
    wih_cat = jnp.concatenate([wih_f, wih_b], axis=1)             # (32, 256)
    whh_cat = jnp.concatenate([whh_f, whh_b], axis=1)             # (32, 256)
    bias_blk = jnp.zeros((8, 8 * H), jnp.float32).at[0].set(
        jnp.concatenate([b_f, b_b]))
    p_lstm = jnp.concatenate([wih_cat, whh_cat, bias_blk], axis=0)  # (72, 256)

    return p_mat, p_lstm


if __name__ == "__main__":
    key = jax.random.PRNGKey(0)
    kx, kp = jax.random.split(key)
    x = jax.random.normal(kx, (B, T, DIM_IN), jnp.float32)   # (batch, time, dim_in)
    p_mat, p_lstm = init_params(kp)
    out = cnn_lstm_encoder(x, p_mat, p_lstm)
    out = jax.block_until_ready(out)
    assert out.shape == (B, DIM_OUT)
    assert bool(jnp.all(jnp.isfinite(out)))
    # softmax rows must sum to 1
    assert bool(jnp.all(jnp.abs(jnp.sum(out, axis=1) - 1.0) < 1e-4))
    print("KERNEL_OK")
</pallas_src>

<mosaic_0001>
module attributes {stable_mosaic.version = 11 : i64} {
  func.func @encoder_kernel(%arg0: i32, %arg1: memref<32x32xf32, #tpu.memory_space<vmem>>, %arg2: memref<328x32xf32, #tpu.memory_space<vmem>>, %arg3: memref<72x256xf32, #tpu.memory_space<vmem>>, %arg4: memref<2x16xf32, #tpu.memory_space<vmem>>, %arg5: memref<36x96xf32, #tpu.memory_space<vmem>>) attributes {dimension_semantics = [#tpu.dimension_semantics<arbitrary>], iteration_bounds = array<i64: 1>, scalar_prefetch = 0 : i64, scratch_operands = 1 : i64, tpu.core_type = #tpu.core_type<tc>, window_params = [{pipeline_mode = #tpu.pipeline_mode<synchronous>, transform_indices = @transform_0, window_bounds = array<i64: 32, 32>}, {pipeline_mode = #tpu.pipeline_mode<synchronous>, transform_indices = @transform_1, window_bounds = array<i64: 328, 32>}, {pipeline_mode = #tpu.pipeline_mode<synchronous>, transform_indices = @transform_2, window_bounds = array<i64: 72, 256>}, {pipeline_mode = #tpu.pipeline_mode<synchronous>, transform_indices = @transform_3, window_bounds = array<i64: 2, 16>}]} {
    %cst = arith.constant 0.000000e+00 : f32
    %0 = vector.broadcast %cst : f32 to vector<36x96xf32>
    %c0 = arith.constant 0 : index
    %c0_0 = arith.constant 0 : index
    %1 = vector.load %arg5[%c0, %c0_0] : memref<36x96xf32, #tpu.memory_space<vmem>>, vector<36x96xf32>
    tpu.vector_store %arg5[%c0, %c0_0], %0 {strides = array<i32>} : memref<36x96xf32, #tpu.memory_space<vmem>>, vector<36x96xf32>,
    %c320 = arith.constant 320 : index
    %c0_1 = arith.constant 0 : index
    %2 = vector.load %arg2[%c320, %c0_1] : memref<328x32xf32, #tpu.memory_space<vmem>>, vector<4x32xf32>
    %c0_2 = arith.constant 0 : index
    %c0_3 = arith.constant 0 : index
    %3 = vector.load %arg1[%c0_2, %c0_3] : memref<32x32xf32, #tpu.memory_space<vmem>>, vector<32x32xf32>
    %4 = vector.extract_strided_slice %2 {offsets = [0, 0], sizes = [1, 32], strides = [1, 1]} : vector<4x32xf32> to vector<1x32xf32>
    %c4 = arith.constant 4 : index
    %c0_4 = arith.constant 0 : index
    %5 = vector.load %arg5[%c4, %c0_4] : memref<36x96xf32, #tpu.memory_space<vmem>>, vector<32x32xf32>
    tpu.vector_store %arg5[%c4, %c0_4], %3 {strides = array<i32>} : memref<36x96xf32, #tpu.memory_space<vmem>>, vector<32x32xf32>,
    %c2 = arith.constant 2 : index
    %c32 = arith.constant 32 : index
    %6 = vector.load %arg5[%c2, %c32] : memref<36x96xf32, #tpu.memory_space<vmem>>, vector<32x32xf32>
    tpu.vector_store %arg5[%c2, %c32], %3 {strides = array<i32>} : memref<36x96xf32, #tpu.memory_space<vmem>>, vector<32x32xf32>,
    %c0_5 = arith.constant 0 : index
    %c64 = arith.constant 64 : index
    %7 = vector.load %arg5[%c0_5, %c64] : memref<36x96xf32, #tpu.memory_space<vmem>>, vector<32x32xf32>
    tpu.vector_store %arg5[%c0_5, %c64], %3 {strides = array<i32>} : memref<36x96xf32, #tpu.memory_space<vmem>>, vector<32x32xf32>,
    %c2_6 = arith.constant 2 : index
    %c0_7 = arith.constant 0 : index
    %8 = vector.load %arg5[%c2_6, %c0_7] : memref<36x96xf32, #tpu.memory_space<vmem>>, vector<32x96xf32>
    %c0_8 = arith.constant 0 : index
    %c0_9 = arith.constant 0 : index
    %9 = vector.load %arg2[%c0_8, %c0_9] : memref<328x32xf32, #tpu.memory_space<vmem>>, vector<96x32xf32>
    %cst_10 = arith.constant dense<0.000000e+00> : vector<32x32xf32>
    %10 = tpu.matmul %8, %9, %cst_10 {dimension_numbers = #tpu.dot_dimension_numbers<[1], [0], [0], [1], [0, 0, 1, 1], [], []>} : vector<32x96xf32>, vector<96x32xf32>, vector<32x32xf32> -> vector<32x32xf32>
    %11 = vector.broadcast %4 : vector<1x32xf32> to vector<32x32xf32>
    %12 = arith.addf %10, %11 : vector<32x32xf32>
    %cst_11 = arith.constant 0.000000e+00 : f32
    %13 = vector.broadcast %cst_11 : f32 to vector<32x32xf32>
    %14 = arith.cmpf oge, %12, %13 : vector<32x32xf32>
    %cst_12 = arith.constant 3.000000e-01 : f32
    %15 = vector.broadcast %cst_12 : f32 to vector<32x32xf32>
    %16 = arith.mulf %15, %12 : vector<32x32xf32>
    %17 = arith.select %14, %12, %16 : vector<32x32xi1>, vector<32x32xf32>
    %18 = vector.extract_strided_slice %2 {offsets = [1, 0], sizes = [1, 32], strides = [1, 1]} : vector<4x32xf32> to vector<1x32xf32>
    %c4_13 = arith.constant 4 : index
    %c0_14 = arith.constant 0 : index
    %19 = vector.load %arg5[%c4_13, %c0_14] : memref<36x96xf32, #tpu.memory_space<vmem>>, vector<32x32xf32>
    tpu.vector_store %arg5[%c4_13, %c0_14], %17 {strides = array<i32>} : memref<36x96xf32, #tpu.memory_space<vmem>>, vector<32x32xf32>,
    %c2_15 = arith.constant 2 : index
    %c32_16 = arith.constant 32 : index
    %20 = vector.load %arg5[%c2_15, %c32_16] : memref<36x96xf32, #tpu.memory_space<vmem>>, vector<32x32xf32>
    tpu.vector_store %arg5[%c2_15, %c32_16], %17 {strides = array<i32>} : memref<36x96xf32, #tpu.memory_space<vmem>>, vector<32x32xf32>,
    %c0_17 = arith.constant 0 : index
    %c64_18 = arith.constant 64 : index
    %21 = vector.load %arg5[%c0_17, %c64_18] : memref<36x96xf32, #tpu.memory_space<vmem>>, vector<32x32xf32>
    tpu.vector_store %arg5[%c0_17, %c64_18], %17 {strides = array<i32>} : memref<36x96xf32, #tpu.memory_space<vmem>>, vector<32x32xf32>,
    %c2_19 = arith.constant 2 : index
    %c0_20 = arith.constant 0 : index
    %22 = vector.load %arg5[%c2_19, %c0_20] : memref<36x96xf32, #tpu.memory_space<vmem>>, vector<32x96xf32>
    %c96 = arith.constant 96 : index
    %c0_21 = arith.constant 0 : index
    %23 = vector.load %arg2[%c96, %c0_21] : memref<328x32xf32, #tpu.memory_space<vmem>>, vector<96x32xf32>
    %cst_22 = arith.constant dense<0.000000e+00> : vector<32x32xf32>
    %24 = tpu.matmul %22, %23, %cst_22 {dimension_numbers = #tpu.dot_dimension_numbers<[1], [0], [0], [1], [0, 0, 1, 1], [], []>} : vector<32x96xf32>, vector<96x32xf32>, vector<32x32xf32> -> vector<32x32xf32>
    %25 = vector.broadcast %18 : vector<1x32xf32> to vector<32x32xf32>
    %26 = arith.addf %24, %25 : vector<32x32xf32>
    %cst_23 = arith.constant 0.000000e+00 : f32
    %27 = vector.broadcast %cst_23 : f32 to vector<32x32xf32>
    %28 = arith.cmpf oge, %26, %27 : vector<32x32xf32>
    %cst_24 = arith.constant 3.000000e-01 : f32
    %29 = vector.broadcast %cst_24 : f32 to vector<32x32xf32>
    %30 = arith.mulf %29, %26 : vector<32x32xf32>
    %31 = arith.select %28, %26, %30 : vector<32x32xi1>, vector<32x32xf32>
    %32 = vector.extract_strided_slice %2 {offsets = [2, 0], sizes = [1, 32], strides = [1, 1]} : vector<4x32xf32> to vector<1x32xf32>
    %c4_25 = arith.constant 4 : index
    %c0_26 = arith.constant 0 : index
    %33 = vector.load %arg5[%c4_25, %c0_26] : memref<36x96xf32, #tpu.memory_space<vmem>>, vector<32x32xf32>
    tpu.vector_store %arg5[%c4_25, %c0_26], %31 {strides = array<i32>} : memref<36x96xf32, #tpu.memory_space<vmem>>, vector<32x32xf32>,
    %c2_27 = arith.constant 2 : index
    %c32_28 = arith.constant 32 : index
    %34 = vector.load %arg5[%c2_27, %c32_28] : memref<36x96xf32, #tpu.memory_space<vmem>>, vector<32x32xf32>
    tpu.vector_store %arg5[%c2_27, %c32_28], %31 {strides = array<i32>} : memref<36x96xf32, #tpu.memory_space<vmem>>, vector<32x32xf32>,
    %c0_29 = arith.constant 0 : index
    %c64_30 = arith.constant 64 : index
    %35 = vector.load %arg5[%c0_29, %c64_30] : memref<36x96xf32, #tpu.memory_space<vmem>>, vector<32x32xf32>
    tpu.vector_store %arg5[%c0_29, %c64_30], %31 {strides = array<i32>} : memref<36x96xf32, #tpu.memory_space<vmem>>, vector<32x32xf32>,
    %c2_31 = arith.constant 2 : index
    %c0_32 = arith.constant 0 : index
    %36 = vector.load %arg5[%c2_31, %c0_32] : memref<36x96xf32, #tpu.memory_space<vmem>>, vector<32x96xf32>
    %c192 = arith.constant 192 : index
    %c0_33 = arith.constant 0 : index
    %37 = vector.load %arg2[%c192, %c0_33] : memref<328x32xf32, #tpu.memory_space<vmem>>, vector<96x32xf32>
    %cst_34 = arith.constant dense<0.000000e+00> : vector<32x32xf32>
    %38 = tpu.matmul %36, %37, %cst_34 {dimension_numbers = #tpu.dot_dimension_numbers<[1], [0], [0], [1], [0, 0, 1, 1], [], []>} : vector<32x96xf32>, vector<96x32xf32>, vector<32x32xf32> -> vector<32x32xf32>
    %39 = vector.broadcast %32 : vector<1x32xf32> to vector<32x32xf32>
    %40 = arith.addf %38, %39 : vector<32x32xf32>
    %cst_35 = arith.constant 0.000000e+00 : f32
    %41 = vector.broadcast %cst_35 : f32 to vector<32x32xf32>
    %42 = arith.cmpf oge, %40, %41 : vector<32x32xf32>
    %cst_36 = arith.constant 3.000000e-01 : f32
    %43 = vector.broadcast %cst_36 : f32 to vector<32x32xf32>
    %44 = arith.mulf %43, %40 : vector<32x32xf32>
    %45 = arith.select %42, %40, %44 : vector<32x32xi1>, vector<32x32xf32>
    %c0_37 = arith.constant 0 : index
    %c0_38 = arith.constant 0 : index
    %46 = vector.load %arg3[%c0_37, %c0_38] : memref<72x256xf32, #tpu.memory_space<vmem>>, vector<32x256xf32>
    %cst_39 = arith.constant dense<0.000000e+00> : vector<32x256xf32>
    %47 = tpu.matmul %45, %46, %cst_39 {dimension_numbers = #tpu.dot_dimension_numbers<[1], [0], [0], [1], [0, 0, 1, 1], [], []>} : vector<32x32xf32>, vector<32x256xf32>, vector<32x256xf32> -> vector<32x256xf32>
    %c64_40 = arith.constant 64 : index
    %c0_41 = arith.constant 0 : index
    %48 = vector.load %arg3[%c64_40, %c0_41] : memref<72x256xf32, #tpu.memory_space<vmem>>, vector<1x256xf32>
    %49 = vector.broadcast %48 : vector<1x256xf32> to vector<32x256xf32>
    %50 = arith.addf %47, %49 : vector<32x256xf32>
    %c32_42 = arith.constant 32 : index
    %c0_43 = arith.constant 0 : index
    %51 = vector.load %arg3[%c32_42, %c0_43] : memref<72x256xf32, #tpu.memory_space<vmem>>, vector<32x128xf32>
    %c32_44 = arith.constant 32 : index
    %c128 = arith.constant 128 : index
    %52 = vector.load %arg3[%c32_44, %c128] : memref<72x256xf32, #tpu.memory_space<vmem>>, vector<32x128xf32>
    %cst_45 = arith.constant 0.000000e+00 : f32
    %53 = vector.broadcast %cst_45 : f32 to vector<2x32xf32>
    %cst_46 = arith.constant 0.000000e+00 : f32
    %54 = vector.broadcast %cst_46 : f32 to vector<2x32xf32>
    %cst_47 = arith.constant 0.000000e+00 : f32
    %55 = vector.broadcast %cst_47 : f32 to vector<2x32xf32>
    %cst_48 = arith.constant 0.000000e+00 : f32
    %56 = vector.broadcast %cst_48 : f32 to vector<2x32xf32>
    %cst_49 = arith.constant 0.000000e+00 : f32
    %57 = vector.broadcast %cst_49 : f32 to vector<2x32xf32>
    %58 = vector.extract_strided_slice %50 {offsets = [0, 0], sizes = [2, 128], strides = [1, 1]} : vector<32x256xf32> to vector<2x128xf32>
    %cst_50 = arith.constant dense<0.000000e+00> : vector<2x128xf32>
    %59 = tpu.matmul %53, %51, %cst_50 {dimension_numbers = #tpu.dot_dimension_numbers<[1], [0], [0], [1], [0, 0, 1, 1], [], []>} : vector<2x32xf32>, vector<32x128xf32>, vector<2x128xf32> -> vector<2x128xf32>
    %60 = arith.addf %58, %59 : vector<2x128xf32>
    %61 = vector.extract_strided_slice %50 {offsets = [30, 128], sizes = [2, 128], strides = [1, 1]} : vector<32x256xf32> to vector<2x128xf32>
    %cst_51 = arith.constant dense<0.000000e+00> : vector<2x128xf32>
    %62 = tpu.matmul %55, %52, %cst_51 {dimension_numbers = #tpu.dot_dimension_numbers<[1], [0], [0], [1], [0, 0, 1, 1], [], []>} : vector<2x32xf32>, vector<32x128xf32>, vector<2x128xf32> -> vector<2x128xf32>
    %63 = arith.addf %61, %62 : vector<2x128xf32>
    %64 = vector.extract_strided_slice %60 {offsets = [0, 0], sizes = [2, 96], strides = [1, 1]} : vector<2x128xf32> to vector<2x96xf32>
    %65 = arith.negf %64 : vector<2x96xf32>
    %66 = math.exp %65 : vector<2x96xf32>
    %cst_52 = arith.constant 1.000000e+00 : f32
    %67 = vector.broadcast %cst_52 : f32 to vector<2x96xf32>
    %68 = arith.addf %67, %66 : vector<2x96xf32>
    %69 = arith.divf %67, %68 : vector<2x96xf32>
    %70 = vector.extract_strided_slice %63 {offsets = [0, 0], sizes = [2, 96], strides = [1, 1]} : vector<2x128xf32> to vector<2x96xf32>
    %71 = arith.negf %70 : vector<2x96xf32>
    %72 = math.exp %71 : vector<2x96xf32>
    %cst_53 = arith.constant 1.000000e+00 : f32
    %73 = vector.broadcast %cst_53 : f32 to vector<2x96xf32>
    %74 = arith.addf %73, %72 : vector<2x96xf32>
    %75 = arith.divf %73, %74 : vector<2x96xf32>
    %76 = vector.extract_strided_slice %69 {offsets = [0, 32], sizes = [2, 32], strides = [1, 1]} : vector<2x96xf32> to vector<2x32xf32>
    %77 = arith.mulf %76, %54 : vector<2x32xf32>
    %78 = vector.extract_strided_slice %69 {offsets = [0, 0], sizes = [2, 32], strides = [1, 1]} : vector<2x96xf32> to vector<2x32xf32>
    %79 = vector.extract_strided_slice %60 {offsets = [0, 96], sizes = [2, 32], strides = [1, 1]} : vector<2x128xf32> to vector<2x32xf32>
    %80 = math.tanh %79 : vector<2x32xf32>
    %81 = arith.mulf %78, %80 : vector<2x32xf32>
    %82 = arith.addf %77, %81 : vector<2x32xf32>
    %83 = vector.extract_strided_slice %75 {offsets = [0, 32], sizes = [2, 32], strides = [1, 1]} : vector<2x96xf32> to vector<2x32xf32>
    %84 = arith.mulf %83, %56 : vector<2x32xf32>
    %85 = vector.extract_strided_slice %75 {offsets = [0, 0], sizes = [2, 32], strides = [1, 1]} : vector<2x96xf32> to vector<2x32xf32>
    %86 = vector.extract_strided_slice %63 {offsets = [0, 96], sizes = [2, 32], strides = [1, 1]} : vector<2x128xf32> to vector<2x32xf32>
    %87 = math.tanh %86 : vector<2x32xf32>
    %88 = arith.mulf %85, %87 : vector<2x32xf32>
    %89 = arith.addf %84, %88 : vector<2x32xf32>
    %90 = vector.extract_strided_slice %69 {offsets = [0, 64], sizes = [2, 32], strides = [1, 1]} : vector<2x96xf32> to vector<2x32xf32>
    %91 = math.tanh %82 : vector<2x32xf32>
    %92 = arith.mulf %90, %91 : vector<2x32xf32>
    %93 = vector.extract_strided_slice %75 {offsets = [0, 64], sizes = [2, 32], strides = [1, 1]} : vector<2x96xf32> to vector<2x32xf32>
    %94 = math.tanh %89 : vector<2x32xf32>
    %95 = arith.mulf %93, %94 : vector<2x32xf32>
    %96 = arith.addf %57, %92 : vector<2x32xf32>
    %97 = arith.addf %96, %95 : vector<2x32xf32>
    %98 = vector.extract_strided_slice %50 {offsets = [2, 0], sizes = [2, 128], strides = [1, 1]} : vector<32x256xf32> to vector<2x128xf32>
    %cst_54 = arith.constant dense<0.000000e+00> : vector<2x128xf32>
    %99 = tpu.matmul %92, %51, %cst_54 {dimension_numbers = #tpu.dot_dimension_numbers<[1], [0], [0], [1], [0, 0, 1, 1], [], []>} : vector<2x32xf32>, vector<32x128xf32>, vector<2x128xf32> -> vector<2x128xf32>
    %100 = arith.addf %98, %99 : vector<2x128xf32>
    %101 = vector.extract_strided_slice %50 {offsets = [28, 128], sizes = [2, 128], strides = [1, 1]} : vector<32x256xf32> to vector<2x128xf32>
    %cst_55 = arith.constant dense<0.000000e+00> : vector<2x128xf32>
    %102 = tpu.matmul %95, %52, %cst_55 {dimension_numbers = #tpu.dot_dimension_numbers<[1], [0], [0], [1], [0, 0, 1, 1], [], []>} : vector<2x32xf32>, vector<32x128xf32>, vector<2x128xf32> -> vector<2x128xf32>
    %103 = arith.addf %101, %102 : vector<2x128xf32>
    %104 = vector.extract_strided_slice %100 {offsets = [0, 0], sizes = [2, 96], strides = [1, 1]} : vector<2x128xf32> to vector<2x96xf32>
    %105 = arith.negf %104 : vector<2x96xf32>
    %106 = math.exp %105 : vector<2x96xf32>
    %cst_56 = arith.constant 1.000000e+00 : f32
    %107 = vector.broadcast %cst_56 : f32 to vector<2x96xf32>
    %108 = arith.addf %107, %106 : vector<2x96xf32>
    %109 = arith.divf %107, %108 : vector<2x96xf32>
    %110 = vector.extract_strided_slice %103 {offsets = [0, 0], sizes = [2, 96], strides = [1, 1]} : vector<2x128xf32> to vector<2x96xf32>
    %111 = arith.negf %110 : vector<2x96xf32>
    %112 = math.exp %111 : vector<2x96xf32>
    %cst_57 = arith.constant 1.000000e+00 : f32
    %113 = vector.broadcast %cst_57 : f32 to vector<2x96xf32>
    %114 = arith.addf %113, %112 : vector<2x96xf32>
    %115 = arith.divf %113, %114 : vector<2x96xf32>
    %116 = vector.extract_strided_slice %109 {offsets = [0, 32], sizes = [2, 32], strides = [1, 1]} : vector<2x96xf32> to vector<2x32xf32>
    %117 = arith.mulf %116, %82 : vector<2x32xf32>
    %118 = vector.extract_strided_slice %109 {offsets = [0, 0], sizes = [2, 32], strides = [1, 1]} : vector<2x96xf32> to vector<2x32xf32>
    %119 = vector.extract_strided_slice %100 {offsets = [0, 96], sizes = [2, 32], strides = [1, 1]} : vector<2x128xf32> to vector<2x32xf32>
    %120 = math.tanh %119 : vector<2x32xf32>
    %121 = arith.mulf %118, %120 : vector<2x32xf32>
    %122 = arith.addf %117, %121 : vector<2x32xf32>
    %123 = vector.extract_strided_slice %115 {offsets = [0, 32], sizes = [2, 32], strides = [1, 1]} : vector<2x96xf32> to vector<2x32xf32>
    %124 = arith.mulf %123, %89 : vector<2x32xf32>
    %125 = vector.extract_strided_slice %115 {offsets = [0, 0], sizes = [2, 32], strides = [1, 1]} : vector<2x96xf32> to vector<2x32xf32>
    %126 = vector.extract_strided_slice %103 {offsets = [0, 96], sizes = [2, 32], strides = [1, 1]} : vector<2x128xf32> to vector<2x32xf32>
    %127 = math.tanh %126 : vector<2x32xf32>
    %128 = arith.mulf %125, %127 : vector<2x32xf32>
    %129 = arith.addf %124, %128 : vector<2x32xf32>
    %130 = vector.extract_strided_slice %109 {offsets = [0, 64], sizes = [2, 32], strides = [1, 1]} : vector<2x96xf32> to vector<2x32xf32>
    %131 = math.tanh %122 : vector<2x32xf32>
    %132 = arith.mulf %130, %131 : vector<2x32xf32>
    %133 = vector.extract_strided_slice %115 {offsets = [0, 64], sizes = [2, 32], strides = [1, 1]} : vector<2x96xf32> to vector<2x32xf32>
    %134 = math.tanh %129 : vector<2x32xf32>
    %135 = arith.mulf %133, %134 : vector<2x32xf32>
    %136 = arith.addf %97, %132 : vector<2x32xf32>
    %137 = arith.addf %136, %135 : vector<2x32xf32>
    %138 = vector.extract_strided_slice %50 {offsets = [4, 0], sizes = [2, 128], strides = [1, 1]} : vector<32x256xf32> to vector<2x128xf32>
    %cst_58 = arith.constant dense<0.000000e+00> : vector<2x128xf32>
    %139 = tpu.matmul %132, %51, %cst_58 {dimension_numbers = #tpu.dot_dimension_numbers<[1], [0], [0], [1], [0, 0, 1, 1], [], []>} : vector<2x32xf32>, vector<32x128xf32>, vector<2x128xf32> -> vector<2x128xf32>
    %140 = arith.addf %138, %139 : vector<2x128xf32>
    %141 = vector.extract_strided_slice %50 {offsets = [26, 128], sizes = [2, 128], strides = [1, 1]} : vector<32x256xf32> to vector<2x128xf32>
    %cst_59 = arith.constant dense<0.000000e+00> : vector<2x128xf32>
    %142 = tpu.matmul %135, %52, %cst_59 {dimension_numbers = #tpu.dot_dimension_numbers<[1], [0], [0], [1], [0, 0, 1, 1], [], []>} : vector<2x32xf32>, vector<32x128xf32>, vector<2x128xf32> -> vector<2x128xf32>
    %143 = arith.addf %141, %142 : vector<2x128xf32>
    %144 = vector.extract_strided_slice %140 {offsets = [0, 0], sizes = [2, 96], strides = [1, 1]} : vector<2x128xf32> to vector<2x96xf32>
    %145 = arith.negf %144 : vector<2x96xf32>
    %146 = math.exp %145 : vector<2x96xf32>
    %cst_60 = arith.constant 1.000000e+00 : f32
    %147 = vector.broadcast %cst_60 : f32 to vector<2x96xf32>
    %148 = arith.addf %147, %146 : vector<2x96xf32>
    %149 = arith.divf %147, %148 : vector<2x96xf32>
    %150 = vector.extract_strided_slice %143 {offsets = [0, 0], sizes = [2, 96], strides = [1, 1]} : vector<2x128xf32> to vector<2x96xf32>
    %151 = arith.negf %150 : vector<2x96xf32>
    %152 = math.exp %151 : vector<2x96xf32>
    %cst_61 = arith.constant 1.000000e+00 : f32
    %153 = vector.broadcast %cst_61 : f32 to vector<2x96xf32>
    %154 = arith.addf %153, %152 : vector<2x96xf32>
    %155 = arith.divf %153, %154 : vector<2x96xf32>
    %156 = vector.extract_strided_slice %149 {offsets = [0, 32], sizes = [2, 32], strides = [1, 1]} : vector<2x96xf32> to vector<2x32xf32>
    %157 = arith.mulf %156, %122 : vector<2x32xf32>
    %158 = vector.extract_strided_slice %149 {offsets = [0, 0], sizes = [2, 32], strides = [1, 1]} : vector<2x96xf32> to vector<2x32xf32>
    %159 = vector.extract_strided_slice %140 {offsets = [0, 96], sizes = [2, 32], strides = [1, 1]} : vector<2x128xf32> to vector<2x32xf32>
    %160 = math.tanh %159 : vector<2x32xf32>
    %161 = arith.mulf %158, %160 : vector<2x32xf32>
    %162 = arith.addf %157, %161 : vector<2x32xf32>
    %163 = vector.extract_strided_slice %155 {offsets = [0, 32], sizes = [2, 32], strides = [1, 1]} : vector<2x96xf32> to vector<2x32xf32>
    %164 = arith.mulf %163, %129 : vector<2x32xf32>
    %165 = vector.extract_strided_slice %155 {offsets = [0, 0], sizes = [2, 32], strides = [1, 1]} : vector<2x96xf32> to vector<2x32xf32>
    %166 = vector.extract_strided_slice %143 {offsets = [0, 96], sizes = [2, 32], strides = [1, 1]} : vector<2x128xf32> to vector<2x32xf32>
    %167 = math.tanh %166 : vector<2x32xf32>
    %168 = arith.mulf %165, %167 : vector<2x32xf32>
    %169 = arith.addf %164, %168 : vector<2x32xf32>
    %170 = vector.extract_strided_slice %149 {offsets = [0, 64], sizes = [2, 32], strides = [1, 1]} : vector<2x96xf32> to vector<2x32xf32>
    %171 = math.tanh %162 : vector<2x32xf32>
    %172 = arith.mulf %170, %171 : vector<2x32xf32>
    %173 = vector.extract_strided_slice %155 {offsets = [0, 64], sizes = [2, 32], strides = [1, 1]} : vector<2x96xf32> to vector<2x32xf32>
    %174 = math.tanh %169 : vector<2x32xf32>
    %175 = arith.mulf %173, %174 : vector<2x32xf32>
    %176 = arith.addf %137, %172 : vector<2x32xf32>
    %177 = arith.addf %176, %175 : vector<2x32xf32>
    %178 = vector.extract_strided_slice %50 {offsets = [6, 0], sizes = [2, 128], strides = [1, 1]} : vector<32x256xf32> to vector<2x128xf32>
    %cst_62 = arith.constant dense<0.000000e+00> : vector<2x128xf32>
    %179 = tpu.matmul %172, %51, %cst_62 {dimension_numbers = #tpu.dot_dimension_numbers<[1], [0], [0], [1], [0, 0, 1, 1], [], []>} : vector<2x32xf32>, vector<32x128xf32>, vector<2x128xf32> -> vector<2x128xf32>
    %180 = arith.addf %178, %179 : vector<2x128xf32>
    %181 = vector.extract_strided_slice %50 {offsets = [24, 128], sizes = [2, 128], strides = [1, 1]} : vector<32x256xf32> to vector<2x128xf32>
    %cst_63 = arith.constant dense<0.000000e+00> : vector<2x128xf32>
    %182 = tpu.matmul %175, %52, %cst_63 {dimension_numbers = #tpu.dot_dimension_numbers<[1], [0], [0], [1], [0, 0, 1, 1], [], []>} : vector<2x32xf32>, vector<32x128xf32>, vector<2x128xf32> -> vector<2x128xf32>
    %183 = arith.addf %181, %182 : vector<2x128xf32>
    %184 = vector.extract_strided_slice %180 {offsets = [0, 0], sizes = [2, 96], strides = [1, 1]} : vector<2x128xf32> to vector<2x96xf32>
    %185 = arith.negf %184 : vector<2x96xf32>
    %186 = math.exp %185 : vector<2x96xf32>
    %cst_64 = arith.constant 1.000000e+00 : f32
    %187 = vector.broadcast %cst_64 : f32 to vector<2x96xf32>
    %188 = arith.addf %187, %186 : vector<2x96xf32>
    %189 = arith.divf %187, %188 : vector<2x96xf32>
    %190 = vector.extract_strided_slice %183 {offsets = [0, 0], sizes = [2, 96], strides = [1, 1]} : vector<2x128xf32> to vector<2x96xf32>
    %191 = arith.negf %190 : vector<2x96xf32>
    %192 = math.exp %191 : vector<2x96xf32>
    %cst_65 = arith.constant 1.000000e+00 : f32
    %193 = vector.broadcast %cst_65 : f32 to vector<2x96xf32>
    %194 = arith.addf %193, %192 : vector<2x96xf32>
    %195 = arith.divf %193, %194 : vector<2x96xf32>
    %196 = vector.extract_strided_slice %189 {offsets = [0, 32], sizes = [2, 32], strides = [1, 1]} : vector<2x96xf32> to vector<2x32xf32>
    %197 = arith.mulf %196, %162 : vector<2x32xf32>
    %198 = vector.extract_strided_slice %189 {offsets = [0, 0], sizes = [2, 32], strides = [1, 1]} : vector<2x96xf32> to vector<2x32xf32>
    %199 = vector.extract_strided_slice %180 {offsets = [0, 96], sizes = [2, 32], strides = [1, 1]} : vector<2x128xf32> to vector<2x32xf32>
    %200 = math.tanh %199 : vector<2x32xf32>
    %201 = arith.mulf %198, %200 : vector<2x32xf32>
    %202 = arith.addf %197, %201 : vector<2x32xf32>
    %203 = vector.extract_strided_slice %195 {offsets = [0, 32], sizes = [2, 32], strides = [1, 1]} : vector<2x96xf32> to vector<2x32xf32>
    %204 = arith.mulf %203, %169 : vector<2x32xf32>
    %205 = vector.extract_strided_slice %195 {offsets = [0, 0], sizes = [2, 32], strides = [1, 1]} : vector<2x96xf32> to vector<2x32xf32>
    %206 = vector.extract_strided_slice %183 {offsets = [0, 96], sizes = [2, 32], strides = [1, 1]} : vector<2x128xf32> to vector<2x32xf32>
    %207 = math.tanh %206 : vector<2x32xf32>
    %208 = arith.mulf %205, %207 : vector<2x32xf32>
    %209 = arith.addf %204, %208 : vector<2x32xf32>
    %210 = vector.extract_strided_slice %189 {offsets = [0, 64], sizes = [2, 32], strides = [1, 1]} : vector<2x96xf32> to vector<2x32xf32>
    %211 = math.tanh %202 : vector<2x32xf32>
    %212 = arith.mulf %210, %211 : vector<2x32xf32>
    %213 = vector.extract_strided_slice %195 {offsets = [0, 64], sizes = [2, 32], strides = [1, 1]} : vector<2x96xf32> to vector<2x32xf32>
    %214 = math.tanh %209 : vector<2x32xf32>
    %215 = arith.mulf %213, %214 : vector<2x32xf32>
    %216 = arith.addf %177, %212 : vector<2x32xf32>
    %217 = arith.addf %216, %215 : vector<2x32xf32>
    %218 = vector.extract_strided_slice %50 {offsets = [8, 0], sizes = [2, 128], strides = [1, 1]} : vector<32x256xf32> to vector<2x128xf32>
    %cst_66 = arith.constant dense<0.000000e+00> : vector<2x128xf32>
    %219 = tpu.matmul %212, %51, %cst_66 {dimension_numbers = #tpu.dot_dimension_numbers<[1], [0], [0], [1], [0, 0, 1, 1], [], []>} : vector<2x32xf32>, vector<32x128xf32>, vector<2x128xf32> -> vector<2x128xf32>
    %220 = arith.addf %218, %219 : vector<2x128xf32>
    %221 = vector.extract_strided_slice %50 {offsets = [22, 128], sizes = [2, 128], strides = [1, 1]} : vector<32x256xf32> to vector<2x128xf32>
    %cst_67 = arith.constant dense<0.000000e+00> : vector<2x128xf32>
    %222 = tpu.matmul %215, %52, %cst_67 {dimension_numbers = #tpu.dot_dimension_numbers<[1], [0], [0], [1], [0, 0, 1, 1], [], []>} : vector<2x32xf32>, vector<32x128xf32>, vector<2x128xf32> -> vector<2x128xf32>
    %223 = arith.addf %221, %222 : vector<2x128xf32>
    %224 = vector.extract_strided_slice %220 {offsets = [0, 0], sizes = [2, 96], strides = [1, 1]} : vector<2x128xf32> to vector<2x96xf32>
    %225 = arith.negf %224 : vector<2x96xf32>
    %226 = math.exp %225 : vector<2x96xf32>
    %cst_68 = arith.constant 1.000000e+00 : f32
    %227 = vector.broadcast %cst_68 : f32 to vector<2x96xf32>
    %228 = arith.addf %227, %226 : vector<2x96xf32>
    %229 = arith.divf %227, %228 : vector<2x96xf32>
    %230 = vector.extract_strided_slice %223 {offsets = [0, 0], sizes = [2, 96], strides = [1, 1]} : vector<2x128xf32> to vector<2x96xf32>
    %231 = arith.negf %230 : vector<2x96xf32>
    %232 = math.exp %231 : vector<2x96xf32>
    %cst_69 = arith.constant 1.000000e+00 : f32
    %233 = vector.broadcast %cst_69 : f32 to vector<2x96xf32>
    %234 = arith.addf %233, %232 : vector<2x96xf32>
    %235 = arith.divf %233, %234 : vector<2x96xf32>
    %236 = vector.extract_strided_slice %229 {offsets = [0, 32], sizes = [2, 32], strides = [1, 1]} : vector<2x96xf32> to vector<2x32xf32>
    %237 = arith.mulf %236, %202 : vector<2x32xf32>
    %238 = vector.extract_strided_slice %229 {offsets = [0, 0], sizes = [2, 32], strides = [1, 1]} : vector<2x96xf32> to vector<2x32xf32>
    %239 = vector.extract_strided_slice %220 {offsets = [0, 96], sizes = [2, 32], strides = [1, 1]} : vector<2x128xf32> to vector<2x32xf32>
    %240 = math.tanh %239 : vector<2x32xf32>
    %241 = arith.mulf %238, %240 : vector<2x32xf32>
    %242 = arith.addf %237, %241 : vector<2x32xf32>
    %243 = vector.extract_strided_slice %235 {offsets = [0, 32], sizes = [2, 32], strides = [1, 1]} : vector<2x96xf32> to vector<2x32xf32>
    %244 = arith.mulf %243, %209 : vector<2x32xf32>
    %245 = vector.extract_strided_slice %235 {offsets = [0, 0], sizes = [2, 32], strides = [1, 1]} : vector<2x96xf32> to vector<2x32xf32>
    %246 = vector.extract_strided_slice %223 {offsets = [0, 96], sizes = [2, 32], strides = [1, 1]} : vector<2x128xf32> to vector<2x32xf32>
    %247 = math.tanh %246 : vector<2x32xf32>
    %248 = arith.mulf %245, %247 : vector<2x32xf32>
    %249 = arith.addf %244, %248 : vector<2x32xf32>
    %250 = vector.extract_strided_slice %229 {offsets = [0, 64], sizes = [2, 32], strides = [1, 1]} : vector<2x96xf32> to vector<2x32xf32>
    %251 = math.tanh %242 : vector<2x32xf32>
    %252 = arith.mulf %250, %251 : vector<2x32xf32>
    %253 = vector.extract_strided_slice %235 {offsets = [0, 64], sizes = [2, 32], strides = [1, 1]} : vector<2x96xf32> to vector<2x32xf32>
    %254 = math.tanh %249 : vector<2x32xf32>
    %255 = arith.mulf %253, %254 : vector<2x32xf32>
    %256 = arith.addf %217, %252 : vector<2x32xf32>
    %257 = arith.addf %256, %255 : vector<2x32xf32>
    %258 = vector.extract_strided_slice %50 {offsets = [10, 0], sizes = [2, 128], strides = [1, 1]} : vector<32x256xf32> to vector<2x128xf32>
    %cst_70 = arith.constant dense<0.000000e+00> : vector<2x128xf32>
    %259 = tpu.matmul %252, %51, %cst_70 {dimension_numbers = #tpu.dot_dimension_numbers<[1], [0], [0], [1], [0, 0, 1, 1], [], []>} : vector<2x32xf32>, vector<32x128xf32>, vector<2x128xf32> -> vector<2x128xf32>
    %260 = arith.addf %258, %259 : vector<2x128xf32>
    %261 = vector.extract_strided_slice %50 {offsets = [20, 128], sizes = [2, 128], strides = [1, 1]} : vector<32x256xf32> to vector<2x128xf32>
    %cst_71 = arith.constant dense<0.000000e+00> : vector<2x128xf32>
    %262 = tpu.matmul %255, %52, %cst_71 {dimension_numbers = #tpu.dot_dimension_numbers<[1], [0], [0], [1], [0, 0, 1, 1], [], []>} : vector<2x32xf32>, vector<32x128xf32>, vector<2x128xf32> -> vector<2x128xf32>
    %263 = arith.addf %261, %262 : vector<2x128xf32>
    %264 = vector.extract_strided_slice %260 {offsets = [0, 0], sizes = [2, 96], strides = [1, 1]} : vector<2x128xf32> to vector<2x96xf32>
    %265 = arith.negf %264 : vector<2x96xf32>
    %266 = math.exp %265 : vector<2x96xf32>
    %cst_72 = arith.constant 1.000000e+00 : f32
    %267 = vector.broadcast %cst_72 : f32 to vector<2x96xf32>
    %268 = arith.addf %267, %266 : vector<2x96xf32>
    %269 = arith.divf %267, %268 : vector<2x96xf32>
    %270 = vector.extract_strided_slice %263 {offsets = [0, 0], sizes = [2, 96], strides = [1, 1]} : vector<2x128xf32> to vector<2x96xf32>
    %271 = arith.negf %270 : vector<2x96xf32>
    %272 = math.exp %271 : vector<2x96xf32>
    %cst_73 = arith.constant 1.000000e+00 : f32
    %273 = vector.broadcast %cst_73 : f32 to vector<2x96xf32>
    %274 = arith.addf %273, %272 : vector<2x96xf32>
    %275 = arith.divf %273, %274 : vector<2x96xf32>
    %276 = vector.extract_strided_slice %269 {offsets = [0, 32], sizes = [2, 32], strides = [1, 1]} : vector<2x96xf32> to vector<2x32xf32>
    %277 = arith.mulf %276, %242 : vector<2x32xf32>
    %278 = vector.extract_strided_slice %269 {offsets = [0, 0], sizes = [2, 32], strides = [1, 1]} : vector<2x96xf32> to vector<2x32xf32>
    %279 = vector.extract_strided_slice %260 {offsets = [0, 96], sizes = [2, 32], strides = [1, 1]} : vector<2x128xf32> to vector<2x32xf32>
    %280 = math.tanh %279 : vector<2x32xf32>
    %281 = arith.mulf %278, %280 : vector<2x32xf32>
    %282 = arith.addf %277, %281 : vector<2x32xf32>
    %283 = vector.extract_strided_slice %275 {offsets = [0, 32], sizes = [2, 32], strides = [1, 1]} : vector<2x96xf32> to vector<2x32xf32>
    %284 = arith.mulf %283, %249 : vector<2x32xf32>
    %285 = vector.extract_strided_slice %275 {offsets = [0, 0], sizes = [2, 32], strides = [1, 1]} : vector<2x96xf32> to vector<2x32xf32>
    %286 = vector.extract_strided_slice %263 {offsets = [0, 96], sizes = [2, 32], strides = [1, 1]} : vector<2x128xf32> to vector<2x32xf32>
    %287 = math.tanh %286 : vector<2x32xf32>
    %288 = arith.mulf %285, %287 : vector<2x32xf32>
    %289 = arith.addf %284, %288 : vector<2x32xf32>
    %290 = vector.extract_strided_slice %269 {offsets = [0, 64], sizes = [2, 32], strides = [1, 1]} : vector<2x96xf32> to vector<2x32xf32>
    %291 = math.tanh %282 : vector<2x32xf32>
    %292 = arith.mulf %290, %291 : vector<2x32xf32>
    %293 = vector.extract_strided_slice %275 {offsets = [0, 64], sizes = [2, 32], strides = [1, 1]} : vector<2x96xf32> to vector<2x32xf32>
    %294 = math.tanh %289 : vector<2x32xf32>
    %295 = arith.mulf %293, %294 : vector<2x32xf32>
    %296 = arith.addf %257, %292 : vector<2x32xf32>
    %297 = arith.addf %296, %295 : vector<2x32xf32>
    %298 = vector.extract_strided_slice %50 {offsets = [12, 0], sizes = [2, 128], strides = [1, 1]} : vector<32x256xf32> to vector<2x128xf32>
    %cst_74 = arith.constant dense<0.000000e+00> : vector<2x128xf32>
    %299 = tpu.matmul %292, %51, %cst_74 {dimension_numbers = #tpu.dot_dimension_numbers<[1], [0], [0], [1], [0, 0, 1, 1], [], []>} : vector<2x32xf32>, vector<32x128xf32>, vector<2x128xf32> -> vector<2x128xf32>
    %300 = arith.addf %298, %299 : vector<2x128xf32>
    %301 = vector.extract_strided_slice %50 {offsets = [18, 128], sizes = [2, 128], strides = [1, 1]} : vector<32x256xf32> to vector<2x128xf32>
    %cst_75 = arith.constant dense<0.000000e+00> : vector<2x128xf32>
    %302 = tpu.matmul %295, %52, %cst_75 {dimension_numbers = #tpu.dot_dimension_numbers<[1], [0], [0], [1], [0, 0, 1, 1], [], []>} : vector<2x32xf32>, vector<32x128xf32>, vector<2x128xf32> -> vector<2x128xf32>
    %303 = arith.addf %301, %302 : vector<2x128xf32>
    %304 = vector.extract_strided_slice %300 {offsets = [0, 0], sizes = [2, 96], strides = [1, 1]} : vector<2x128xf32> to vector<2x96xf32>
    %305 = arith.negf %304 : vector<2x96xf32>
    %306 = math.exp %305 : vector<2x96xf32>
    %cst_76 = arith.constant 1.000000e+00 : f32
    %307 = vector.broadcast %cst_76 : f32 to vector<2x96xf32>
    %308 = arith.addf %307, %306 : vector<2x96xf32>
    %309 = arith.divf %307, %308 : vector<2x96xf32>
    %310 = vector.extract_strided_slice %303 {offsets = [0, 0], sizes = [2, 96], strides = [1, 1]} : vector<2x128xf32> to vector<2x96xf32>
    %311 = arith.negf %310 : vector<2x96xf32>
    %312 = math.exp %311 : vector<2x96xf32>
    %cst_77 = arith.constant 1.000000e+00 : f32
    %313 = vector.broadcast %cst_77 : f32 to vector<2x96xf32>
    %314 = arith.addf %313, %312 : vector<2x96xf32>
    %315 = arith.divf %313, %314 : vector<2x96xf32>
    %316 = vector.extract_strided_slice %309 {offsets = [0, 32], sizes = [2, 32], strides = [1, 1]} : vector<2x96xf32> to vector<2x32xf32>
    %317 = arith.mulf %316, %282 : vector<2x32xf32>
    %318 = vector.extract_strided_slice %309 {offsets = [0, 0], sizes = [2, 32], strides = [1, 1]} : vector<2x96xf32> to vector<2x32xf32>
    %319 = vector.extract_strided_slice %300 {offsets = [0, 96], sizes = [2, 32], strides = [1, 1]} : vector<2x128xf32> to vector<2x32xf32>
    %320 = math.tanh %319 : vector<2x32xf32>
    %321 = arith.mulf %318, %320 : vector<2x32xf32>
    %322 = arith.addf %317, %321 : vector<2x32xf32>
    %323 = vector.extract_strided_slice %315 {offsets = [0, 32], sizes = [2, 32], strides = [1, 1]} : vector<2x96xf32> to vector<2x32xf32>
    %324 = arith.mulf %323, %289 : vector<2x32xf32>
    %325 = vector.extract_strided_slice %315 {offsets = [0, 0], sizes = [2, 32], strides = [1, 1]} : vector<2x96xf32> to vector<2x32xf32>
    %326 = vector.extract_strided_slice %303 {offsets = [0, 96], sizes = [2, 32], strides = [1, 1]} : vector<2x128xf32> to vector<2x32xf32>
    %327 = math.tanh %326 : vector<2x32xf32>
    %328 = arith.mulf %325, %327 : vector<2x32xf32>
    %329 = arith.addf %324, %328 : vector<2x32xf32>
    %330 = vector.extract_strided_slice %309 {offsets = [0, 64], sizes = [2, 32], strides = [1, 1]} : vector<2x96xf32> to vector<2x32xf32>
    %331 = math.tanh %322 : vector<2x32xf32>
    %332 = arith.mulf %330, %331 : vector<2x32xf32>
    %333 = vector.extract_strided_slice %315 {offsets = [0, 64], sizes = [2, 32], strides = [1, 1]} : vector<2x96xf32> to vector<2x32xf32>
    %334 = math.tanh %329 : vector<2x32xf32>
    %335 = arith.mulf %333, %334 : vector<2x32xf32>
    %336 = arith.addf %297, %332 : vector<2x32xf32>
    %337 = arith.addf %336, %335 : vector<2x32xf32>
    %338 = vector.extract_strided_slice %50 {offsets = [14, 0], sizes = [2, 128], strides = [1, 1]} : vector<32x256xf32> to vector<2x128xf32>
    %cst_78 = arith.constant dense<0.000000e+00> : vector<2x128xf32>
    %339 = tpu.matmul %332, %51, %cst_78 {dimension_numbers = #tpu.dot_dimension_numbers<[1], [0], [0], [1], [0, 0, 1, 1], [], []>} : vector<2x32xf32>, vector<32x128xf32>, vector<2x128xf32> -> vector<2x128xf32>
    %340 = arith.addf %338, %339 : vector<2x128xf32>
    %341 = vector.extract_strided_slice %50 {offsets = [16, 128], sizes = [2, 128], strides = [1, 1]} : vector<32x256xf32> to vector<2x128xf32>
    %cst_79 = arith.constant dense<0.000000e+00> : vector<2x128xf32>
    %342 = tpu.matmul %335, %52, %cst_79 {dimension_numbers = #tpu.dot_dimension_numbers<[1], [0], [0], [1], [0, 0, 1, 1], [], []>} : vector<2x32xf32>, vector<32x128xf32>, vector<2x128xf32> -> vector<2x128xf32>
    %343 = arith.addf %341, %342 : vector<2x128xf32>
    %344 = vector.extract_strided_slice %340 {offsets = [0, 0], sizes = [2, 96], strides = [1, 1]} : vector<2x128xf32> to vector<2x96xf32>
    %345 = arith.negf %344 : vector<2x96xf32>
    %346 = math.exp %345 : vector<2x96xf32>
    %cst_80 = arith.constant 1.000000e+00 : f32
    %347 = vector.broadcast %cst_80 : f32 to vector<2x96xf32>
    %348 = arith.addf %347, %346 : vector<2x96xf32>
    %349 = arith.divf %347, %348 : vector<2x96xf32>
    %350 = vector.extract_strided_slice %343 {offsets = [0, 0], sizes = [2, 96], strides = [1, 1]} : vector<2x128xf32> to vector<2x96xf32>
    %351 = arith.negf %350 : vector<2x96xf32>
    %352 = math.exp %351 : vector<2x96xf32>
    %cst_81 = arith.constant 1.000000e+00 : f32
    %353 = vector.broadcast %cst_81 : f32 to vector<2x96xf32>
    %354 = arith.addf %353, %352 : vector<2x96xf32>
    %355 = arith.divf %353, %354 : vector<2x96xf32>
    %356 = vector.extract_strided_slice %349 {offsets = [0, 32], sizes = [2, 32], strides = [1, 1]} : vector<2x96xf32> to vector<2x32xf32>
    %357 = arith.mulf %356, %322 : vector<2x32xf32>
    %358 = vector.extract_strided_slice %349 {offsets = [0, 0], sizes = [2, 32], strides = [1, 1]} : vector<2x96xf32> to vector<2x32xf32>
    %359 = vector.extract_strided_slice %340 {offsets = [0, 96], sizes = [2, 32], strides = [1, 1]} : vector<2x128xf32> to vector<2x32xf32>
    %360 = math.tanh %359 : vector<2x32xf32>
    %361 = arith.mulf %358, %360 : vector<2x32xf32>
    %362 = arith.addf %357, %361 : vector<2x32xf32>
    %363 = vector.extract_strided_slice %355 {offsets = [0, 32], sizes = [2, 32], strides = [1, 1]} : vector<2x96xf32> to vector<2x32xf32>
    %364 = arith.mulf %363, %329 : vector<2x32xf32>
    %365 = vector.extract_strided_slice %355 {offsets = [0, 0], sizes = [2, 32], strides = [1, 1]} : vector<2x96xf32> to vector<2x32xf32>
    %366 = vector.extract_strided_slice %343 {offsets = [0, 96], sizes = [2, 32], strides = [1, 1]} : vector<2x128xf32> to vector<2x32xf32>
    %367 = math.tanh %366 : vector<2x32xf32>
    %368 = arith.mulf %365, %367 : vector<2x32xf32>
    %369 = arith.addf %364, %368 : vector<2x32xf32>
    %370 = vector.extract_strided_slice %349 {offsets = [0, 64], sizes = [2, 32], strides = [1, 1]} : vector<2x96xf32> to vector<2x32xf32>
    %371 = math.tanh %362 : vector<2x32xf32>
    %372 = arith.mulf %370, %371 : vector<2x32xf32>
    %373 = vector.extract_strided_slice %355 {offsets = [0, 64], sizes = [2, 32], strides = [1, 1]} : vector<2x96xf32> to vector<2x32xf32>
    %374 = math.tanh %369 : vector<2x32xf32>
    %375 = arith.mulf %373, %374 : vector<2x32xf32>
    %376 = arith.addf %337, %372 : vector<2x32xf32>
    %377 = arith.addf %376, %375 : vector<2x32xf32>
    %378 = vector.extract_strided_slice %50 {offsets = [16, 0], sizes = [2, 128], strides = [1, 1]} : vector<32x256xf32> to vector<2x128xf32>
    %cst_82 = arith.constant dense<0.000000e+00> : vector<2x128xf32>
    %379 = tpu.matmul %372, %51, %cst_82 {dimension_numbers = #tpu.dot_dimension_numbers<[1], [0], [0], [1], [0, 0, 1, 1], [], []>} : vector<2x32xf32>, vector<32x128xf32>, vector<2x128xf32> -> vector<2x128xf32>
    %380 = arith.addf %378, %379 : vector<2x128xf32>
    %381 = vector.extract_strided_slice %50 {offsets = [14, 128], sizes = [2, 128], strides = [1, 1]} : vector<32x256xf32> to vector<2x128xf32>
    %cst_83 = arith.constant dense<0.000000e+00> : vector<2x128xf32>
    %382 = tpu.matmul %375, %52, %cst_83 {dimension_numbers = #tpu.dot_dimension_numbers<[1], [0], [0], [1], [0, 0, 1, 1], [], []>} : vector<2x32xf32>, vector<32x128xf32>, vector<2x128xf32> -> vector<2x128xf32>
    %383 = arith.addf %381, %382 : vector<2x128xf32>
    %384 = vector.extract_strided_slice %380 {offsets = [0, 0], sizes = [2, 96], strides = [1, 1]} : vector<2x128xf32> to vector<2x96xf32>
    %385 = arith.negf %384 : vector<2x96xf32>
    %386 = math.exp %385 : vector<2x96xf32>
    %cst_84 = arith.constant 1.000000e+00 : f32
    %387 = vector.broadcast %cst_84 : f32 to vector<2x96xf32>
    %388 = arith.addf %387, %386 : vector<2x96xf32>
    %389 = arith.divf %387, %388 : vector<2x96xf32>
    %390 = vector.extract_strided_slice %383 {offsets = [0, 0], sizes = [2, 96], strides = [1, 1]} : vector<2x128xf32> to vector<2x96xf32>
    %391 = arith.negf %390 : vector<2x96xf32>
    %392 = math.exp %391 : vector<2x96xf32>
    %cst_85 = arith.constant 1.000000e+00 : f32
    %393 = vector.broadcast %cst_85 : f32 to vector<2x96xf32>
    %394 = arith.addf %393, %392 : vector<2x96xf32>
    %395 = arith.divf %393, %394 : vector<2x96xf32>
    %396 = vector.extract_strided_slice %389 {offsets = [0, 32], sizes = [2, 32], strides = [1, 1]} : vector<2x96xf32> to vector<2x32xf32>
    %397 = arith.mulf %396, %362 : vector<2x32xf32>
    %398 = vector.extract_strided_slice %389 {offsets = [0, 0], sizes = [2, 32], strides = [1, 1]} : vector<2x96xf32> to vector<2x32xf32>
    %399 = vector.extract_strided_slice %380 {offsets = [0, 96], sizes = [2, 32], strides = [1, 1]} : vector<2x128xf32> to vector<2x32xf32>
    %400 = math.tanh %399 : vector<2x32xf32>
    %401 = arith.mulf %398, %400 : vector<2x32xf32>
    %402 = arith.addf %397, %401 : vector<2x32xf32>
    %403 = vector.extract_strided_slice %395 {offsets = [0, 32], sizes = [2, 32], strides = [1, 1]} : vector<2x96xf32> to vector<2x32xf32>
    %404 = arith.mulf %403, %369 : vector<2x32xf32>
    %405 = vector.extract_strided_slice %395 {offsets = [0, 0], sizes = [2, 32], strides = [1, 1]} : vector<2x96xf32> to vector<2x32xf32>
    %406 = vector.extract_strided_slice %383 {offsets = [0, 96], sizes = [2, 32], strides = [1, 1]} : vector<2x128xf32> to vector<2x32xf32>
    %407 = math.tanh %406 : vector<2x32xf32>
    %408 = arith.mulf %405, %407 : vector<2x32xf32>
    %409 = arith.addf %404, %408 : vector<2x32xf32>
    %410 = vector.extract_strided_slice %389 {offsets = [0, 64], sizes = [2, 32], strides = [1, 1]} : vector<2x96xf32> to vector<2x32xf32>
    %411 = math.tanh %402 : vector<2x32xf32>
    %412 = arith.mulf %410, %411 : vector<2x32xf32>
    %413 = vector.extract_strided_slice %395 {offsets = [0, 64], sizes = [2, 32], strides = [1, 1]} : vector<2x96xf32> to vector<2x32xf32>
    %414 = math.tanh %409 : vector<2x32xf32>
    %415 = arith.mulf %413, %414 : vector<2x32xf32>
    %416 = arith.addf %377, %412 : vector<2x32xf32>
    %417 = arith.addf %416, %415 : vector<2x32xf32>
    %418 = vector.extract_strided_slice %50 {offsets = [18, 0], sizes = [2, 128], strides = [1, 1]} : vector<32x256xf32> to vector<2x128xf32>
    %cst_86 = arith.constant dense<0.000000e+00> : vector<2x128xf32>
    %419 = tpu.matmul %412, %51, %cst_86 {dimension_numbers = #tpu.dot_dimension_numbers<[1], [0], [0], [1], [0, 0, 1, 1], [], []>} : vector<2x32xf32>, vector<32x128xf32>, vector<2x128xf32> -> vector<2x128xf32>
    %420 = arith.addf %418, %419 : vector<2x128xf32>
    %421 = vector.extract_strided_slice %50 {offsets = [12, 128], sizes = [2, 128], strides = [1, 1]} : vector<32x256xf32> to vector<2x128xf32>
    %cst_87 = arith.constant dense<0.000000e+00> : vector<2x128xf32>
    %422 = tpu.matmul %415, %52, %cst_87 {dimension_numbers = #tpu.dot_dimension_numbers<[1], [0], [0], [1], [0, 0, 1, 1], [], []>} : vector<2x32xf32>, vector<32x128xf32>, vector<2x128xf32> -> vector<2x128xf32>
    %423 = arith.addf %421, %422 : vector<2x128xf32>
    %424 = vector.extract_strided_slice %420 {offsets = [0, 0], sizes = [2, 96], strides = [1, 1]} : vector<2x128xf32> to vector<2x96xf32>
    %425 = arith.negf %424 : vector<2x96xf32>
    %426 = math.exp %425 : vector<2x96xf32>
    %cst_88 = arith.constant 1.000000e+00 : f32
    %427 = vector.broadcast %cst_88 : f32 to vector<2x96xf32>
    %428 = arith.addf %427, %426 : vector<2x96xf32>
    %429 = arith.divf %427, %428 : vector<2x96xf32>
    %430 = vector.extract_strided_slice %423 {offsets = [0, 0], sizes = [2, 96], strides = [1, 1]} : vector<2x128xf32> to vector<2x96xf32>
    %431 = arith.negf %430 : vector<2x96xf32>
    %432 = math.exp %431 : vector<2x96xf32>
    %cst_89 = arith.constant 1.000000e+00 : f32
    %433 = vector.broadcast %cst_89 : f32 to vector<2x96xf32>
    %434 = arith.addf %433, %432 : vector<2x96xf32>
    %435 = arith.divf %433, %434 : vector<2x96xf32>
    %436 = vector.extract_strided_slice %429 {offsets = [0, 32], sizes = [2, 32], strides = [1, 1]} : vector<2x96xf32> to vector<2x32xf32>
    %437 = arith.mulf %436, %402 : vector<2x32xf32>
    %438 = vector.extract_strided_slice %429 {offsets = [0, 0], sizes = [2, 32], strides = [1, 1]} : vector<2x96xf32> to vector<2x32xf32>
    %439 = vector.extract_strided_slice %420 {offsets = [0, 96], sizes = [2, 32], strides = [1, 1]} : vector<2x128xf32> to vector<2x32xf32>
    %440 = math.tanh %439 : vector<2x32xf32>
    %441 = arith.mulf %438, %440 : vector<2x32xf32>
    %442 = arith.addf %437, %441 : vector<2x32xf32>
    %443 = vector.extract_strided_slice %435 {offsets = [0, 32], sizes = [2, 32], strides = [1, 1]} : vector<2x96xf32> to vector<2x32xf32>
    %444 = arith.mulf %443, %409 : vector<2x32xf32>
    %445 = vector.extract_strided_slice %435 {offsets = [0, 0], sizes = [2, 32], strides = [1, 1]} : vector<2x96xf32> to vector<2x32xf32>
    %446 = vector.extract_strided_slice %423 {offsets = [0, 96], sizes = [2, 32], strides = [1, 1]} : vector<2x128xf32> to vector<2x32xf32>
    %447 = math.tanh %446 : vector<2x32xf32>
    %448 = arith.mulf %445, %447 : vector<2x32xf32>
    %449 = arith.addf %444, %448 : vector<2x32xf32>
    %450 = vector.extract_strided_slice %429 {offsets = [0, 64], sizes = [2, 32], strides = [1, 1]} : vector<2x96xf32> to vector<2x32xf32>
    %451 = math.tanh %442 : vector<2x32xf32>
    %452 = arith.mulf %450, %451 : vector<2x32xf32>
    %453 = vector.extract_strided_slice %435 {offsets = [0, 64], sizes = [2, 32], strides = [1, 1]} : vector<2x96xf32> to vector<2x32xf32>
    %454 = math.tanh %449 : vector<2x32xf32>
    %455 = arith.mulf %453, %454 : vector<2x32xf32>
    %456 = arith.addf %417, %452 : vector<2x32xf32>
    %457 = arith.addf %456, %455 : vector<2x32xf32>
    %458 = vector.extract_strided_slice %50 {offsets = [20, 0], sizes = [2, 128], strides = [1, 1]} : vector<32x256xf32> to vector<2x128xf32>
    %cst_90 = arith.constant dense<0.000000e+00> : vector<2x128xf32>
    %459 = tpu.matmul %452, %51, %cst_90 {dimension_numbers = #tpu.dot_dimension_numbers<[1], [0], [0], [1], [0, 0, 1, 1], [], []>} : vector<2x32xf32>, vector<32x128xf32>, vector<2x128xf32> -> vector<2x128xf32>
    %460 = arith.addf %458, %459 : vector<2x128xf32>
    %461 = vector.extract_strided_slice %50 {offsets = [10, 128], sizes = [2, 128], strides = [1, 1]} : vector<32x256xf32> to vector<2x128xf32>
    %cst_91 = arith.constant dense<0.000000e+00> : vector<2x128xf32>
    %462 = tpu.matmul %455, %52, %cst_91 {dimension_numbers = #tpu.dot_dimension_numbers<[1], [0], [0], [1], [0, 0, 1, 1], [], []>} : vector<2x32xf32>, vector<32x128xf32>, vector<2x128xf32> -> vector<2x128xf32>
    %463 = arith.addf %461, %462 : vector<2x128xf32>
    %464 = vector.extract_strided_slice %460 {offsets = [0, 0], sizes = [2, 96], strides = [1, 1]} : vector<2x128xf32> to vector<2x96xf32>
    %465 = arith.negf %464 : vector<2x96xf32>
    %466 = math.exp %465 : vector<2x96xf32>
    %cst_92 = arith.constant 1.000000e+00 : f32
    %467 = vector.broadcast %cst_92 : f32 to vector<2x96xf32>
    %468 = arith.addf %467, %466 : vector<2x96xf32>
    %469 = arith.divf %467, %468 : vector<2x96xf32>
    %470 = vector.extract_strided_slice %463 {offsets = [0, 0], sizes = [2, 96], strides = [1, 1]} : vector<2x128xf32> to vector<2x96xf32>
    %471 = arith.negf %470 : vector<2x96xf32>
    %472 = math.exp %471 : vector<2x96xf32>
    %cst_93 = arith.constant 1.000000e+00 : f32
    %473 = vector.broadcast %cst_93 : f32 to vector<2x96xf32>
    %474 = arith.addf %473, %472 : vector<2x96xf32>
    %475 = arith.divf %473, %474 : vector<2x96xf32>
    %476 = vector.extract_strided_slice %469 {offsets = [0, 32], sizes = [2, 32], strides = [1, 1]} : vector<2x96xf32> to vector<2x32xf32>
    %477 = arith.mulf %476, %442 : vector<2x32xf32>
    %478 = vector.extract_strided_slice %469 {offsets = [0, 0], sizes = [2, 32], strides = [1, 1]} : vector<2x96xf32> to vector<2x32xf32>
    %479 = vector.extract_strided_slice %460 {offsets = [0, 96], sizes = [2, 32], strides = [1, 1]} : vector<2x128xf32> to vector<2x32xf32>
    %480 = math.tanh %479 : vector<2x32xf32>
    %481 = arith.mulf %478, %480 : vector<2x32xf32>
    %482 = arith.addf %477, %481 : vector<2x32xf32>
    %483 = vector.extract_strided_slice %475 {offsets = [0, 32], sizes = [2, 32], strides = [1, 1]} : vector<2x96xf32> to vector<2x32xf32>
    %484 = arith.mulf %483, %449 : vector<2x32xf32>
    %485 = vector.extract_strided_slice %475 {offsets = [0, 0], sizes = [2, 32], strides = [1, 1]} : vector<2x96xf32> to vector<2x32xf32>
    %486 = vector.extract_strided_slice %463 {offsets = [0, 96], sizes = [2, 32], strides = [1, 1]} : vector<2x128xf32> to vector<2x32xf32>
    %487 = math.tanh %486 : vector<2x32xf32>
    %488 = arith.mulf %485, %487 : vector<2x32xf32>
    %489 = arith.addf %484, %488 : vector<2x32xf32>
    %490 = vector.extract_strided_slice %469 {offsets = [0, 64], sizes = [2, 32], strides = [1, 1]} : vector<2x96xf32> to vector<2x32xf32>
    %491 = math.tanh %482 : vector<2x32xf32>
    %492 = arith.mulf %490, %491 : vector<2x32xf32>
    %493 = vector.extract_strided_slice %475 {offsets = [0, 64], sizes = [2, 32], strides = [1, 1]} : vector<2x96xf32> to vector<2x32xf32>
    %494 = math.tanh %489 : vector<2x32xf32>
    %495 = arith.mulf %493, %494 : vector<2x32xf32>
    %496 = arith.addf %457, %492 : vector<2x32xf32>
    %497 = arith.addf %496, %495 : vector<2x32xf32>
    %498 = vector.extract_strided_slice %50 {offsets = [22, 0], sizes = [2, 128], strides = [1, 1]} : vector<32x256xf32> to vector<2x128xf32>
    %cst_94 = arith.constant dense<0.000000e+00> : vector<2x128xf32>
    %499 = tpu.matmul %492, %51, %cst_94 {dimension_numbers = #tpu.dot_dimension_numbers<[1], [0], [0], [1], [0, 0, 1, 1], [], []>} : vector<2x32xf32>, vector<32x128xf32>, vector<2x128xf32> -> vector<2x128xf32>
    %500 = arith.addf %498, %499 : vector<2x128xf32>
    %501 = vector.extract_strided_slice %50 {offsets = [8, 128], sizes = [2, 128], strides = [1, 1]} : vector<32x256xf32> to vector<2x128xf32>
    %cst_95 = arith.constant dense<0.000000e+00> : vector<2x128xf32>
    %502 = tpu.matmul %495, %52, %cst_95 {dimension_numbers = #tpu.dot_dimension_numbers<[1], [0], [0], [1], [0, 0, 1, 1], [], []>} : vector<2x32xf32>, vector<32x128xf32>, vector<2x128xf32> -> vector<2x128xf32>
    %503 = arith.addf %501, %502 : vector<2x128xf32>
    %504 = vector.extract_strided_slice %500 {offsets = [0, 0], sizes = [2, 96], strides = [1, 1]} : vector<2x128xf32> to vector<2x96xf32>
    %505 = arith.negf %504 : vector<2x96xf32>
    %506 = math.exp %505 : vector<2x96xf32>
    %cst_96 = arith.constant 1.000000e+00 : f32
    %507 = vector.broadcast %cst_96 : f32 to vector<2x96xf32>
    %508 = arith.addf %507, %506 : vector<2x96xf32>
    %509 = arith.divf %507, %508 : vector<2x96xf32>
    %510 = vector.extract_strided_slice %503 {offsets = [0, 0], sizes = [2, 96], strides = [1, 1]} : vector<2x128xf32> to vector<2x96xf32>
    %511 = arith.negf %510 : vector<2x96xf32>
    %512 = math.exp %511 : vector<2x96xf32>
    %cst_97 = arith.constant 1.000000e+00 : f32
    %513 = vector.broadcast %cst_97 : f32 to vector<2x96xf32>
    %514 = arith.addf %513, %512 : vector<2x96xf32>
    %515 = arith.divf %513, %514 : vector<2x96xf32>
    %516 = vector.extract_strided_slice %509 {offsets = [0, 32], sizes = [2, 32], strides = [1, 1]} : vector<2x96xf32> to vector<2x32xf32>
    %517 = arith.mulf %516, %482 : vector<2x32xf32>
    %518 = vector.extract_strided_slice %509 {offsets = [0, 0], sizes = [2, 32], strides = [1, 1]} : vector<2x96xf32> to vector<2x32xf32>
    %519 = vector.extract_strided_slice %500 {offsets = [0, 96], sizes = [2, 32], strides = [1, 1]} : vector<2x128xf32> to vector<2x32xf32>
    %520 = math.tanh %519 : vector<2x32xf32>
    %521 = arith.mulf %518, %520 : vector<2x32xf32>
    %522 = arith.addf %517, %521 : vector<2x32xf32>
    %523 = vector.extract_strided_slice %515 {offsets = [0, 32], sizes = [2, 32], strides = [1, 1]} : vector<2x96xf32> to vector<2x32xf32>
    %524 = arith.mulf %523, %489 : vector<2x32xf32>
    %525 = vector.extract_strided_slice %515 {offsets = [0, 0], sizes = [2, 32], strides = [1, 1]} : vector<2x96xf32> to vector<2x32xf32>
    %526 = vector.extract_strided_slice %503 {offsets = [0, 96], sizes = [2, 32], strides = [1, 1]} : vector<2x128xf32> to vector<2x32xf32>
    %527 = math.tanh %526 : vector<2x32xf32>
    %528 = arith.mulf %525, %527 : vector<2x32xf32>
    %529 = arith.addf %524, %528 : vector<2x32xf32>
    %530 = vector.extract_strided_slice %509 {offsets = [0, 64], sizes = [2, 32], strides = [1, 1]} : vector<2x96xf32> to vector<2x32xf32>
    %531 = math.tanh %522 : vector<2x32xf32>
    %532 = arith.mulf %530, %531 : vector<2x32xf32>
    %533 = vector.extract_strided_slice %515 {offsets = [0, 64], sizes = [2, 32], strides = [1, 1]} : vector<2x96xf32> to vector<2x32xf32>
    %534 = math.tanh %529 : vector<2x32xf32>
    %535 = arith.mulf %533, %534 : vector<2x32xf32>
    %536 = arith.addf %497, %532 : vector<2x32xf32>
    %537 = arith.addf %536, %535 : vector<2x32xf32>
    %538 = vector.extract_strided_slice %50 {offsets = [24, 0], sizes = [2, 128], strides = [1, 1]} : vector<32x256xf32> to vector<2x128xf32>
    %cst_98 = arith.constant dense<0.000000e+00> : vector<2x128xf32>
    %539 = tpu.matmul %532, %51, %cst_98 {dimension_numbers = #tpu.dot_dimension_numbers<[1], [0], [0], [1], [0, 0, 1, 1], [], []>} : vector<2x32xf32>, vector<32x128xf32>, vector<2x128xf32> -> vector<2x128xf32>
    %540 = arith.addf %538, %539 : vector<2x128xf32>
    %541 = vector.extract_strided_slice %50 {offsets = [6, 128], sizes = [2, 128], strides = [1, 1]} : vector<32x256xf32> to vector<2x128xf32>
    %cst_99 = arith.constant dense<0.000000e+00> : vector<2x128xf32>
    %542 = tpu.matmul %535, %52, %cst_99 {dimension_numbers = #tpu.dot_dimension_numbers<[1], [0], [0], [1], [0, 0, 1, 1], [], []>} : vector<2x32xf32>, vector<32x128xf32>, vector<2x128xf32> -> vector<2x128xf32>
    %543 = arith.addf %541, %542 : vector<2x128xf32>
    %544 = vector.extract_strided_slice %540 {offsets = [0, 0], sizes = [2, 96], strides = [1, 1]} : vector<2x128xf32> to vector<2x96xf32>
    %545 = arith.negf %544 : vector<2x96xf32>
    %546 = math.exp %545 : vector<2x96xf32>
    %cst_100 = arith.constant 1.000000e+00 : f32
    %547 = vector.broadcast %cst_100 : f32 to vector<2x96xf32>
    %548 = arith.addf %547, %546 : vector<2x96xf32>
    %549 = arith.divf %547, %548 : vector<2x96xf32>
    %550 = vector.extract_strided_slice %543 {offsets = [0, 0], sizes = [2, 96], strides = [1, 1]} : vector<2x128xf32> to vector<2x96xf32>
    %551 = arith.negf %550 : vector<2x96xf32>
    %552 = math.exp %551 : vector<2x96xf32>
    %cst_101 = arith.constant 1.000000e+00 : f32
    %553 = vector.broadcast %cst_101 : f32 to vector<2x96xf32>
    %554 = arith.addf %553, %552 : vector<2x96xf32>
    %555 = arith.divf %553, %554 : vector<2x96xf32>
    %556 = vector.extract_strided_slice %549 {offsets = [0, 32], sizes = [2, 32], strides = [1, 1]} : vector<2x96xf32> to vector<2x32xf32>
    %557 = arith.mulf %556, %522 : vector<2x32xf32>
    %558 = vector.extract_strided_slice %549 {offsets = [0, 0], sizes = [2, 32], strides = [1, 1]} : vector<2x96xf32> to vector<2x32xf32>
    %559 = vector.extract_strided_slice %540 {offsets = [0, 96], sizes = [2, 32], strides = [1, 1]} : vector<2x128xf32> to vector<2x32xf32>
    %560 = math.tanh %559 : vector<2x32xf32>
    %561 = arith.mulf %558, %560 : vector<2x32xf32>
    %562 = arith.addf %557, %561 : vector<2x32xf32>
    %563 = vector.extract_strided_slice %555 {offsets = [0, 32], sizes = [2, 32], strides = [1, 1]} : vector<2x96xf32> to vector<2x32xf32>
    %564 = arith.mulf %563, %529 : vector<2x32xf32>
    %565 = vector.extract_strided_slice %555 {offsets = [0, 0], sizes = [2, 32], strides = [1, 1]} : vector<2x96xf32> to vector<2x32xf32>
    %566 = vector.extract_strided_slice %543 {offsets = [0, 96], sizes = [2, 32], strides = [1, 1]} : vector<2x128xf32> to vector<2x32xf32>
    %567 = math.tanh %566 : vector<2x32xf32>
    %568 = arith.mulf %565, %567 : vector<2x32xf32>
    %569 = arith.addf %564, %568 : vector<2x32xf32>
    %570 = vector.extract_strided_slice %549 {offsets = [0, 64], sizes = [2, 32], strides = [1, 1]} : vector<2x96xf32> to vector<2x32xf32>
    %571 = math.tanh %562 : vector<2x32xf32>
    %572 = arith.mulf %570, %571 : vector<2x32xf32>
    %573 = vector.extract_strided_slice %555 {offsets = [0, 64], sizes = [2, 32], strides = [1, 1]} : vector<2x96xf32> to vector<2x32xf32>
    %574 = math.tanh %569 : vector<2x32xf32>
    %575 = arith.mulf %573, %574 : vector<2x32xf32>
    %576 = arith.addf %537, %572 : vector<2x32xf32>
    %577 = arith.addf %576, %575 : vector<2x32xf32>
    %578 = vector.extract_strided_slice %50 {offsets = [26, 0], sizes = [2, 128], strides = [1, 1]} : vector<32x256xf32> to vector<2x128xf32>
    %cst_102 = arith.constant dense<0.000000e+00> : vector<2x128xf32>
    %579 = tpu.matmul %572, %51, %cst_102 {dimension_numbers = #tpu.dot_dimension_numbers<[1], [0], [0], [1], [0, 0, 1, 1], [], []>} : vector<2x32xf32>, vector<32x128xf32>, vector<2x128xf32> -> vector<2x128xf32>
    %580 = arith.addf %578, %579 : vector<2x128xf32>
    %581 = vector.extract_strided_slice %50 {offsets = [4, 128], sizes = [2, 128], strides = [1, 1]} : vector<32x256xf32> to vector<2x128xf32>
    %cst_103 = arith.constant dense<0.000000e+00> : vector<2x128xf32>
    %582 = tpu.matmul %575, %52, %cst_103 {dimension_numbers = #tpu.dot_dimension_numbers<[1], [0], [0], [1], [0, 0, 1, 1], [], []>} : vector<2x32xf32>, vector<32x128xf32>, vector<2x128xf32> -> vector<2x128xf32>
    %583 = arith.addf %581, %582 : vector<2x128xf32>
    %584 = vector.extract_strided_slice %580 {offsets = [0, 0], sizes = [2, 96], strides = [1, 1]} : vector<2x128xf32> to vector<2x96xf32>
    %585 = arith.negf %584 : vector<2x96xf32>
    %586 = math.exp %585 : vector<2x96xf32>
    %cst_104 = arith.constant 1.000000e+00 : f32
    %587 = vector.broadcast %cst_104 : f32 to vector<2x96xf32>
    %588 = arith.addf %587, %586 : vector<2x96xf32>
    %589 = arith.divf %587, %588 : vector<2x96xf32>
    %590 = vector.extract_strided_slice %583 {offsets = [0, 0], sizes = [2, 96], strides = [1, 1]} : vector<2x128xf32> to vector<2x96xf32>
    %591 = arith.negf %590 : vector<2x96xf32>
    %592 = math.exp %591 : vector<2x96xf32>
    %cst_105 = arith.constant 1.000000e+00 : f32
    %593 = vector.broadcast %cst_105 : f32 to vector<2x96xf32>
    %594 = arith.addf %593, %592 : vector<2x96xf32>
    %595 = arith.divf %593, %594 : vector<2x96xf32>
    %596 = vector.extract_strided_slice %589 {offsets = [0, 32], sizes = [2, 32], strides = [1, 1]} : vector<2x96xf32> to vector<2x32xf32>
    %597 = arith.mulf %596, %562 : vector<2x32xf32>
    %598 = vector.extract_strided_slice %589 {offsets = [0, 0], sizes = [2, 32], strides = [1, 1]} : vector<2x96xf32> to vector<2x32xf32>
    %599 = vector.extract_strided_slice %580 {offsets = [0, 96], sizes = [2, 32], strides = [1, 1]} : vector<2x128xf32> to vector<2x32xf32>
    %600 = math.tanh %599 : vector<2x32xf32>
    %601 = arith.mulf %598, %600 : vector<2x32xf32>
    %602 = arith.addf %597, %601 : vector<2x32xf32>
    %603 = vector.extract_strided_slice %595 {offsets = [0, 32], sizes = [2, 32], strides = [1, 1]} : vector<2x96xf32> to vector<2x32xf32>
    %604 = arith.mulf %603, %569 : vector<2x32xf32>
    %605 = vector.extract_strided_slice %595 {offsets = [0, 0], sizes = [2, 32], strides = [1, 1]} : vector<2x96xf32> to vector<2x32xf32>
    %606 = vector.extract_strided_slice %583 {offsets = [0, 96], sizes = [2, 32], strides = [1, 1]} : vector<2x128xf32> to vector<2x32xf32>
    %607 = math.tanh %606 : vector<2x32xf32>
    %608 = arith.mulf %605, %607 : vector<2x32xf32>
    %609 = arith.addf %604, %608 : vector<2x32xf32>
    %610 = vector.extract_strided_slice %589 {offsets = [0, 64], sizes = [2, 32], strides = [1, 1]} : vector<2x96xf32> to vector<2x32xf32>
    %611 = math.tanh %602 : vector<2x32xf32>
    %612 = arith.mulf %610, %611 : vector<2x32xf32>
    %613 = vector.extract_strided_slice %595 {offsets = [0, 64], sizes = [2, 32], strides = [1, 1]} : vector<2x96xf32> to vector<2x32xf32>
    %614 = math.tanh %609 : vector<2x32xf32>
    %615 = arith.mulf %613, %614 : vector<2x32xf32>
    %616 = arith.addf %577, %612 : vector<2x32xf32>
    %617 = arith.addf %616, %615 : vector<2x32xf32>
    %618 = vector.extract_strided_slice %50 {offsets = [28, 0], sizes = [2, 128], strides = [1, 1]} : vector<32x256xf32> to vector<2x128xf32>
    %cst_106 = arith.constant dense<0.000000e+00> : vector<2x128xf32>
    %619 = tpu.matmul %612, %51, %cst_106 {dimension_numbers = #tpu.dot_dimension_numbers<[1], [0], [0], [1], [0, 0, 1, 1], [], []>} : vector<2x32xf32>, vector<32x128xf32>, vector<2x128xf32> -> vector<2x128xf32>
    %620 = arith.addf %618, %619 : vector<2x128xf32>
    %621 = vector.extract_strided_slice %50 {offsets = [2, 128], sizes = [2, 128], strides = [1, 1]} : vector<32x256xf32> to vector<2x128xf32>
    %cst_107 = arith.constant dense<0.000000e+00> : vector<2x128xf32>
    %622 = tpu.matmul %615, %52, %cst_107 {dimension_numbers = #tpu.dot_dimension_numbers<[1], [0], [0], [1], [0, 0, 1, 1], [], []>} : vector<2x32xf32>, vector<32x128xf32>, vector<2x128xf32> -> vector<2x128xf32>
    %623 = arith.addf %621, %622 : vector<2x128xf32>
    %624 = vector.extract_strided_slice %620 {offsets = [0, 0], sizes = [2, 96], strides = [1, 1]} : vector<2x128xf32> to vector<2x96xf32>
    %625 = arith.negf %624 : vector<2x96xf32>
    %626 = math.exp %625 : vector<2x96xf32>
    %cst_108 = arith.constant 1.000000e+00 : f32
    %627 = vector.broadcast %cst_108 : f32 to vector<2x96xf32>
    %628 = arith.addf %627, %626 : vector<2x96xf32>
    %629 = arith.divf %627, %628 : vector<2x96xf32>
    %630 = vector.extract_strided_slice %623 {offsets = [0, 0], sizes = [2, 96], strides = [1, 1]} : vector<2x128xf32> to vector<2x96xf32>
    %631 = arith.negf %630 : vector<2x96xf32>
    %632 = math.exp %631 : vector<2x96xf32>
    %cst_109 = arith.constant 1.000000e+00 : f32
    %633 = vector.broadcast %cst_109 : f32 to vector<2x96xf32>
    %634 = arith.addf %633, %632 : vector<2x96xf32>
    %635 = arith.divf %633, %634 : vector<2x96xf32>
    %636 = vector.extract_strided_slice %629 {offsets = [0, 32], sizes = [2, 32], strides = [1, 1]} : vector<2x96xf32> to vector<2x32xf32>
    %637 = arith.mulf %636, %602 : vector<2x32xf32>
    %638 = vector.extract_strided_slice %629 {offsets = [0, 0], sizes = [2, 32], strides = [1, 1]} : vector<2x96xf32> to vector<2x32xf32>
    %639 = vector.extract_strided_slice %620 {offsets = [0, 96], sizes = [2, 32], strides = [1, 1]} : vector<2x128xf32> to vector<2x32xf32>
    %640 = math.tanh %639 : vector<2x32xf32>
    %641 = arith.mulf %638, %640 : vector<2x32xf32>
    %642 = arith.addf %637, %641 : vector<2x32xf32>
    %643 = vector.extract_strided_slice %635 {offsets = [0, 32], sizes = [2, 32], strides = [1, 1]} : vector<2x96xf32> to vector<2x32xf32>
    %644 = arith.mulf %643, %609 : vector<2x32xf32>
    %645 = vector.extract_strided_slice %635 {offsets = [0, 0], sizes = [2, 32], strides = [1, 1]} : vector<2x96xf32> to vector<2x32xf32>
    %646 = vector.extract_strided_slice %623 {offsets = [0, 96], sizes = [2, 32], strides = [1, 1]} : vector<2x128xf32> to vector<2x32xf32>
    %647 = math.tanh %646 : vector<2x32xf32>
    %648 = arith.mulf %645, %647 : vector<2x32xf32>
    %649 = arith.addf %644, %648 : vector<2x32xf32>
    %650 = vector.extract_strided_slice %629 {offsets = [0, 64], sizes = [2, 32], strides = [1, 1]} : vector<2x96xf32> to vector<2x32xf32>
    %651 = math.tanh %642 : vector<2x32xf32>
    %652 = arith.mulf %650, %651 : vector<2x32xf32>
    %653 = vector.extract_strided_slice %635 {offsets = [0, 64], sizes = [2, 32], strides = [1, 1]} : vector<2x96xf32> to vector<2x32xf32>
    %654 = math.tanh %649 : vector<2x32xf32>
    %655 = arith.mulf %653, %654 : vector<2x32xf32>
    %656 = arith.addf %617, %652 : vector<2x32xf32>
    %657 = arith.addf %656, %655 : vector<2x32xf32>
    %658 = vector.extract_strided_slice %50 {offsets = [30, 0], sizes = [2, 128], strides = [1, 1]} : vector<32x256xf32> to vector<2x128xf32>
    %cst_110 = arith.constant dense<0.000000e+00> : vector<2x128xf32>
    %659 = tpu.matmul %652, %51, %cst_110 {dimension_numbers = #tpu.dot_dimension_numbers<[1], [0], [0], [1], [0, 0, 1, 1], [], []>} : vector<2x32xf32>, vector<32x128xf32>, vector<2x128xf32> -> vector<2x128xf32>
    %660 = arith.addf %658, %659 : vector<2x128xf32>
    %661 = vector.extract_strided_slice %50 {offsets = [0, 128], sizes = [2, 128], strides = [1, 1]} : vector<32x256xf32> to vector<2x128xf32>
    %cst_111 = arith.constant dense<0.000000e+00> : vector<2x128xf32>
    %662 = tpu.matmul %655, %52, %cst_111 {dimension_numbers = #tpu.dot_dimension_numbers<[1], [0], [0], [1], [0, 0, 1, 1], [], []>} : vector<2x32xf32>, vector<32x128xf32>, vector<2x128xf32> -> vector<2x128xf32>
    %663 = arith.addf %661, %662 : vector<2x128xf32>
    %664 = vector.extract_strided_slice %660 {offsets = [0, 0], sizes = [2, 96], strides = [1, 1]} : vector<2x128xf32> to vector<2x96xf32>
    %665 = arith.negf %664 : vector<2x96xf32>
    %666 = math.exp %665 : vector<2x96xf32>
    %cst_112 = arith.constant 1.000000e+00 : f32
    %667 = vector.broadcast %cst_112 : f32 to vector<2x96xf32>
    %668 = arith.addf %667, %666 : vector<2x96xf32>
    %669 = arith.divf %667, %668 : vector<2x96xf32>
    %670 = vector.extract_strided_slice %663 {offsets = [0, 0], sizes = [2, 96], strides = [1, 1]} : vector<2x128xf32> to vector<2x96xf32>
    %671 = arith.negf %670 : vector<2x96xf32>
    %672 = math.exp %671 : vector<2x96xf32>
    %cst_113 = arith.constant 1.000000e+00 : f32
    %673 = vector.broadcast %cst_113 : f32 to vector<2x96xf32>
    %674 = arith.addf %673, %672 : vector<2x96xf32>
    %675 = arith.divf %673, %674 : vector<2x96xf32>
    %676 = vector.extract_strided_slice %669 {offsets = [0, 32], sizes = [2, 32], strides = [1, 1]} : vector<2x96xf32> to vector<2x32xf32>
    %677 = arith.mulf %676, %642 : vector<2x32xf32>
    %678 = vector.extract_strided_slice %669 {offsets = [0, 0], sizes = [2, 32], strides = [1, 1]} : vector<2x96xf32> to vector<2x32xf32>
    %679 = vector.extract_strided_slice %660 {offsets = [0, 96], sizes = [2, 32], strides = [1, 1]} : vector<2x128xf32> to vector<2x32xf32>
    %680 = math.tanh %679 : vector<2x32xf32>
    %681 = arith.mulf %678, %680 : vector<2x32xf32>
    %682 = arith.addf %677, %681 : vector<2x32xf32>
    %683 = vector.extract_strided_slice %675 {offsets = [0, 32], sizes = [2, 32], strides = [1, 1]} : vector<2x96xf32> to vector<2x32xf32>
    %684 = arith.mulf %683, %649 : vector<2x32xf32>
    %685 = vector.extract_strided_slice %675 {offsets = [0, 0], sizes = [2, 32], strides = [1, 1]} : vector<2x96xf32> to vector<2x32xf32>
    %686 = vector.extract_strided_slice %663 {offsets = [0, 96], sizes = [2, 32], strides = [1, 1]} : vector<2x128xf32> to vector<2x32xf32>
    %687 = math.tanh %686 : vector<2x32xf32>
    %688 = arith.mulf %685, %687 : vector<2x32xf32>
    %689 = arith.addf %684, %688 : vector<2x32xf32>
    %690 = vector.extract_strided_slice %669 {offsets = [0, 64], sizes = [2, 32], strides = [1, 1]} : vector<2x96xf32> to vector<2x32xf32>
    %691 = math.tanh %682 : vector<2x32xf32>
    %692 = arith.mulf %690, %691 : vector<2x32xf32>
    %693 = vector.extract_strided_slice %675 {offsets = [0, 64], sizes = [2, 32], strides = [1, 1]} : vector<2x96xf32> to vector<2x32xf32>
    %694 = math.tanh %689 : vector<2x32xf32>
    %695 = arith.mulf %693, %694 : vector<2x32xf32>
    %696 = arith.addf %657, %692 : vector<2x32xf32>
    %697 = arith.addf %696, %695 : vector<2x32xf32>
    %cst_114 = arith.constant 6.250000e-02 : f32
    %698 = vector.broadcast %cst_114 : f32 to vector<2x32xf32>
    %699 = arith.mulf %697, %698 : vector<2x32xf32>
    %c288 = arith.constant 288 : index
    %c0_115 = arith.constant 0 : index
    %700 = vector.load %arg2[%c288, %c0_115] : memref<328x32xf32, #tpu.memory_space<vmem>>, vector<32x16xf32>
    %cst_116 = arith.constant dense<0.000000e+00> : vector<2x16xf32>
    %701 = tpu.matmul %699, %700, %cst_116 {dimension_numbers = #tpu.dot_dimension_numbers<[1], [0], [0], [1], [0, 0, 1, 1], [], []>} : vector<2x32xf32>, vector<32x16xf32>, vector<2x16xf32> -> vector<2x16xf32>
    %702 = vector.extract_strided_slice %2 {offsets = [3, 0], sizes = [1, 16], strides = [1, 1]} : vector<4x32xf32> to vector<1x16xf32>
    %703 = vector.broadcast %702 : vector<1x16xf32> to vector<2x16xf32>
    %704 = arith.addf %701, %703 : vector<2x16xf32>
    %cst_117 = arith.constant dense<0xFF800000> : vector<2xf32>
    %705 = vector.multi_reduction <maximumf>, %704, %cst_117 [1] : vector<2x16xf32> to vector<2xf32>
    %706 = vector.shape_cast %705 : vector<2xf32> to vector<2x1xf32>
    %707 = vector.broadcast %706 : vector<2x1xf32> to vector<2x16xf32>
    %708 = arith.subf %704, %707 : vector<2x16xf32>
    %709 = math.exp %708 : vector<2x16xf32>
    %cst_118 = arith.constant dense<0.000000e+00> : vector<2xf32>
    %710 = vector.multi_reduction <add>, %709, %cst_118 [1] : vector<2x16xf32> to vector<2xf32>
    %711 = vector.shape_cast %710 : vector<2xf32> to vector<2x1xf32>
    %712 = vector.broadcast %711 : vector<2x1xf32> to vector<2x16xf32>
    %713 = arith.divf %709, %712 : vector<2x16xf32>
    %c0_119 = arith.constant 0 : index
    %c0_120 = arith.constant 0 : index
    %714 = vector.load %arg4[%c0_119, %c0_120] : memref<2x16xf32, #tpu.memory_space<vmem>>, vector<2x16xf32>
    tpu.vector_store %arg4[%c0_119, %c0_120], %713 {strides = array<i32>} : memref<2x16xf32, #tpu.memory_space<vmem>>, vector<2x16xf32>,
    return
  }
  func.func @transform_0(%arg0: i32) -> (i32, i32) {
    %c0_i32 = arith.constant 0 : i32
    %c0_i32_0 = arith.constant 0 : i32
    %c0_i32_1 = arith.constant 0 : i32
    return %c0_i32, %c0_i32_0 : i32, i32
  }
  func.func @transform_1(%arg0: i32) -> (i32, i32) {
    %c0_i32 = arith.constant 0 : i32
    %c0_i32_0 = arith.constant 0 : i32
    %c0_i32_1 = arith.constant 0 : i32
    return %c0_i32, %c0_i32_0 : i32, i32
  }
  func.func @transform_2(%arg0: i32) -> (i32, i32) {
    %c0_i32 = arith.constant 0 : i32
    %c0_i32_0 = arith.constant 0 : i32
    %c0_i32_1 = arith.constant 0 : i32
    return %c0_i32, %c0_i32_0 : i32, i32
  }
  func.func @transform_3(%arg0: i32) -> (i32, i32) {
    %c0_i32 = arith.constant 0 : i32
    %c0_i32_0 = arith.constant 0 : i32
    %c0_i32_1 = arith.constant 0 : i32
    return %c0_i32, %c0_i32_0 : i32, i32
  }
}

</mosaic_0001>

<llo_original>
// kernel: tpu_custom_call.1
$region0: #{tpu_custom_call.1}
  #allocation0 [shape = 'u32[]', space=smem, size = 0x4, offset = 0x4, fixed_abs, tag = 'smem constant byte address 0x4 - core index']
  #allocation1 [shape = 'u32[144,128]{1,0:T(1,128)}', space=vmem, size = 0x12000, scoped, tag = 'internal scratch']
  #allocation2 [shape = 'f32[36,96]{1,0:T(8,128)}', space=vmem, size = 0x5000, scoped, tag = 'scratch operand']
  %s0 = inlined_call_operand.vmem [shape: f32[32,32], index: 0, kind: input, shape index: {}]
  %s1 = inlined_call_operand.vmem [shape: f32[328,32], index: 1, kind: input, shape index: {}]
  %s2 = inlined_call_operand.vmem [shape: f32[72,256], index: 2, kind: input, shape index: {}]
  %s3 = inlined_call_operand.hbm [shape: f32[2,16], index: 3, kind: output, shape index: {}]
  %s4 = sld [smem:[#allocation0]]
  $region22: #{tpu_custom_call.1} parent=0
    _
  %s6 = ssub.s32 1, %s4
  %s7 = scalar_select 0, %s6, %s4
  $region1: #{tpu_custom_call.1} parent=0
    #allocation3 [shape = 'u8[1024]{0}', space=vmem, size = 0x400, scoped, tag = 'output window, operand 0, single buffered']
    #allocation4 [shape = 's32[1]{0}', space=sflag, size = 0x4, scoped, tag = 'scoped memory for tpu_custom_call.1']
    %8 = vsyncpa [#allocation4], 0
    // Predicated region
    $region2: #{tpu_custom_call.1} parent=1 // pred_check
      _
    $region3: #{tpu_custom_call.1} parent=1 // pred_check_branch
      %10 = sbr.rel (0) target = $region5
    $region4: #{tpu_custom_call.1} parent=1 // pred_region
      _
    $region5: #{tpu_custom_call.1} parent=1 // pred_fallthru
      _
    // Predicated region
    $region6: #{tpu_custom_call.1} parent=1 // pred_check
      _
    $region7: #{tpu_custom_call.1} parent=1 // pred_check_branch
      %12 = sbr.rel (0) target = $region9
    $region8: #{tpu_custom_call.1} parent=1 // pred_region
      _
    $region9: #{tpu_custom_call.1} parent=1 // pred_fallthru
      _
    // Predicated region
    $region10: #{tpu_custom_call.1} parent=1 // pred_check
      _
    $region11: #{tpu_custom_call.1} parent=1 // pred_check_branch
      %14 = sbr.rel (0) target = $region13
    $region12: #{tpu_custom_call.1} parent=1 // pred_region
      _
    $region13: #{tpu_custom_call.1} parent=1 // pred_fallthru
      _
    %vm15 = vcmask 785408
    %16 = vst.msk [vmem:[#allocation2] sm:$0xff] %vm15, 0.0
    %17 = vst.msk [vmem:[#allocation2 + $0x8] sm:$0xff] %vm15, 0.0
    %18 = vst.msk [vmem:[#allocation2 + $0x10] sm:$0xff] %vm15, 0.0
    %19 = vst.msk [vmem:[#allocation2 + $0x18] sm:$0xff] %vm15, 0.0
    %vm20 = vcmask 781312
    %21 = vst.msk [vmem:[#allocation2 + $0x20] sm:$0xf] %vm20, 0.0
    %v22 = vld [vmem:[%s1 + $0x140] sm:$0xf]
    %v23 = vld [vmem:[%s0] sm:$0xff]
    %v24 = vld [vmem:[%s0 + $0x8] sm:$0xff]
    %v25 = vld [vmem:[%s0 + $0x10] sm:$0xff]
    %v26 = vld [vmem:[%s0 + $0x18] sm:$0xff]
    %vm27 = vcmask 261120
    %28 = vst.msk [vmem:[#allocation2 + $0x4] sm:$0xff] %vm27, %v23
    %29 = vst.msk [vmem:[#allocation2 + $0xc] sm:$0xff] %vm27, %v24
    %30 = vst.msk [vmem:[#allocation2 + $0x14] sm:$0xff] %vm27, %v25
    %31 = vst.msk [vmem:[#allocation2 + $0x1c] sm:$0xff] %vm27, %v26
    %36 = vrot.lane.b32.xlu0 %v23, 32
    %v37 = vpop.permute.xlu0 %36
    %38 = vrot.lane.b32.xlu0 %v24, 32
    %v39 = vpop.permute.xlu0 %38
    %40 = vrot.lane.b32.xlu0 %v25, 32
    %v41 = vpop.permute.xlu0 %40
    %42 = vrot.lane.b32.xlu0 %v26, 32
    %v43 = vpop.permute.xlu0 %42
    %vm48 = vcmask 523520
    %49 = vst.msk [vmem:[#allocation2 + $0x2] sm:$0xff] %vm48, %v37
    %50 = vst.msk [vmem:[#allocation2 + $0xa] sm:$0xff] %vm48, %v39
    %51 = vst.msk [vmem:[#allocation2 + $0x12] sm:$0xff] %vm48, %v41
    %52 = vst.msk [vmem:[#allocation2 + $0x1a] sm:$0xff] %vm48, %v43
    %53 = vrot.lane.b32.xlu0 %v23, 64
    %v54 = vpop.permute.xlu0 %53
    %55 = vrot.lane.b32.xlu0 %v24, 64
    %v56 = vpop.permute.xlu0 %55
    %57 = vrot.lane.b32.xlu0 %v25, 64
    %v58 = vpop.permute.xlu0 %57
    %59 = vrot.lane.b32.xlu0 %v26, 64
    %v60 = vpop.permute.xlu0 %59
    %vm65 = vcmask 785920
    %66 = vst.msk [vmem:[#allocation2] sm:$0xff] %vm65, %v54
    %67 = vst.msk [vmem:[#allocation2 + $0x8] sm:$0xff] %vm65, %v56
    %68 = vst.msk [vmem:[#allocation2 + $0x10] sm:$0xff] %vm65, %v58
    %69 = vst.msk [vmem:[#allocation2 + $0x18] sm:$0xff] %vm65, %v60
    %v70 = vld [vmem:[#allocation2 + $0x2] sm:$0xff]
    %v71 = vld [vmem:[#allocation2 + $0xa] sm:$0xff]
    %v72 = vld [vmem:[#allocation2 + $0x12] sm:$0xff]
    %v73 = vld [vmem:[#allocation2 + $0x1a] sm:$0xff]
    %v74 = vld [vmem:[%s1] sm:$0xff]
    %v75 = vld [vmem:[%s1 + $0x8] sm:$0xff]
    %v76 = vld [vmem:[%s1 + $0x10] sm:$0xff]
    %v77 = vld [vmem:[%s1 + $0x18] sm:$0xff]
    %v78 = vld [vmem:[%s1 + $0x20] sm:$0xff]
    %v79 = vld [vmem:[%s1 + $0x28] sm:$0xff]
    %v80 = vld [vmem:[%s1 + $0x30] sm:$0xff]
    %v81 = vld [vmem:[%s1 + $0x38] sm:$0xff]
    %v82 = vld [vmem:[%s1 + $0x40] sm:$0xff]
    %v83 = vld [vmem:[%s1 + $0x48] sm:$0xff]
    %v84 = vld [vmem:[%s1 + $0x50] sm:$0xff]
    %v85 = vld [vmem:[%s1 + $0x58] sm:$0xff]
    %v86 = vlaneseq
    %v87 = vshrl.u32 %v86, 7
    %v88 = vsub.s32 0, %v87
    %v89 = vrot.slane %v22, %v88
    %v91 = vsel %vm15, %v70, 0
    %v94 = vsel %vm15, %v71, 0
    %v97 = vsel %vm15, %v72, 0
    %v100 = vsel %vm15, %v73, 0
    %102 = vmatprep.subr.mxu0 0.0
    %103 = vmatpush1.msra.mxu0 %v74
    %104 = vmatprep.subr.mxu0 0.0
    %105 = vmatpush1.msra.mxu0 %v75
    %106 = vmatprep.subr.mxu0 0.0
    %107 = vmatpush1.msra.mxu0 %v76
    %108 = vmatprep.subr.mxu0 0.0
    %109 = vmatpush1.msra.mxu0 %v77
    %110 = vmatprep.subr.mxu0 0.0
    %111 = vmatpush1.msra.mxu0 %v78
    %112 = vmatprep.subr.mxu0 0.0
    %113 = vmatpush1.msra.mxu0 %v79
    %114 = vmatprep.subr.mxu0 0.0
    %115 = vmatpush1.msra.mxu0 %v80
    %116 = vmatprep.subr.mxu0 0.0
    %117 = vmatpush1.msra.mxu0 %v81
    %118 = vmatprep.subr.mxu0 0.0
    %119 = vmatpush1.msra.mxu0 %v82
    %120 = vmatprep.subr.mxu0 0.0
    %121 = vmatpush1.msra.mxu0 %v83
    %122 = vmatprep.subr.mxu0 0.0
    %123 = vmatpush1.msra.mxu0 %v84
    %124 = vmatprep.subr.mxu0 0.0
    %125 = vmatpush1.msra.mxu0 %v85
    %126 = vmatprep.subr.mxu0 0.0
    %127 = vmatpush1.msra.mxu0 0.0
    %128 = vmatprep.subr.mxu0 0.0
    %129 = vmatpush1.msra.mxu0 0.0
    %130 = vmatprep.subr.mxu0 0.0
    %131 = vmatpush1.msra.mxu0 0.0
    %132 = vmatprep.subr.mxu0 0.0
    %133 = vmatpush1.msra.mxu0 0.0
    %134 = vmatprep.subr.mxu0 0.0
    %135 = vmatpush1.msra.mxu0 0.0
    %136 = vmatprep.subr.mxu0 0.0
    %137 = vmatpush1.msra.mxu0 0.0
    %138 = vmatprep.subr.mxu0 0.0
    %139 = vmatpush1.msra.mxu0 0.0
    %140 = vmatprep.subr.mxu0 0.0
    %141 = vmatpush1.msra.mxu0 0.0
    %142 = vmatprep.subr.mxu0 0.0
    %143 = vmatpush1.msra.mxu0 0.0
    %144 = vmatprep.subr.mxu0 0.0
    %145 = vmatpush1.msra.mxu0 0.0
    %146 = vmatprep.subr.mxu0 0.0
    %147 = vmatpush1.msra.mxu0 0.0
    %148 = vmatprep.subr.mxu0 0.0
    %149 = vmatpush1.msra.mxu0 0.0
    %150 = vmatprep.subr.mxu0 0.0
    %151 = vmatpush1.msra.mxu0 0.0
    %152 = vmatprep.subr.mxu0 0.0
    %153 = vmatpush1.msra.mxu0 0.0
    %154 = vmatprep.subr.mxu0 0.0
    %155 = vmatpush1.msra.mxu0 0.0
    %156 = vmatprep.subr.mxu0 0.0
    %157 = vmatpush1.msra.mxu0 0.0
    %158 = vmatprep.subr.mxu0 0.0
    %159 = vmatpush1.msra.mxu0 0.0
    %160 = vmatprep.subr.mxu0 0.0
    %161 = vmatpush1.msra.mxu0 0.0
    %162 = vmatprep.subr.mxu0 0.0
    %163 = vmatpush1.msra.mxu0 0.0
    %164 = vmatprep.subr.mxu0 0.0
    %165 = vmatpush1.msra.mxu0 0.0
    %166 = vmatprep.mubr.f32.mxu0 0.0
    %167 = vmatmul.mubr.f32.gmra.mrb[0].mxu0 %v91
    %v168 = vpop.f32.mrb[0].mxu0
    %v169 = vadd.f32 %v89, %v168
    %v170 = vpop.f32.mrb[0].mxu0
    %171 = vmatprep.mubr.f32.mxu0 0.0
    %172 = vmatmul.mubr.f32.gmra.mrb[0].mxu0 %v94
    %v173 = vpop.f32.mrb[0].mxu0
    %v174 = vadd.f32 %v89, %v173
    %v175 = vpop.f32.mrb[0].mxu0
    %176 = vmatprep.mubr.f32.mxu0 0.0
    %177 = vmatmul.mubr.f32.gmra.mrb[0].mxu0 %v97
    %v178 = vpop.f32.mrb[0].mxu0
    %v179 = vadd.f32 %v89, %v178
    %v180 = vpop.f32.mrb[0].mxu0
    %181 = vmatprep.mubr.f32.mxu0 0.0
    %182 = vmatmul.mubr.f32.gmra.mrb[0].mxu0 %v100
    %v183 = vpop.f32.mrb[0].mxu0
    %v184 = vadd.f32 %v89, %v183
    %v185 = vpop.f32.mrb[0].mxu0
    %186 = vdwg.mxu0
    %vm187 = vcmp.ge.f32.partialorder %v169, 0.0
    %vm188 = vcmp.ge.f32.partialorder %v174, 0.0
    %vm189 = vcmp.ge.f32.partialorder %v179, 0.0
    %vm190 = vcmp.ge.f32.partialorder %v184, 0.0
    %v191 = vmul.f32 %v169, 0.3
    %v192 = vmul.f32 %v174, 0.3
    %v193 = vmul.f32 %v179, 0.3
    %v194 = vmul.f32 %v184, 0.3
    %v195 = vsel %vm187, %v169, %v191
    %v196 = vsel %vm188, %v174, %v192
    %v197 = vsel %vm189, %v179, %v193
    %v198 = vsel %vm190, %v184, %v194
    %199 = vst.msk [vmem:[#allocation2 + $0x4] sm:$0xff] %vm27, %v195
    %200 = vst.msk [vmem:[#allocation2 + $0xc] sm:$0xff] %vm27, %v196
    %201 = vst.msk [vmem:[#allocation2 + $0x14] sm:$0xff] %vm27, %v197
    %202 = vst.msk [vmem:[#allocation2 + $0x1c] sm:$0xff] %vm27, %v198
    %207 = vrot.lane.b32.xlu0 %v195, 32
    %v208 = vpop.permute.xlu0 %207
    %209 = vrot.lane.b32.xlu0 %v196, 32
    %v210 = vpop.permute.xlu0 %209
    %211 = vrot.lane.b32.xlu0 %v197, 32
    %v212 = vpop.permute.xlu0 %211
    %213 = vrot.lane.b32.xlu0 %v198, 32
    %v214 = vpop.permute.xlu0 %213
    %219 = vst.msk [vmem:[#allocation2 + $0x2] sm:$0xff] %vm48, %v208
    %220 = vst.msk [vmem:[#allocation2 + $0xa] sm:$0xff] %vm48, %v210
    %221 = vst.msk [vmem:[#allocation2 + $0x12] sm:$0xff] %vm48, %v212
    %222 = vst.msk [vmem:[#allocation2 + $0x1a] sm:$0xff] %vm48, %v214
    %223 = vrot.lane.b32.xlu0 %v195, 64
    %v224 = vpop.permute.xlu0 %223
    %225 = vrot.lane.b32.xlu0 %v196, 64
    %v226 = vpop.permute.xlu0 %225
    %227 = vrot.lane.b32.xlu0 %v197, 64
    %v228 = vpop.permute.xlu0 %227
    %229 = vrot.lane.b32.xlu0 %v198, 64
    %v230 = vpop.permute.xlu0 %229
    %235 = vst.msk [vmem:[#allocation2] sm:$0xff] %vm65, %v224
    %236 = vst.msk [vmem:[#allocation2 + $0x8] sm:$0xff] %vm65, %v226
    %237 = vst.msk [vmem:[#allocation2 + $0x10] sm:$0xff] %vm65, %v228
    %238 = vst.msk [vmem:[#allocation2 + $0x18] sm:$0xff] %vm65, %v230
    %v239 = vld [vmem:[#allocation2 + $0x2] sm:$0xff]
    %v240 = vld [vmem:[#allocation2 + $0xa] sm:$0xff]
    %v241 = vld [vmem:[#allocation2 + $0x12] sm:$0xff]
    %v242 = vld [vmem:[#allocation2 + $0x1a] sm:$0xff]
    %v243 = vld [vmem:[%s1 + $0x60] sm:$0xff]
    %v244 = vld [vmem:[%s1 + $0x68] sm:$0xff]
    %v245 = vld [vmem:[%s1 + $0x70] sm:$0xff]
    %v246 = vld [vmem:[%s1 + $0x78] sm:$0xff]
    %v247 = vld [vmem:[%s1 + $0x80] sm:$0xff]
    %v248 = vld [vmem:[%s1 + $0x88] sm:$0xff]
    %v249 = vld [vmem:[%s1 + $0x90] sm:$0xff]
    %v250 = vld [vmem:[%s1 + $0x98] sm:$0xff]
    %v251 = vld [vmem:[%s1 + $0xa0] sm:$0xff]
    %v252 = vld [vmem:[%s1 + $0xa8] sm:$0xff]
    %v253 = vld [vmem:[%s1 + $0xb0] sm:$0xff]
    %v254 = vld [vmem:[%s1 + $0xb8] sm:$0xff]
    %v255 = vlaneseq
    %v256 = vshrl.u32 %v255, 7
    %v257 = vsub.s32 1, %v256
    %v258 = vrot.slane %v22, %v257
    %v260 = vsel %vm15, %v239, 0
    %v263 = vsel %vm15, %v240, 0
    %v266 = vsel %vm15, %v241, 0
    %v269 = vsel %vm15, %v242, 0
    %271 = vmatprep.subr.mxu0 0.0
    %272 = vmatpush1.msra.mxu0 %v243
    %273 = vmatprep.subr.mxu0 0.0
    %274 = vmatpush1.msra.mxu0 %v244
    %275 = vmatprep.subr.mxu0 0.0
    %276 = vmatpush1.msra.mxu0 %v245
    %277 = vmatprep.subr.mxu0 0.0
    %278 = vmatpush1.msra.mxu0 %v246
    %279 = vmatprep.subr.mxu0 0.0
    %280 = vmatpush1.msra.mxu0 %v247
    %281 = vmatprep.subr.mxu0 0.0
    %282 = vmatpush1.msra.mxu0 %v248
    %283 = vmatprep.subr.mxu0 0.0
    %284 = vmatpush1.msra.mxu0 %v249
    %285 = vmatprep.subr.mxu0 0.0
    %286 = vmatpush1.msra.mxu0 %v250
    %287 = vmatprep.subr.mxu0 0.0
    %288 = vmatpush1.msra.mxu0 %v251
    %289 = vmatprep.subr.mxu0 0.0
    %290 = vmatpush1.msra.mxu0 %v252
    %291 = vmatprep.subr.mxu0 0.0
    %292 = vmatpush1.msra.mxu0 %v253
    %293 = vmatprep.subr.mxu0 0.0
    %294 = vmatpush1.msra.mxu0 %v254
    %295 = vmatprep.subr.mxu0 0.0
    %296 = vmatpush1.msra.mxu0 0.0
    %297 = vmatprep.subr.mxu0 0.0
    %298 = vmatpush1.msra.mxu0 0.0
    %299 = vmatprep.subr.mxu0 0.0
    %300 = vmatpush1.msra.mxu0 0.0
    %301 = vmatprep.subr.mxu0 0.0
    %302 = vmatpush1.msra.mxu0 0.0
    %303 = vmatprep.subr.mxu0 0.0
    %304 = vmatpush1.msra.mxu0 0.0
    %305 = vmatprep.subr.mxu0 0.0
    %306 = vmatpush1.msra.mxu0 0.0
    %307 = vmatprep.subr.mxu0 0.0
    %308 = vmatpush1.msra.mxu0 0.0
    %309 = vmatprep.subr.mxu0 0.0
    %310 = vmatpush1.msra.mxu0 0.0
    %311 = vmatprep.subr.mxu0 0.0
    %312 = vmatpush1.msra.mxu0 0.0
    %313 = vmatprep.subr.mxu0 0.0
    %314 = vmatpush1.msra.mxu0 0.0
    %315 = vmatprep.subr.mxu0 0.0
    %316 = vmatpush1.msra.mxu0 0.0
    %317 = vmatprep.subr.mxu0 0.0
    %318 = vmatpush1.msra.mxu0 0.0
    %319 = vmatprep.subr.mxu0 0.0
    %320 = vmatpush1.msra.mxu0 0.0
    %321 = vmatprep.subr.mxu0 0.0
    %322 = vmatpush1.msra.mxu0 0.0
    %323 = vmatprep.subr.mxu0 0.0
    %324 = vmatpush1.msra.mxu0 0.0
    %325 = vmatprep.subr.mxu0 0.0
    %326 = vmatpush1.msra.mxu0 0.0
    %327 = vmatprep.subr.mxu0 0.0
    %328 = vmatpush1.msra.mxu0 0.0
    %329 = vmatprep.subr.mxu0 0.0
    %330 = vmatpush1.msra.mxu0 0.0
    %331 = vmatprep.subr.mxu0 0.0
    %332 = vmatpush1.msra.mxu0 0.0
    %333 = vmatprep.subr.mxu0 0.0
    %334 = vmatpush1.msra.mxu0 0.0
    %335 = vmatprep.mubr.f32.mxu0 0.0
    %336 = vmatmul.mubr.f32.gmra.mrb[0].mxu0 %v260
    %v337 = vpop.f32.mrb[0].mxu0
    %v338 = vadd.f32 %v258, %v337
    %v339 = vpop.f32.mrb[0].mxu0
    %340 = vmatprep.mubr.f32.mxu0 0.0
    %341 = vmatmul.mubr.f32.gmra.mrb[0].mxu0 %v263
    %v342 = vpop.f32.mrb[0].mxu0
    %v343 = vadd.f32 %v258, %v342
    %v344 = vpop.f32.mrb[0].mxu0
    %345 = vmatprep.mubr.f32.mxu0 0.0
    %346 = vmatmul.mubr.f32.gmra.mrb[0].mxu0 %v266
    %v347 = vpop.f32.mrb[0].mxu0
    %v348 = vadd.f32 %v258, %v347
    %v349 = vpop.f32.mrb[0].mxu0
    %350 = vmatprep.mubr.f32.mxu0 0.0
    %351 = vmatmul.mubr.f32.gmra.mrb[0].mxu0 %v269
    %v352 = vpop.f32.mrb[0].mxu0
    %v353 = vadd.f32 %v258, %v352
    %v354 = vpop.f32.mrb[0].mxu0
    %355 = vdwg.mxu0
    %vm356 = vcmp.ge.f32.partialorder %v338, 0.0
    %vm357 = vcmp.ge.f32.partialorder %v343, 0.0
    %vm358 = vcmp.ge.f32.partialorder %v348, 0.0
    %vm359 = vcmp.ge.f32.partialorder %v353, 0.0
    %v360 = vmul.f32 %v338, 0.3
    %v361 = vmul.f32 %v343, 0.3
    %v362 = vmul.f32 %v348, 0.3
    %v363 = vmul.f32 %v353, 0.3
    %v364 = vsel %vm356, %v338, %v360
    %v365 = vsel %vm357, %v343, %v361
    %v366 = vsel %vm358, %v348, %v362
    %v367 = vsel %vm359, %v353, %v363
    %368 = vst.msk [vmem:[#allocation2 + $0x4] sm:$0xff] %vm27, %v364
    %369 = vst.msk [vmem:[#allocation2 + $0xc] sm:$0xff] %vm27, %v365
    %370 = vst.msk [vmem:[#allocation2 + $0x14] sm:$0xff] %vm27, %v366
    %371 = vst.msk [vmem:[#allocation2 + $0x1c] sm:$0xff] %vm27, %v367
    %376 = vrot.lane.b32.xlu0 %v364, 32
    %v377 = vpop.permute.xlu0 %376
    %378 = vrot.lane.b32.xlu0 %v365, 32
    %v379 = vpop.permute.xlu0 %378
    %380 = vrot.lane.b32.xlu0 %v366, 32
    %v381 = vpop.permute.xlu0 %380
    %382 = vrot.lane.b32.xlu0 %v367, 32
    %v383 = vpop.permute.xlu0 %382
    %388 = vst.msk [vmem:[#allocation2 + $0x2] sm:$0xff] %vm48, %v377
    %389 = vst.msk [vmem:[#allocation2 + $0xa] sm:$0xff] %vm48, %v379
    %390 = vst.msk [vmem:[#allocation2 + $0x12] sm:$0xff] %vm48, %v381
    %391 = vst.msk [vmem:[#allocation2 + $0x1a] sm:$0xff] %vm48, %v383
    %392 = vrot.lane.b32.xlu0 %v364, 64
    %v393 = vpop.permute.xlu0 %392
    %394 = vrot.lane.b32.xlu0 %v365, 64
    %v395 = vpop.permute.xlu0 %394
    %396 = vrot.lane.b32.xlu0 %v366, 64
    %v397 = vpop.permute.xlu0 %396
    %398 = vrot.lane.b32.xlu0 %v367, 64
    %v399 = vpop.permute.xlu0 %398
    %404 = vst.msk [vmem:[#allocation2] sm:$0xff] %vm65, %v393
    %405 = vst.msk [vmem:[#allocation2 + $0x8] sm:$0xff] %vm65, %v395
    %406 = vst.msk [vmem:[#allocation2 + $0x10] sm:$0xff] %vm65, %v397
    %407 = vst.msk [vmem:[#allocation2 + $0x18] sm:$0xff] %vm65, %v399
    %v408 = vld [vmem:[#allocation2 + $0x2] sm:$0xff]
    %v409 = vld [vmem:[#allocation2 + $0xa] sm:$0xff]
    %v410 = vld [vmem:[#allocation2 + $0x12] sm:$0xff]
    %v411 = vld [vmem:[#allocation2 + $0x1a] sm:$0xff]
    %v412 = vld [vmem:[%s1 + $0xc0] sm:$0xff]
    %v413 = vld [vmem:[%s1 + $0xc8] sm:$0xff]
    %v414 = vld [vmem:[%s1 + $0xd0] sm:$0xff]
    %v415 = vld [vmem:[%s1 + $0xd8] sm:$0xff]
    %v416 = vld [vmem:[%s1 + $0xe0] sm:$0xff]
    %v417 = vld [vmem:[%s1 + $0xe8] sm:$0xff]
    %v418 = vld [vmem:[%s1 + $0xf0] sm:$0xff]
    %v419 = vld [vmem:[%s1 + $0xf8] sm:$0xff]
    %v420 = vld [vmem:[%s1 + $0x100] sm:$0xff]
    %v421 = vld [vmem:[%s1 + $0x108] sm:$0xff]
    %v422 = vld [vmem:[%s1 + $0x110] sm:$0xff]
    %v423 = vld [vmem:[%s1 + $0x118] sm:$0xff]
    %v424 = vlaneseq
    %v425 = vshrl.u32 %v424, 7
    %v426 = vsub.s32 2, %v425
    %v427 = vrot.slane %v22, %v426
    %v429 = vsel %vm15, %v408, 0
    %v432 = vsel %vm15, %v409, 0
    %v435 = vsel %vm15, %v410, 0
    %v438 = vsel %vm15, %v411, 0
    %440 = vmatprep.subr.mxu0 0.0
    %441 = vmatpush1.msra.mxu0 %v412
    %442 = vmatprep.subr.mxu0 0.0
    %443 = vmatpush1.msra.mxu0 %v413
    %444 = vmatprep.subr.mxu0 0.0
    %445 = vmatpush1.msra.mxu0 %v414
    %446 = vmatprep.subr.mxu0 0.0
    %447 = vmatpush1.msra.mxu0 %v415
    %448 = vmatprep.subr.mxu0 0.0
    %449 = vmatpush1.msra.mxu0 %v416
    %450 = vmatprep.subr.mxu0 0.0
    %451 = vmatpush1.msra.mxu0 %v417
    %452 = vmatprep.subr.mxu0 0.0
    %453 = vmatpush1.msra.mxu0 %v418
    %454 = vmatprep.subr.mxu0 0.0
    %455 = vmatpush1.msra.mxu0 %v419
    %456 = vmatprep.subr.mxu0 0.0
    %457 = vmatpush1.msra.mxu0 %v420
    %458 = vmatprep.subr.mxu0 0.0
    %459 = vmatpush1.msra.mxu0 %v421
    %460 = vmatprep.subr.mxu0 0.0
    %461 = vmatpush1.msra.mxu0 %v422
    %462 = vmatprep.subr.mxu0 0.0
    %463 = vmatpush1.msra.mxu0 %v423
    %464 = vmatprep.subr.mxu0 0.0
    %465 = vmatpush1.msra.mxu0 0.0
    %466 = vmatprep.subr.mxu0 0.0
    %467 = vmatpush1.msra.mxu0 0.0
    %468 = vmatprep.subr.mxu0 0.0
    %469 = vmatpush1.msra.mxu0 0.0
    %470 = vmatprep.subr.mxu0 0.0
    %471 = vmatpush1.msra.mxu0 0.0
    %472 = vmatprep.subr.mxu0 0.0
    %473 = vmatpush1.msra.mxu0 0.0
    %474 = vmatprep.subr.mxu0 0.0
    %475 = vmatpush1.msra.mxu0 0.0
    %476 = vmatprep.subr.mxu0 0.0
    %477 = vmatpush1.msra.mxu0 0.0
    %478 = vmatprep.subr.mxu0 0.0
    %479 = vmatpush1.msra.mxu0 0.0
    %480 = vmatprep.subr.mxu0 0.0
    %481 = vmatpush1.msra.mxu0 0.0
    %482 = vmatprep.subr.mxu0 0.0
    %483 = vmatpush1.msra.mxu0 0.0
    %484 = vmatprep.subr.mxu0 0.0
    %485 = vmatpush1.msra.mxu0 0.0
    %486 = vmatprep.subr.mxu0 0.0
    %487 = vmatpush1.msra.mxu0 0.0
    %488 = vmatprep.subr.mxu0 0.0
    %489 = vmatpush1.msra.mxu0 0.0
    %490 = vmatprep.subr.mxu0 0.0
    %491 = vmatpush1.msra.mxu0 0.0
    %492 = vmatprep.subr.mxu0 0.0
    %493 = vmatpush1.msra.mxu0 0.0
    %494 = vmatprep.subr.mxu0 0.0
    %495 = vmatpush1.msra.mxu0 0.0
    %496 = vmatprep.subr.mxu0 0.0
    %497 = vmatpush1.msra.mxu0 0.0
    %498 = vmatprep.subr.mxu0 0.0
    %499 = vmatpush1.msra.mxu0 0.0
    %500 = vmatprep.subr.mxu0 0.0
    %501 = vmatpush1.msra.mxu0 0.0
    %502 = vmatprep.subr.mxu0 0.0
    %503 = vmatpush1.msra.mxu0 0.0
    %504 = vmatprep.mubr.f32.mxu0 0.0
    %505 = vmatmul.mubr.f32.gmra.mrb[0].mxu0 %v429
    %v506 = vpop.f32.mrb[0].mxu0
    %v507 = vadd.f32 %v427, %v506
    %v508 = vpop.f32.mrb[0].mxu0
    %509 = vmatprep.mubr.f32.mxu0 0.0
    %510 = vmatmul.mubr.f32.gmra.mrb[0].mxu0 %v432
    %v511 = vpop.f32.mrb[0].mxu0
    %v512 = vadd.f32 %v427, %v511
    %v513 = vpop.f32.mrb[0].mxu0
    %514 = vmatprep.mubr.f32.mxu0 0.0
    %515 = vmatmul.mubr.f32.gmra.mrb[0].mxu0 %v435
    %v516 = vpop.f32.mrb[0].mxu0
    %v517 = vadd.f32 %v427, %v516
    %v518 = vpop.f32.mrb[0].mxu0
    %519 = vmatprep.mubr.f32.mxu0 0.0
    %520 = vmatmul.mubr.f32.gmra.mrb[0].mxu0 %v438
    %v521 = vpop.f32.mrb[0].mxu0
    %v522 = vadd.f32 %v427, %v521
    %v523 = vpop.f32.mrb[0].mxu0
    %524 = vdwg.mxu0
    %vm525 = vcmp.ge.f32.partialorder %v507, 0.0
    %vm526 = vcmp.ge.f32.partialorder %v512, 0.0
    %vm527 = vcmp.ge.f32.partialorder %v517, 0.0
    %vm528 = vcmp.ge.f32.partialorder %v522, 0.0
    %v529 = vmul.f32 %v507, 0.3
    %v530 = vmul.f32 %v512, 0.3
    %v531 = vmul.f32 %v517, 0.3
    %v532 = vmul.f32 %v522, 0.3
    %v533 = vsel %vm525, %v507, %v529
    %v534 = vsel %vm526, %v512, %v530
    %v535 = vsel %vm527, %v517, %v531
    %v536 = vsel %vm528, %v522, %v532
    %v537 = vld [vmem:[%s2] sm:$0xff]
    %v538 = vld [vmem:[%s2 + $0x8] sm:$0xff]
    %v539 = vld [vmem:[%s2 + $0x10] sm:$0xff]
    %v540 = vld [vmem:[%s2 + $0x18] sm:$0xff]
    %v541 = vld [vmem:[%s2 + $0x20] sm:$0xff]
    %v542 = vld [vmem:[%s2 + $0x28] sm:$0xff]
    %v543 = vld [vmem:[%s2 + $0x30] sm:$0xff]
    %v544 = vld [vmem:[%s2 + $0x38] sm:$0xff]
    %s545 = scalar_lea.vmem %s2, 128
    %v546 = vld [vmem:[%s545] ss:$8 sm:$0x3]
    %v548 = vlaneseq
    %v549 = vshrl.u32 %v548, 7
    %v550 = vsub.s32 0, %v549
    %v551 = vrot.slane %v546, %v550
    %v552 = vlaneseq
    %v553 = vshrl.u32 %v552, 7
    %v554 = vsub.s32 1, %v553
    %v555 = vrot.slane %v546, %v554
    %v559 = vsel %vm27, %v533, 0
    %v562 = vsel %vm27, %v534, 0
    %v565 = vsel %vm27, %v535, 0
    %v568 = vsel %vm27, %v536, 0
    %570 = vmatprep.subr.mxu0 %v538
    %571 = vmatpush1.msra.mxu0 %v537
    %572 = vmatprep.subr.mxu0 %v540
    %573 = vmatpush1.msra.mxu0 %v539
    %574 = vmatprep.subr.mxu0 %v542
    %575 = vmatpush1.msra.mxu0 %v541
    %576 = vmatprep.subr.mxu0 %v544
    %577 = vmatpush1.msra.mxu0 %v543
    %578 = vmatprep.subr.mxu0 0.0
    %579 = vmatpush1.msra.mxu0 0.0
    %580 = vmatprep.subr.mxu0 0.0
    %581 = vmatpush1.msra.mxu0 0.0
    %582 = vmatprep.subr.mxu0 0.0
    %583 = vmatpush1.msra.mxu0 0.0
    %584 = vmatprep.subr.mxu0 0.0
    %585 = vmatpush1.msra.mxu0 0.0
    %586 = vmatprep.subr.mxu0 0.0
    %587 = vmatpush1.msra.mxu0 0.0
    %588 = vmatprep.subr.mxu0 0.0
    %589 = vmatpush1.msra.mxu0 0.0
    %590 = vmatprep.subr.mxu0 0.0
    %591 = vmatpush1.msra.mxu0 0.0
    %592 = vmatprep.subr.mxu0 0.0
    %593 = vmatpush1.msra.mxu0 0.0
    %594 = vmatprep.subr.mxu0 0.0
    %595 = vmatpush1.msra.mxu0 0.0
    %596 = vmatprep.subr.mxu0 0.0
    %597 = vmatpush1.msra.mxu0 0.0
    %598 = vmatprep.subr.mxu0 0.0
    %599 = vmatpush1.msra.mxu0 0.0
    %600 = vmatprep.subr.mxu0 0.0
    %601 = vmatpush1.msra.mxu0 0.0
    %602 = vmatprep.subr.mxu0 0.0
    %603 = vmatpush1.msra.mxu0 0.0
    %604 = vmatprep.subr.mxu0 0.0
    %605 = vmatpush1.msra.mxu0 0.0
    %606 = vmatprep.subr.mxu0 0.0
    %607 = vmatpush1.msra.mxu0 0.0
    %608 = vmatprep.subr.mxu0 0.0
    %609 = vmatpush1.msra.mxu0 0.0
    %610 = vmatprep.subr.mxu0 0.0
    %611 = vmatpush1.msra.mxu0 0.0
    %612 = vmatprep.subr.mxu0 0.0
    %613 = vmatpush1.msra.mxu0 0.0
    %614 = vmatprep.subr.mxu0 0.0
    %615 = vmatpush1.msra.mxu0 0.0
    %616 = vmatprep.subr.mxu0 0.0
    %617 = vmatpush1.msra.mxu0 0.0
    %618 = vmatprep.subr.mxu0 0.0
    %619 = vmatpush1.msra.mxu0 0.0
    %620 = vmatprep.subr.mxu0 0.0
    %621 = vmatpush1.msra.mxu0 0.0
    %622 = vmatprep.subr.mxu0 0.0
    %623 = vmatpush1.msra.mxu0 0.0
    %624 = vmatprep.subr.mxu0 0.0
    %625 = vmatpush1.msra.mxu0 0.0
    %626 = vmatprep.subr.mxu0 0.0
    %627 = vmatpush1.msra.mxu0 0.0
    %628 = vmatprep.subr.mxu0 0.0
    %629 = vmatpush1.msra.mxu0 0.0
    %630 = vmatprep.subr.mxu0 0.0
    %631 = vmatpush1.msra.mxu0 0.0
    %632 = vmatprep.subr.mxu0 0.0
    %633 = vmatpush1.msra.mxu0 0.0
    %634 = vmatprep.mubr.f32.mxu0 0.0
    %635 = vmatmul.mubr.f32.gmra.mrb[0].mxu0 %v559
    %v636 = vpop.f32.mrb[0].mxu0
    %v637 = vadd.f32 %v551, %v636
    %v638 = vpop.f32.mrb[0].mxu0
    %v639 = vadd.f32 %v555, %v638
    %640 = vmatprep.mubr.f32.mxu0 0.0
    %641 = vmatmul.mubr.f32.gmra.mrb[0].mxu0 %v562
    %v642 = vpop.f32.mrb[0].mxu0
    %v643 = vadd.f32 %v551, %v642
    %v644 = vpop.f32.mrb[0].mxu0
    %v645 = vadd.f32 %v555, %v644
    %646 = vmatprep.mubr.f32.mxu0 0.0
    %647 = vmatmul.mubr.f32.gmra.mrb[0].mxu0 %v565
    %v648 = vpop.f32.mrb[0].mxu0
    %v649 = vadd.f32 %v551, %v648
    %v650 = vpop.f32.mrb[0].mxu0
    %v651 = vadd.f32 %v555, %v650
    %652 = vmatprep.mubr.f32.mxu0 0.0
    %653 = vmatmul.mubr.f32.gmra.mrb[0].mxu0 %v568
    %v654 = vpop.f32.mrb[0].mxu0
    %v655 = vadd.f32 %v551, %v654
    %v656 = vpop.f32.mrb[0].mxu0
    %v657 = vadd.f32 %v555, %v656
    %658 = vdwg.mxu0
    %v659 = vld [vmem:[%s2 + $0x40] sm:$0xff]
    %v660 = vld [vmem:[%s2 + $0x50] sm:$0xff]
    %v661 = vld [vmem:[%s2 + $0x60] sm:$0xff]
    %v662 = vld [vmem:[%s2 + $0x70] sm:$0xff]
    %v663 = vld [vmem:[%s2 + $0x48] sm:$0xff]
    %v664 = vld [vmem:[%s2 + $0x58] sm:$0xff]
    %v665 = vld [vmem:[%s2 + $0x68] sm:$0xff]
    %v666 = vld [vmem:[%s2 + $0x78] sm:$0xff]
    %v668 = vsel %vm27, 0.0, 0
    %670 = vmatprep.subr.mxu0 0.0
    %671 = vmatpush1.msra.mxu0 %v659
    %672 = vmatprep.subr.mxu0 0.0
    %673 = vmatpush1.msra.mxu0 %v660
    %674 = vmatprep.subr.mxu0 0.0
    %675 = vmatpush1.msra.mxu0 %v661
    %676 = vmatprep.subr.mxu0 0.0
    %677 = vmatpush1.msra.mxu0 %v662
    %678 = vmatprep.subr.mxu0 0.0
    %679 = vmatpush1.msra.mxu0 0.0
    %680 = vmatprep.subr.mxu0 0.0
    %681 = vmatpush1.msra.mxu0 0.0
    %682 = vmatprep.subr.mxu0 0.0
    %683 = vmatpush1.msra.mxu0 0.0
    %684 = vmatprep.subr.mxu0 0.0
    %685 = vmatpush1.msra.mxu0 0.0
    %686 = vmatprep.subr.mxu0 0.0
    %687 = vmatpush1.msra.mxu0 0.0
    %688 = vmatprep.subr.mxu0 0.0
    %689 = vmatpush1.msra.mxu0 0.0
    %690 = vmatprep.subr.mxu0 0.0
    %691 = vmatpush1.msra.mxu0 0.0
    %692 = vmatprep.subr.mxu0 0.0
    %693 = vmatpush1.msra.mxu0 0.0
    %694 = vmatprep.subr.mxu0 0.0
    %695 = vmatpush1.msra.mxu0 0.0
    %696 = vmatprep.subr.mxu0 0.0
    %697 = vmatpush1.msra.mxu0 0.0
    %698 = vmatprep.subr.mxu0 0.0
    %699 = vmatpush1.msra.mxu0 0.0
    %700 = vmatprep.subr.mxu0 0.0
    %701 = vmatpush1.msra.mxu0 0.0
    %702 = vmatprep.subr.mxu0 0.0
    %703 = vmatpush1.msra.mxu0 0.0
    %704 = vmatprep.subr.mxu0 0.0
    %705 = vmatpush1.msra.mxu0 0.0
    %706 = vmatprep.subr.mxu0 0.0
    %707 = vmatpush1.msra.mxu0 0.0
    %708 = vmatprep.subr.mxu0 0.0
    %709 = vmatpush1.msra.mxu0 0.0
    %710 = vmatprep.subr.mxu0 0.0
    %711 = vmatpush1.msra.mxu0 0.0
    %712 = vmatprep.subr.mxu0 0.0
    %713 = vmatpush1.msra.mxu0 0.0
    %714 = vmatprep.subr.mxu0 0.0
    %715 = vmatpush1.msra.mxu0 0.0
    %716 = vmatprep.subr.mxu0 0.0
    %717 = vmatpush1.msra.mxu0 0.0
    %718 = vmatprep.subr.mxu0 0.0
    %719 = vmatpush1.msra.mxu0 0.0
    %720 = vmatprep.subr.mxu0 0.0
    %721 = vmatpush1.msra.mxu0 0.0
    %722 = vmatprep.subr.mxu0 0.0
    %723 = vmatpush1.msra.mxu0 0.0
    %724 = vmatprep.subr.mxu0 0.0
    %725 = vmatpush1.msra.mxu0 0.0
    %726 = vmatprep.subr.mxu0 0.0
    %727 = vmatpush1.msra.mxu0 0.0
    %728 = vmatprep.subr.mxu0 0.0
    %729 = vmatpush1.msra.mxu0 0.0
    %730 = vmatprep.subr.mxu0 0.0
    %731 = vmatpush1.msra.mxu0 0.0
    %732 = vmatprep.subr.mxu0 0.0
    %733 = vmatpush1.msra.mxu0 0.0
    %734 = vmatprep.mubr.f32.mxu0 0.0
    %735 = vmatmul.mubr.f32.gmra.mrb[0].mxu0 %v668
    %v736 = vpop.f32.mrb[0].mxu0
    %v737 = vadd.f32 0.0, %v736
    %v738 = vpop.f32.mrb[0].mxu0
    %739 = vdwg.mxu0
    %v740 = vadd.f32 %v637, %v737
    %741 = vmatprep.subr.mxu0 0.0
    %742 = vmatpush1.msra.mxu0 %v663
    %743 = vmatprep.subr.mxu0 0.0
    %744 = vmatpush1.msra.mxu0 %v664
    %745 = vmatprep.subr.mxu0 0.0
    %746 = vmatpush1.msra.mxu0 %v665
    %747 = vmatprep.subr.mxu0 0.0
    %748 = vmatpush1.msra.mxu0 %v666
    %749 = vmatprep.subr.mxu0 0.0
    %750 = vmatpush1.msra.mxu0 0.0
    %751 = vmatprep.subr.mxu0 0.0
    %752 = vmatpush1.msra.mxu0 0.0
    %753 = vmatprep.subr.mxu0 0.0
    %754 = vmatpush1.msra.mxu0 0.0
    %755 = vmatprep.subr.mxu0 0.0
    %756 = vmatpush1.msra.mxu0 0.0
    %757 = vmatprep.subr.mxu0 0.0
    %758 = vmatpush1.msra.mxu0 0.0
    %759 = vmatprep.subr.mxu0 0.0
    %760 = vmatpush1.msra.mxu0 0.0
    %761 = vmatprep.subr.mxu0 0.0
    %762 = vmatpush1.msra.mxu0 0.0
    %763 = vmatprep.subr.mxu0 0.0
    %764 = vmatpush1.msra.mxu0 0.0
    %765 = vmatprep.subr.mxu0 0.0
    %766 = vmatpush1.msra.mxu0 0.0
    %767 = vmatprep.subr.mxu0 0.0
    %768 = vmatpush1.msra.mxu0 0.0
    %769 = vmatprep.subr.mxu0 0.0
    %770 = vmatpush1.msra.mxu0 0.0
    %771 = vmatprep.subr.mxu0 0.0
    %772 = vmatpush1.msra.mxu0 0.0
    %773 = vmatprep.subr.mxu0 0.0
    %774 = vmatpush1.msra.mxu0 0.0
    %775 = vmatprep.subr.mxu0 0.0
    %776 = vmatpush1.msra.mxu0 0.0
    %777 = vmatprep.subr.mxu0 0.0
    %778 = vmatpush1.msra.mxu0 0.0
    %779 = vmatprep.subr.mxu0 0.0
    %780 = vmatpush1.msra.mxu0 0.0
    %781 = vmatprep.subr.mxu0 0.0
    %782 = vmatpush1.msra.mxu0 0.0
    %783 = vmatprep.subr.mxu0 0.0
    %784 = vmatpush1.msra.mxu0 0.0
    %785 = vmatprep.subr.mxu0 0.0
    %786 = vmatpush1.msra.mxu0 0.0
    %787 = vmatprep.subr.mxu0 0.0
    %788 = vmatpush1.msra.mxu0 0.0
    %789 = vmatprep.subr.mxu0 0.0
    %790 = vmatpush1.msra.mxu0 0.0
    %791 = vmatprep.subr.mxu0 0.0
    %792 = vmatpush1.msra.mxu0 0.0
    %793 = vmatprep.subr.mxu0 0.0
    %794 = vmatpush1.msra.mxu0 0.0
    %795 = vmatprep.subr.mxu0 0.0
    %796 = vmatpush1.msra.mxu0 0.0
    %797 = vmatprep.subr.mxu0 0.0
    %798 = vmatpush1.msra.mxu0 0.0
    %799 = vmatprep.subr.mxu0 0.0
    %800 = vmatpush1.msra.mxu0 0.0
    %801 = vmatprep.subr.mxu0 0.0
    %802 = vmatpush1.msra.mxu0 0.0
    %803 = vmatprep.subr.mxu0 0.0
    %804 = vmatpush1.msra.mxu0 0.0
    %805 = vmatprep.mubr.f32.mxu0 0.0
    %806 = vmatmul.mubr.f32.gmra.mrb[0].mxu0 %v668
    %v807 = vpop.f32.mrb[0].mxu0
    %v808 = vadd.f32 0.0, %v807
    %v809 = vpop.f32.mrb[0].mxu0
    %810 = vdwg.mxu0
    %v812 = vrot.slane %v808, 2
    %v814 = vadd.f32 %v657, %v812
    %v815 = vxor.u32 %v740, 2147483648
    %v816 = vmul.f32 %v815, 1.442695
    %v817 = vpow.pop %v816
    %v818 = vadd.f32 %v817, 1.0
    %v819 = vrcp.pop %v818
    %v820 = vmul.f32 1.0, %v819
    %v821 = vxor.u32 %v814, 2147483648
    %v822 = vmul.f32 %v821, 1.442695
    %v823 = vpow.pop %v822
    %v824 = vadd.f32 %v823, 1.0
    %v825 = vrcp.pop %v824
    %v826 = vmul.f32 1.0, %v825
    %v827 = vmul.f32 %v820, 0.0
    %v828 = vtanh.pop %v740
    %830 = vrot.lane.b32.xlu0 %v828, 32
    %v831 = vpop.permute.xlu0 %830
    %v833 = vmul.f32 %v820, %v831
    %835 = vrot.lane.b32.xlu0 %v833, 32
    %v836 = vpop.permute.xlu0 %835
    %v838 = vadd.f32 %v827, %v836
    %v839 = vmul.f32 %v826, 0.0
    %v840 = vtanh.pop %v814
    %842 = vrot.lane.b32.xlu0 %v840, 32
    %v843 = vpop.permute.xlu0 %842
    %v845 = vmul.f32 %v826, %v843
    %847 = vrot.lane.b32.xlu0 %v845, 32
    %v848 = vpop.permute.xlu0 %847
    %v850 = vadd.f32 %v839, %v848
    %v851 = vtanh.pop %v838
    %853 = vrot.lane.b32.xlu0 %v851, 32
    %v854 = vpop.permute.xlu0 %853
    %v856 = vmul.f32 %v820, %v854
    %v857 = vtanh.pop %v850
    %859 = vrot.lane.b32.xlu0 %v857, 32
    %v860 = vpop.permute.xlu0 %859
    %v862 = vmul.f32 %v826, %v860
    %v863 = vadd.f32 %v856, 0.0
    %v865 = vrot.slane %v862, 6
    %v867 = vadd.f32 %v863, %v865
    %869 = vrot.lane.b32.xlu0 %v856, 64
    %v870 = vpop.permute.xlu0 %869
    %v871 = vsel %vm27, %v870, 0
    %873 = vmatprep.subr.mxu0 0.0
    %874 = vmatpush1.msra.mxu0 %v659
    %875 = vmatprep.subr.mxu0 0.0
    %876 = vmatpush1.msra.mxu0 %v660
    %877 = vmatprep.subr.mxu0 0.0
    %878 = vmatpush1.msra.mxu0 %v661
    %879 = vmatprep.subr.mxu0 0.0
    %880 = vmatpush1.msra.mxu0 %v662
    %881 = vmatprep.subr.mxu0 0.0
    %882 = vmatpush1.msra.mxu0 0.0
    %883 = vmatprep.subr.mxu0 0.0
    %884 = vmatpush1.msra.mxu0 0.0
    %885 = vmatprep.subr.mxu0 0.0
    %886 = vmatpush1.msra.mxu0 0.0
    %887 = vmatprep.subr.mxu0 0.0
    %888 = vmatpush1.msra.mxu0 0.0
    %889 = vmatprep.subr.mxu0 0.0
    %890 = vmatpush1.msra.mxu0 0.0
    %891 = vmatprep.subr.mxu0 0.0
    %892 = vmatpush1.msra.mxu0 0.0
    %893 = vmatprep.subr.mxu0 0.0
    %894 = vmatpush1.msra.mxu0 0.0
    %895 = vmatprep.subr.mxu0 0.0
    %896 = vmatpush1.msra.mxu0 0.0
    %897 = vmatprep.subr.mxu0 0.0
    %898 = vmatpush1.msra.mxu0 0.0
    %899 = vmatprep.subr.mxu0 0.0
    %900 = vmatpush1.msra.mxu0 0.0
    %901 = vmatprep.subr.mxu0 0.0
    %902 = vmatpush1.msra.mxu0 0.0
    %903 = vmatprep.subr.mxu0 0.0
    %904 = vmatpush1.msra.mxu0 0.0
    %905 = vmatprep.subr.mxu0 0.0
    %906 = vmatpush1.msra.mxu0 0.0
    %907 = vmatprep.subr.mxu0 0.0
    %908 = vmatpush1.msra.mxu0 0.0
    %909 = vmatprep.subr.mxu0 0.0
    %910 = vmatpush1.msra.mxu0 0.0
    %911 = vmatprep.subr.mxu0 0.0
    %912 = vmatpush1.msra.mxu0 0.0
    %913 = vmatprep.subr.mxu0 0.0
    %914 = vmatpush1.msra.mxu0 0.0
    %915 = vmatprep.subr.mxu0 0.0
    %916 = vmatpush1.msra.mxu0 0.0
    %917 = vmatprep.subr.mxu0 0.0
    %918 = vmatpush1.msra.mxu0 0.0
    %919 = vmatprep.subr.mxu0 0.0
    %920 = vmatpush1.msra.mxu0 0.0
    %921 = vmatprep.subr.mxu0 0.0
    %922 = vmatpush1.msra.mxu0 0.0
    %923 = vmatprep.subr.mxu0 0.0
    %924 = vmatpush1.msra.mxu0 0.0
    %925 = vmatprep.subr.mxu0 0.0
    %926 = vmatpush1.msra.mxu0 0.0
    %927 = vmatprep.subr.mxu0 0.0
    %928 = vmatpush1.msra.mxu0 0.0
    %929 = vmatprep.subr.mxu0 0.0
    %930 = vmatpush1.msra.mxu0 0.0
    %931 = vmatprep.subr.mxu0 0.0
    %932 = vmatpush1.msra.mxu0 0.0
    %933 = vmatprep.subr.mxu0 0.0
    %934 = vmatpush1.msra.mxu0 0.0
    %935 = vmatprep.subr.mxu0 0.0
    %936 = vmatpush1.msra.mxu0 0.0
    %937 = vmatprep.mubr.f32.mxu0 0.0
    %938 = vmatmul.mubr.f32.gmra.mrb[0].mxu0 %v871
    %v939 = vpop.f32.mrb[0].mxu0
    %v940 = vadd.f32 0.0, %v939
    %v941 = vpop.f32.mrb[0].mxu0
    %942 = vdwg.mxu0
    %v944 = vrot.slane %v940, 6
    %v946 = vadd.f32 %v637, %v944
    %947 = vrot.lane.b32.xlu0 %v865, 64
    %v948 = vpop.permute.xlu0 %947
    %v949 = vsel %vm27, %v948, 0
    %951 = vmatprep.subr.mxu0 0.0
    %952 = vmatpush1.msra.mxu0 %v663
    %953 = vmatprep.subr.mxu0 0.0
    %954 = vmatpush1.msra.mxu0 %v664
    %955 = vmatprep.subr.mxu0 0.0
    %956 = vmatpush1.msra.mxu0 %v665
    %957 = vmatprep.subr.mxu0 0.0
    %958 = vmatpush1.msra.mxu0 %v666
    %959 = vmatprep.subr.mxu0 0.0
    %960 = vmatpush1.msra.mxu0 0.0
    %961 = vmatprep.subr.mxu0 0.0
    %962 = vmatpush1.msra.mxu0 0.0
    %963 = vmatprep.subr.mxu0 0.0
    %964 = vmatpush1.msra.mxu0 0.0
    %965 = vmatprep.subr.mxu0 0.0
    %966 = vmatpush1.msra.mxu0 0.0
    %967 = vmatprep.subr.mxu0 0.0
    %968 = vmatpush1.msra.mxu0 0.0
    %969 = vmatprep.subr.mxu0 0.0
    %970 = vmatpush1.msra.mxu0 0.0
    %971 = vmatprep.subr.mxu0 0.0
    %972 = vmatpush1.msra.mxu0 0.0
    %973 = vmatprep.subr.mxu0 0.0
    %974 = vmatpush1.msra.mxu0 0.0
    %975 = vmatprep.subr.mxu0 0.0
    %976 = vmatpush1.msra.mxu0 0.0
    %977 = vmatprep.subr.mxu0 0.0
    %978 = vmatpush1.msra.mxu0 0.0
    %979 = vmatprep.subr.mxu0 0.0
    %980 = vmatpush1.msra.mxu0 0.0
    %981 = vmatprep.subr.mxu0 0.0
    %982 = vmatpush1.msra.mxu0 0.0
    %983 = vmatprep.subr.mxu0 0.0
    %984 = vmatpush1.msra.mxu0 0.0
    %985 = vmatprep.subr.mxu0 0.0
    %986 = vmatpush1.msra.mxu0 0.0
    %987 = vmatprep.subr.mxu0 0.0
    %988 = vmatpush1.msra.mxu0 0.0
    %989 = vmatprep.subr.mxu0 0.0
    %990 = vmatpush1.msra.mxu0 0.0
    %991 = vmatprep.subr.mxu0 0.0
    %992 = vmatpush1.msra.mxu0 0.0
    %993 = vmatprep.subr.mxu0 0.0
    %994 = vmatpush1.msra.mxu0 0.0
    %995 = vmatprep.subr.mxu0 0.0
    %996 = vmatpush1.msra.mxu0 0.0
    %997 = vmatprep.subr.mxu0 0.0
    %998 = vmatpush1.msra.mxu0 0.0
    %999 = vmatprep.subr.mxu0 0.0
    %1000 = vmatpush1.msra.mxu0 0.0
    %1001 = vmatprep.subr.mxu0 0.0
    %1002 = vmatpush1.msra.mxu0 0.0
    %1003 = vmatprep.subr.mxu0 0.0
    %1004 = vmatpush1.msra.mxu0 0.0
    %1005 = vmatprep.subr.mxu0 0.0
    %1006 = vmatpush1.msra.mxu0 0.0
    %1007 = vmatprep.subr.mxu0 0.0
    %1008 = vmatpush1.msra.mxu0 0.0
    %1009 = vmatprep.subr.mxu0 0.0
    %1010 = vmatpush1.msra.mxu0 0.0
    %1011 = vmatprep.subr.mxu0 0.0
    %1012 = vmatpush1.msra.mxu0 0.0
    %1013 = vmatprep.subr.mxu0 0.0
    %1014 = vmatpush1.msra.mxu0 0.0
    %1015 = vmatprep.mubr.f32.mxu0 0.0
    %1016 = vmatmul.mubr.f32.gmra.mrb[0].mxu0 %v949
    %v1017 = vpop.f32.mrb[0].mxu0
    %v1018 = vadd.f32 0.0, %v1017
    %v1019 = vpop.f32.mrb[0].mxu0
    %1020 = vdwg.mxu0
    %v1022 = vrot.slane %v1018, 4
    %v1024 = vadd.f32 %v657, %v1022
    %v1025 = vxor.u32 %v946, 2147483648
    %v1026 = vmul.f32 %v1025, 1.442695
    %v1027 = vpow.pop %v1026
    %v1028 = vadd.f32 %v1027, 1.0
    %v1029 = vrcp.pop %v1028
    %v1030 = vmul.f32 1.0, %v1029
    %v1031 = vxor.u32 %v1024, 2147483648
    %v1032 = vmul.f32 %v1031, 1.442695
    %v1033 = vpow.pop %v1032
    %v1034 = vadd.f32 %v1033, 1.0
    %v1035 = vrcp.pop %v1034
    %v1036 = vmul.f32 1.0, %v1035
    %v1038 = vrot.slane %v838, 6
    %v1040 = vmul.f32 %v1030, %v1038
    %v1041 = vtanh.pop %v946
    %1043 = vrot.lane.b32.xlu0 %v1041, 32
    %v1044 = vpop.permute.xlu0 %1043
    %v1046 = vmul.f32 %v1030, %v1044
    %1048 = vrot.lane.b32.xlu0 %v1046, 32
    %v1049 = vpop.permute.xlu0 %1048
    %v1051 = vadd.f32 %v1040, %v1049
    %v1053 = vrot.slane %v850, 2
    %v1055 = vmul.f32 %v1036, %v1053
    %v1056 = vtanh.pop %v1024
    %1058 = vrot.lane.b32.xlu0 %v1056, 32
    %v1059 = vpop.permute.xlu0 %1058
    %v1061 = vmul.f32 %v1036, %v1059
    %1063 = vrot.lane.b32.xlu0 %v1061, 32
    %v1064 = vpop.permute.xlu0 %1063
    %v1066 = vadd.f32 %v1055, %v1064
    %v1067 = vtanh.pop %v1051
    %1069 = vrot.lane.b32.xlu0 %v1067, 32
    %v1070 = vpop.permute.xlu0 %1069
    %v1072 = vmul.f32 %v1030, %v1070
    %v1073 = vtanh.pop %v1066
    %1075 = vrot.lane.b32.xlu0 %v1073, 32
    %v1076 = vpop.permute.xlu0 %1075
    %v1078 = vmul.f32 %v1036, %v1076
    %v1080 = vrot.slane %v1072, 2
    %v1082 = vadd.f32 %v867, %v1080
    %v1084 = vrot.slane %v1078, 4
    %v1086 = vadd.f32 %v1082, %v1084
    %1087 = vrot.lane.b32.xlu0 %v1080, 64
    %v1088 = vpop.permute.xlu0 %1087
    %v1089 = vsel %vm27, %v1088, 0
    %1091 = vmatprep.subr.mxu0 0.0
    %1092 = vmatpush1.msra.mxu0 %v659
    %1093 = vmatprep.subr.mxu0 0.0
    %1094 = vmatpush1.msra.mxu0 %v660
    %1095 = vmatprep.subr.mxu0 0.0
    %1096 = vmatpush1.msra.mxu0 %v661
    %1097 = vmatprep.subr.mxu0 0.0
    %1098 = vmatpush1.msra.mxu0 %v662
    %1099 = vmatprep.subr.mxu0 0.0
    %1100 = vmatpush1.msra.mxu0 0.0
    %1101 = vmatprep.subr.mxu0 0.0
    %1102 = vmatpush1.msra.mxu0 0.0
    %1103 = vmatprep.subr.mxu0 0.0
    %1104 = vmatpush1.msra.mxu0 0.0
    %1105 = vmatprep.subr.mxu0 0.0
    %1106 = vmatpush1.msra.mxu0 0.0
    %1107 = vmatprep.subr.mxu0 0.0
    %1108 = vmatpush1.msra.mxu0 0.0
    %1109 = vmatprep.subr.mxu0 0.0
    %1110 = vmatpush1.msra.mxu0 0.0
    %1111 = vmatprep.subr.mxu0 0.0
    %1112 = vmatpush1.msra.mxu0 0.0
    %1113 = vmatprep.subr.mxu0 0.0
    %1114 = vmatpush1.msra.mxu0 0.0
    %1115 = vmatprep.subr.mxu0 0.0
    %1116 = vmatpush1.msra.mxu0 0.0
    %1117 = vmatprep.subr.mxu0 0.0
    %1118 = vmatpush1.msra.mxu0 0.0
    %1119 = vmatprep.subr.mxu0 0.0
    %1120 = vmatpush1.msra.mxu0 0.0
    %1121 = vmatprep.subr.mxu0 0.0
    %1122 = vmatpush1.msra.mxu0 0.0
    %1123 = vmatprep.subr.mxu0 0.0
    %1124 = vmatpush1.msra.mxu0 0.0
    %1125 = vmatprep.subr.mxu0 0.0
    %1126 = vmatpush1.msra.mxu0 0.0
    %1127 = vmatprep.subr.mxu0 0.0
    %1128 = vmatpush1.msra.mxu0 0.0
    %1129 = vmatprep.subr.mxu0 0.0
    %1130 = vmatpush1.msra.mxu0 0.0
    %1131 = vmatprep.subr.mxu0 0.0
    %1132 = vmatpush1.msra.mxu0 0.0
    %1133 = vmatprep.subr.mxu0 0.0
    %1134 = vmatpush1.msra.mxu0 0.0
    %1135 = vmatprep.subr.mxu0 0.0
    %1136 = vmatpush1.msra.mxu0 0.0
    %1137 = vmatprep.subr.mxu0 0.0
    %1138 = vmatpush1.msra.mxu0 0.0
    %1139 = vmatprep.subr.mxu0 0.0
    %1140 = vmatpush1.msra.mxu0 0.0
    %1141 = vmatprep.subr.mxu0 0.0
    %1142 = vmatpush1.msra.mxu0 0.0
    %1143 = vmatprep.subr.mxu0 0.0
    %1144 = vmatpush1.msra.mxu0 0.0
    %1145 = vmatprep.subr.mxu0 0.0
    %1146 = vmatpush1.msra.mxu0 0.0
    %1147 = vmatprep.subr.mxu0 0.0
    %1148 = vmatpush1.msra.mxu0 0.0
    %1149 = vmatprep.subr.mxu0 0.0
    %1150 = vmatpush1.msra.mxu0 0.0
    %1151 = vmatprep.subr.mxu0 0.0
    %1152 = vmatpush1.msra.mxu0 0.0
    %1153 = vmatprep.subr.mxu0 0.0
    %1154 = vmatpush1.msra.mxu0 0.0
    %1155 = vmatprep.mubr.f32.mxu0 0.0
    %1156 = vmatmul.mubr.f32.gmra.mrb[0].mxu0 %v1089
    %v1157 = vpop.f32.mrb[0].mxu0
    %v1158 = vadd.f32 0.0, %v1157
    %v1159 = vpop.f32.mrb[0].mxu0
    %1160 = vdwg.mxu0
    %v1162 = vrot.slane %v1158, 4
    %v1164 = vadd.f32 %v637, %v1162
    %1165 = vrot.lane.b32.xlu0 %v1084, 64
    %v1166 = vpop.permute.xlu0 %1165
    %v1167 = vsel %vm27, %v1166, 0
    %1169 = vmatprep.subr.mxu0 0.0
    %1170 = vmatpush1.msra.mxu0 %v663
    %1171 = vmatprep.subr.mxu0 0.0
    %1172 = vmatpush1.msra.mxu0 %v664
    %1173 = vmatprep.subr.mxu0 0.0
    %1174 = vmatpush1.msra.mxu0 %v665
    %1175 = vmatprep.subr.mxu0 0.0
    %1176 = vmatpush1.msra.mxu0 %v666
    %1177 = vmatprep.subr.mxu0 0.0
    %1178 = vmatpush1.msra.mxu0 0.0
    %1179 = vmatprep.subr.mxu0 0.0
    %1180 = vmatpush1.msra.mxu0 0.0
    %1181 = vmatprep.subr.mxu0 0.0
    %1182 = vmatpush1.msra.mxu0 0.0
    %1183 = vmatprep.subr.mxu0 0.0
    %1184 = vmatpush1.msra.mxu0 0.0
    %1185 = vmatprep.subr.mxu0 0.0
    %1186 = vmatpush1.msra.mxu0 0.0
    %1187 = vmatprep.subr.mxu0 0.0
    %1188 = vmatpush1.msra.mxu0 0.0
    %1189 = vmatprep.subr.mxu0 0.0
    %1190 = vmatpush1.msra.mxu0 0.0
    %1191 = vmatprep.subr.mxu0 0.0
    %1192 = vmatpush1.msra.mxu0 0.0
    %1193 = vmatprep.subr.mxu0 0.0
    %1194 = vmatpush1.msra.mxu0 0.0
    %1195 = vmatprep.subr.mxu0 0.0
    %1196 = vmatpush1.msra.mxu0 0.0
    %1197 = vmatprep.subr.mxu0 0.0
    %1198 = vmatpush1.msra.mxu0 0.0
    %1199 = vmatprep.subr.mxu0 0.0
    %1200 = vmatpush1.msra.mxu0 0.0
    %1201 = vmatprep.subr.mxu0 0.0
    %1202 = vmatpush1.msra.mxu0 0.0
    %1203 = vmatprep.subr.mxu0 0.0
    %1204 = vmatpush1.msra.mxu0 0.0
    %1205 = vmatprep.subr.mxu0 0.0
    %1206 = vmatpush1.msra.mxu0 0.0
    %1207 = vmatprep.subr.mxu0 0.0
    %1208 = vmatpush1.msra.mxu0 0.0
    %1209 = vmatprep.subr.mxu0 0.0
    %1210 = vmatpush1.msra.mxu0 0.0
    %1211 = vmatprep.subr.mxu0 0.0
    %1212 = vmatpush1.msra.mxu0 0.0
    %1213 = vmatprep.subr.mxu0 0.0
    %1214 = vmatpush1.msra.mxu0 0.0
    %1215 = vmatprep.subr.mxu0 0.0
    %1216 = vmatpush1.msra.mxu0 0.0
    %1217 = vmatprep.subr.mxu0 0.0
    %1218 = vmatpush1.msra.mxu0 0.0
    %1219 = vmatprep.subr.mxu0 0.0
    %1220 = vmatpush1.msra.mxu0 0.0
    %1221 = vmatprep.subr.mxu0 0.0
    %1222 = vmatpush1.msra.mxu0 0.0
    %1223 = vmatprep.subr.mxu0 0.0
    %1224 = vmatpush1.msra.mxu0 0.0
    %1225 = vmatprep.subr.mxu0 0.0
    %1226 = vmatpush1.msra.mxu0 0.0
    %1227 = vmatprep.subr.mxu0 0.0
    %1228 = vmatpush1.msra.mxu0 0.0
    %1229 = vmatprep.subr.mxu0 0.0
    %1230 = vmatpush1.msra.mxu0 0.0
    %1231 = vmatprep.subr.mxu0 0.0
    %1232 = vmatpush1.msra.mxu0 0.0
    %1233 = vmatprep.mubr.f32.mxu0 0.0
    %1234 = vmatmul.mubr.f32.gmra.mrb[0].mxu0 %v1167
    %v1235 = vpop.f32.mrb[0].mxu0
    %v1236 = vadd.f32 0.0, %v1235
    %v1237 = vpop.f32.mrb[0].mxu0
    %1238 = vdwg.mxu0
    %v1240 = vrot.slane %v1236, 6
    %v1242 = vadd.f32 %v657, %v1240
    %v1243 = vxor.u32 %v1164, 2147483648
    %v1244 = vmul.f32 %v1243, 1.442695
    %v1245 = vpow.pop %v1244
    %v1246 = vadd.f32 %v1245, 1.0
    %v1247 = vrcp.pop %v1246
    %v1248 = vmul.f32 1.0, %v1247
    %v1249 = vxor.u32 %v1242, 2147483648
    %v1250 = vmul.f32 %v1249, 1.442695
    %v1251 = vpow.pop %v1250
    %v1252 = vadd.f32 %v1251, 1.0
    %v1253 = vrcp.pop %v1252
    %v1254 = vmul.f32 1.0, %v1253
    %v1256 = vrot.slane %v1051, 6
    %v1258 = vmul.f32 %v1248, %v1256
    %v1259 = vtanh.pop %v1164
    %1261 = vrot.lane.b32.xlu0 %v1259, 32
    %v1262 = vpop.permute.xlu0 %1261
    %v1264 = vmul.f32 %v1248, %v1262
    %1266 = vrot.lane.b32.xlu0 %v1264, 32
    %v1267 = vpop.permute.xlu0 %1266
    %v1269 = vadd.f32 %v1258, %v1267
    %v1271 = vrot.slane %v1066, 2
    %v1273 = vmul.f32 %v1254, %v1271
    %v1274 = vtanh.pop %v1242
    %1276 = vrot.lane.b32.xlu0 %v1274, 32
    %v1277 = vpop.permute.xlu0 %1276
    %v1279 = vmul.f32 %v1254, %v1277
    %1281 = vrot.lane.b32.xlu0 %v1279, 32
    %v1282 = vpop.permute.xlu0 %1281
    %v1284 = vadd.f32 %v1273, %v1282
    %v1285 = vtanh.pop %v1269
    %1287 = vrot.lane.b32.xlu0 %v1285, 32
    %v1288 = vpop.permute.xlu0 %1287
    %v1290 = vmul.f32 %v1248, %v1288
    %v1291 = vtanh.pop %v1284
    %1293 = vrot.lane.b32.xlu0 %v1291, 32
    %v1294 = vpop.permute.xlu0 %1293
    %v1296 = vmul.f32 %v1254, %v1294
    %v1298 = vrot.slane %v1290, 4
    %v1300 = vadd.f32 %v1086, %v1298
    %v1302 = vrot.slane %v1296, 2
    %v1304 = vadd.f32 %v1300, %v1302
    %1305 = vrot.lane.b32.xlu0 %v1298, 64
    %v1306 = vpop.permute.xlu0 %1305
    %v1307 = vsel %vm27, %v1306, 0
    %1309 = vmatprep.subr.mxu0 0.0
    %1310 = vmatpush1.msra.mxu0 %v659
    %1311 = vmatprep.subr.mxu0 0.0
    %1312 = vmatpush1.msra.mxu0 %v660
    %1313 = vmatprep.subr.mxu0 0.0
    %1314 = vmatpush1.msra.mxu0 %v661
    %1315 = vmatprep.subr.mxu0 0.0
    %1316 = vmatpush1.msra.mxu0 %v662
    %1317 = vmatprep.subr.mxu0 0.0
    %1318 = vmatpush1.msra.mxu0 0.0
    %1319 = vmatprep.subr.mxu0 0.0
    %1320 = vmatpush1.msra.mxu0 0.0
    %1321 = vmatprep.subr.mxu0 0.0
    %1322 = vmatpush1.msra.mxu0 0.0
    %1323 = vmatprep.subr.mxu0 0.0
    %1324 = vmatpush1.msra.mxu0 0.0
    %1325 = vmatprep.subr.mxu0 0.0
    %1326 = vmatpush1.msra.mxu0 0.0
    %1327 = vmatprep.subr.mxu0 0.0
    %1328 = vmatpush1.msra.mxu0 0.0
    %1329 = vmatprep.subr.mxu0 0.0
    %1330 = vmatpush1.msra.mxu0 0.0
    %1331 = vmatprep.subr.mxu0 0.0
    %1332 = vmatpush1.msra.mxu0 0.0
    %1333 = vmatprep.subr.mxu0 0.0
    %1334 = vmatpush1.msra.mxu0 0.0
    %1335 = vmatprep.subr.mxu0 0.0
    %1336 = vmatpush1.msra.mxu0 0.0
    %1337 = vmatprep.subr.mxu0 0.0
    %1338 = vmatpush1.msra.mxu0 0.0
    %1339 = vmatprep.subr.mxu0 0.0
    %1340 = vmatpush1.msra.mxu0 0.0
    %1341 = vmatprep.subr.mxu0 0.0
    %1342 = vmatpush1.msra.mxu0 0.0
    %1343 = vmatprep.subr.mxu0 0.0
    %1344 = vmatpush1.msra.mxu0 0.0
    %1345 = vmatprep.subr.mxu0 0.0
    %1346 = vmatpush1.msra.mxu0 0.0
    %1347 = vmatprep.subr.mxu0 0.0
    %1348 = vmatpush1.msra.mxu0 0.0
    %1349 = vmatprep.subr.mxu0 0.0
    %1350 = vmatpush1.msra.mxu0 0.0
    %1351 = vmatprep.subr.mxu0 0.0
    %1352 = vmatpush1.msra.mxu0 0.0
    %1353 = vmatprep.subr.mxu0 0.0
    %1354 = vmatpush1.msra.mxu0 0.0
    %1355 = vmatprep.subr.mxu0 0.0
    %1356 = vmatpush1.msra.mxu0 0.0
    %1357 = vmatprep.subr.mxu0 0.0
    %1358 = vmatpush1.msra.mxu0 0.0
    %1359 = vmatprep.subr.mxu0 0.0
    %1360 = vmatpush1.msra.mxu0 0.0
    %1361 = vmatprep.subr.mxu0 0.0
    %1362 = vmatpush1.msra.mxu0 0.0
    %1363 = vmatprep.subr.mxu0 0.0
    %1364 = vmatpush1.msra.mxu0 0.0
    %1365 = vmatprep.subr.mxu0 0.0
    %1366 = vmatpush1.msra.mxu0 0.0
    %1367 = vmatprep.subr.mxu0 0.0
    %1368 = vmatpush1.msra.mxu0 0.0
    %1369 = vmatprep.subr.mxu0 0.0
    %1370 = vmatpush1.msra.mxu0 0.0
    %1371 = vmatprep.subr.mxu0 0.0
    %1372 = vmatpush1.msra.mxu0 0.0
    %1373 = vmatprep.mubr.f32.mxu0 0.0
    %1374 = vmatmul.mubr.f32.gmra.mrb[0].mxu0 %v1307
    %v1375 = vpop.f32.mrb[0].mxu0
    %v1376 = vadd.f32 0.0, %v1375
    %v1377 = vpop.f32.mrb[0].mxu0
    %1378 = vdwg.mxu0
    %v1380 = vrot.slane %v1376, 2
    %v1382 = vadd.f32 %v637, %v1380
    %1383 = vrot.lane.b32.xlu0 %v1302, 64
    %v1384 = vpop.permute.xlu0 %1383
    %v1385 = vsel %vm27, %v1384, 0
    %1387 = vmatprep.subr.mxu0 0.0
    %1388 = vmatpush1.msra.mxu0 %v663
    %1389 = vmatprep.subr.mxu0 0.0
    %1390 = vmatpush1.msra.mxu0 %v664
    %1391 = vmatprep.subr.mxu0 0.0
    %1392 = vmatpush1.msra.mxu0 %v665
    %1393 = vmatprep.subr.mxu0 0.0
    %1394 = vmatpush1.msra.mxu0 %v666
    %1395 = vmatprep.subr.mxu0 0.0
    %1396 = vmatpush1.msra.mxu0 0.0
    %1397 = vmatprep.subr.mxu0 0.0
    %1398 = vmatpush1.msra.mxu0 0.0
    %1399 = vmatprep.subr.mxu0 0.0
    %1400 = vmatpush1.msra.mxu0 0.0
    %1401 = vmatprep.subr.mxu0 0.0
    %1402 = vmatpush1.msra.mxu0 0.0
    %1403 = vmatprep.subr.mxu0 0.0
    %1404 = vmatpush1.msra.mxu0 0.0
    %1405 = vmatprep.subr.mxu0 0.0
    %1406 = vmatpush1.msra.mxu0 0.0
    %1407 = vmatprep.subr.mxu0 0.0
    %1408 = vmatpush1.msra.mxu0 0.0
    %1409 = vmatprep.subr.mxu0 0.0
    %1410 = vmatpush1.msra.mxu0 0.0
    %1411 = vmatprep.subr.mxu0 0.0
    %1412 = vmatpush1.msra.mxu0 0.0
    %1413 = vmatprep.subr.mxu0 0.0
    %1414 = vmatpush1.msra.mxu0 0.0
    %1415 = vmatprep.subr.mxu0 0.0
    %1416 = vmatpush1.msra.mxu0 0.0
    %1417 = vmatprep.subr.mxu0 0.0
    %1418 = vmatpush1.msra.mxu0 0.0
    %1419 = vmatprep.subr.mxu0 0.0
    %1420 = vmatpush1.msra.mxu0 0.0
    %1421 = vmatprep.subr.mxu0 0.0
    %1422 = vmatpush1.msra.mxu0 0.0
    %1423 = vmatprep.subr.mxu0 0.0
    %1424 = vmatpush1.msra.mxu0 0.0
    %1425 = vmatprep.subr.mxu0 0.0
    %1426 = vmatpush1.msra.mxu0 0.0
    %1427 = vmatprep.subr.mxu0 0.0
    %1428 = vmatpush1.msra.mxu0 0.0
    %1429 = vmatprep.subr.mxu0 0.0
    %1430 = vmatpush1.msra.mxu0 0.0
    %1431 = vmatprep.subr.mxu0 0.0
    %1432 = vmatpush1.msra.mxu0 0.0
    %1433 = vmatprep.subr.mxu0 0.0
    %1434 = vmatpush1.msra.mxu0 0.0
    %1435 = vmatprep.subr.mxu0 0.0
    %1436 = vmatpush1.msra.mxu0 0.0
    %1437 = vmatprep.subr.mxu0 0.0
    %1438 = vmatpush1.msra.mxu0 0.0
    %1439 = vmatprep.subr.mxu0 0.0
    %1440 = vmatpush1.msra.mxu0 0.0
    %1441 = vmatprep.subr.mxu0 0.0
    %1442 = vmatpush1.msra.mxu0 0.0
    %1443 = vmatprep.subr.mxu0 0.0
    %1444 = vmatpush1.msra.mxu0 0.0
    %1445 = vmatprep.subr.mxu0 0.0
    %1446 = vmatpush1.msra.mxu0 0.0
    %1447 = vmatprep.subr.mxu0 0.0
    %1448 = vmatpush1.msra.mxu0 0.0
    %1449 = vmatprep.subr.mxu0 0.0
    %1450 = vmatpush1.msra.mxu0 0.0
    %1451 = vmatprep.mubr.f32.mxu0 0.0
    %1452 = vmatmul.mubr.f32.gmra.mrb[0].mxu0 %v1385
    %v1453 = vpop.f32.mrb[0].mxu0
    %v1454 = vadd.f32 0.0, %v1453
    %v1455 = vpop.f32.mrb[0].mxu0
    %1456 = vdwg.mxu0
    %v1457 = vadd.f32 %v657, %v1454
    %v1458 = vxor.u32 %v1382, 2147483648
    %v1459 = vmul.f32 %v1458, 1.442695
    %v1460 = vpow.pop %v1459
    %v1461 = vadd.f32 %v1460, 1.0
    %v1462 = vrcp.pop %v1461
    %v1463 = vmul.f32 1.0, %v1462
    %v1464 = vxor.u32 %v1457, 2147483648
    %v1465 = vmul.f32 %v1464, 1.442695
    %v1466 = vpow.pop %v1465
    %v1467 = vadd.f32 %v1466, 1.0
    %v1468 = vrcp.pop %v1467
    %v1469 = vmul.f32 1.0, %v1468
    %v1471 = vrot.slane %v1269, 6
    %v1473 = vmul.f32 %v1463, %v1471
    %v1474 = vtanh.pop %v1382
    %1476 = vrot.lane.b32.xlu0 %v1474, 32
    %v1477 = vpop.permute.xlu0 %1476
    %v1479 = vmul.f32 %v1463, %v1477
    %1481 = vrot.lane.b32.xlu0 %v1479, 32
    %v1482 = vpop.permute.xlu0 %1481
    %v1484 = vadd.f32 %v1473, %v1482
    %v1486 = vrot.slane %v1284, 2
    %v1488 = vmul.f32 %v1469, %v1486
    %v1489 = vtanh.pop %v1457
    %1491 = vrot.lane.b32.xlu0 %v1489, 32
    %v1492 = vpop.permute.xlu0 %1491
    %v1494 = vmul.f32 %v1469, %v1492
    %1496 = vrot.lane.b32.xlu0 %v1494, 32
    %v1497 = vpop.permute.xlu0 %1496
    %v1499 = vadd.f32 %v1488, %v1497
    %v1500 = vtanh.pop %v1484
    %1502 = vrot.lane.b32.xlu0 %v1500, 32
    %v1503 = vpop.permute.xlu0 %1502
    %v1505 = vmul.f32 %v1463, %v1503
    %v1506 = vtanh.pop %v1499
    %1508 = vrot.lane.b32.xlu0 %v1506, 32
    %v1509 = vpop.permute.xlu0 %1508
    %v1511 = vmul.f32 %v1469, %v1509
    %v1513 = vrot.slane %v1505, 6
    %v1515 = vadd.f32 %v1304, %v1513
    %v1516 = vadd.f32 %v1515, %v1511
    %1517 = vrot.lane.b32.xlu0 %v1513, 64
    %v1518 = vpop.permute.xlu0 %1517
    %v1519 = vsel %vm27, %v1518, 0
    %1521 = vmatprep.subr.mxu0 0.0
    %1522 = vmatpush1.msra.mxu0 %v659
    %1523 = vmatprep.subr.mxu0 0.0
    %1524 = vmatpush1.msra.mxu0 %v660
    %1525 = vmatprep.subr.mxu0 0.0
    %1526 = vmatpush1.msra.mxu0 %v661
    %1527 = vmatprep.subr.mxu0 0.0
    %1528 = vmatpush1.msra.mxu0 %v662
    %1529 = vmatprep.subr.mxu0 0.0
    %1530 = vmatpush1.msra.mxu0 0.0
    %1531 = vmatprep.subr.mxu0 0.0
    %1532 = vmatpush1.msra.mxu0 0.0
    %1533 = vmatprep.subr.mxu0 0.0
    %1534 = vmatpush1.msra.mxu0 0.0
    %1535 = vmatprep.subr.mxu0 0.0
    %1536 = vmatpush1.msra.mxu0 0.0
    %1537 = vmatprep.subr.mxu0 0.0
    %1538 = vmatpush1.msra.mxu0 0.0
    %1539 = vmatprep.subr.mxu0 0.0
    %1540 = vmatpush1.msra.mxu0 0.0
    %1541 = vmatprep.subr.mxu0 0.0
    %1542 = vmatpush1.msra.mxu0 0.0
    %1543 = vmatprep.subr.mxu0 0.0
    %1544 = vmatpush1.msra.mxu0 0.0
    %1545 = vmatprep.subr.mxu0 0.0
    %1546 = vmatpush1.msra.mxu0 0.0
    %1547 = vmatprep.subr.mxu0 0.0
    %1548 = vmatpush1.msra.mxu0 0.0
    %1549 = vmatprep.subr.mxu0 0.0
    %1550 = vmatpush1.msra.mxu0 0.0
    %1551 = vmatprep.subr.mxu0 0.0
    %1552 = vmatpush1.msra.mxu0 0.0
    %1553 = vmatprep.subr.mxu0 0.0
    %1554 = vmatpush1.msra.mxu0 0.0
    %1555 = vmatprep.subr.mxu0 0.0
    %1556 = vmatpush1.msra.mxu0 0.0
    %1557 = vmatprep.subr.mxu0 0.0
    %1558 = vmatpush1.msra.mxu0 0.0
    %1559 = vmatprep.subr.mxu0 0.0
    %1560 = vmatpush1.msra.mxu0 0.0
    %1561 = vmatprep.subr.mxu0 0.0
    %1562 = vmatpush1.msra.mxu0 0.0
    %1563 = vmatprep.subr.mxu0 0.0
    %1564 = vmatpush1.msra.mxu0 0.0
    %1565 = vmatprep.subr.mxu0 0.0
    %1566 = vmatpush1.msra.mxu0 0.0
    %1567 = vmatprep.subr.mxu0 0.0
    %1568 = vmatpush1.msra.mxu0 0.0
    %1569 = vmatprep.subr.mxu0 0.0
    %1570 = vmatpush1.msra.mxu0 0.0
    %1571 = vmatprep.subr.mxu0 0.0
    %1572 = vmatpush1.msra.mxu0 0.0
    %1573 = vmatprep.subr.mxu0 0.0
    %1574 = vmatpush1.msra.mxu0 0.0
    %1575 = vmatprep.subr.mxu0 0.0
    %1576 = vmatpush1.msra.mxu0 0.0
    %1577 = vmatprep.subr.mxu0 0.0
    %1578 = vmatpush1.msra.mxu0 0.0
    %1579 = vmatprep.subr.mxu0 0.0
    %1580 = vmatpush1.msra.mxu0 0.0
    %1581 = vmatprep.subr.mxu0 0.0
    %1582 = vmatpush1.msra.mxu0 0.0
    %1583 = vmatprep.subr.mxu0 0.0
    %1584 = vmatpush1.msra.mxu0 0.0
    %1585 = vmatprep.mubr.f32.mxu0 0.0
    %1586 = vmatmul.mubr.f32.gmra.mrb[0].mxu0 %v1519
    %v1587 = vpop.f32.mrb[0].mxu0
    %v1588 = vadd.f32 0.0, %v1587
    %v1589 = vpop.f32.mrb[0].mxu0
    %1590 = vdwg.mxu0
    %v1591 = vadd.f32 %v643, %v1588
    %1593 = vrot.lane.b32.xlu0 %v1511, 64
    %v1594 = vpop.permute.xlu0 %1593
    %v1595 = vsel %vm27, %v1594, 0
    %1597 = vmatprep.subr.mxu0 0.0
    %1598 = vmatpush1.msra.mxu0 %v663
    %1599 = vmatprep.subr.mxu0 0.0
    %1600 = vmatpush1.msra.mxu0 %v664
    %1601 = vmatprep.subr.mxu0 0.0
    %1602 = vmatpush1.msra.mxu0 %v665
    %1603 = vmatprep.subr.mxu0 0.0
    %1604 = vmatpush1.msra.mxu0 %v666
    %1605 = vmatprep.subr.mxu0 0.0
    %1606 = vmatpush1.msra.mxu0 0.0
    %1607 = vmatprep.subr.mxu0 0.0
    %1608 = vmatpush1.msra.mxu0 0.0
    %1609 = vmatprep.subr.mxu0 0.0
    %1610 = vmatpush1.msra.mxu0 0.0
    %1611 = vmatprep.subr.mxu0 0.0
    %1612 = vmatpush1.msra.mxu0 0.0
    %1613 = vmatprep.subr.mxu0 0.0
    %1614 = vmatpush1.msra.mxu0 0.0
    %1615 = vmatprep.subr.mxu0 0.0
    %1616 = vmatpush1.msra.mxu0 0.0
    %1617 = vmatprep.subr.mxu0 0.0
    %1618 = vmatpush1.msra.mxu0 0.0
    %1619 = vmatprep.subr.mxu0 0.0
    %1620 = vmatpush1.msra.mxu0 0.0
    %1621 = vmatprep.subr.mxu0 0.0
    %1622 = vmatpush1.msra.mxu0 0.0
    %1623 = vmatprep.subr.mxu0 0.0
    %1624 = vmatpush1.msra.mxu0 0.0
    %1625 = vmatprep.subr.mxu0 0.0
    %1626 = vmatpush1.msra.mxu0 0.0
    %1627 = vmatprep.subr.mxu0 0.0
    %1628 = vmatpush1.msra.mxu0 0.0
    %1629 = vmatprep.subr.mxu0 0.0
    %1630 = vmatpush1.msra.mxu0 0.0
    %1631 = vmatprep.subr.mxu0 0.0
    %1632 = vmatpush1.msra.mxu0 0.0
    %1633 = vmatprep.subr.mxu0 0.0
    %1634 = vmatpush1.msra.mxu0 0.0
    %1635 = vmatprep.subr.mxu0 0.0
    %1636 = vmatpush1.msra.mxu0 0.0
    %1637 = vmatprep.subr.mxu0 0.0
    %1638 = vmatpush1.msra.mxu0 0.0
    %1639 = vmatprep.subr.mxu0 0.0
    %1640 = vmatpush1.msra.mxu0 0.0
    %1641 = vmatprep.subr.mxu0 0.0
    %1642 = vmatpush1.msra.mxu0 0.0
    %1643 = vmatprep.subr.mxu0 0.0
    %1644 = vmatpush1.msra.mxu0 0.0
    %1645 = vmatprep.subr.mxu0 0.0
    %1646 = vmatpush1.msra.mxu0 0.0
    %1647 = vmatprep.subr.mxu0 0.0
    %1648 = vmatpush1.msra.mxu0 0.0
    %1649 = vmatprep.subr.mxu0 0.0
    %1650 = vmatpush1.msra.mxu0 0.0
    %1651 = vmatprep.subr.mxu0 0.0
    %1652 = vmatpush1.msra.mxu0 0.0
    %1653 = vmatprep.subr.mxu0 0.0
    %1654 = vmatpush1.msra.mxu0 0.0
    %1655 = vmatprep.subr.mxu0 0.0
    %1656 = vmatpush1.msra.mxu0 0.0
    %1657 = vmatprep.subr.mxu0 0.0
    %1658 = vmatpush1.msra.mxu0 0.0
    %1659 = vmatprep.subr.mxu0 0.0
    %1660 = vmatpush1.msra.mxu0 0.0
    %1661 = vmatprep.mubr.f32.mxu0 0.0
    %1662 = vmatmul.mubr.f32.gmra.mrb[0].mxu0 %v1595
    %v1663 = vpop.f32.mrb[0].mxu0
    %v1664 = vadd.f32 0.0, %v1663
    %v1665 = vpop.f32.mrb[0].mxu0
    %1666 = vdwg.mxu0
    %v1668 = vrot.slane %v1664, 2
    %v1670 = vadd.f32 %v651, %v1668
    %v1671 = vxor.u32 %v1591, 2147483648
    %v1672 = vmul.f32 %v1671, 1.442695
    %v1673 = vpow.pop %v1672
    %v1674 = vadd.f32 %v1673, 1.0
    %v1675 = vrcp.pop %v1674
    %v1676 = vmul.f32 1.0, %v1675
    %v1677 = vxor.u32 %v1670, 2147483648
    %v1678 = vmul.f32 %v1677, 1.442695
    %v1679 = vpow.pop %v1678
    %v1680 = vadd.f32 %v1679, 1.0
    %v1681 = vrcp.pop %v1680
    %v1682 = vmul.f32 1.0, %v1681
    %v1684 = vrot.slane %v1484, 6
    %v1686 = vmul.f32 %v1676, %v1684
    %v1687 = vtanh.pop %v1591
    %1689 = vrot.lane.b32.xlu0 %v1687, 32
    %v1690 = vpop.permute.xlu0 %1689
    %v1692 = vmul.f32 %v1676, %v1690
    %1694 = vrot.lane.b32.xlu0 %v1692, 32
    %v1695 = vpop.permute.xlu0 %1694
    %v1697 = vadd.f32 %v1686, %v1695
    %v1699 = vrot.slane %v1499, 2
    %v1701 = vmul.f32 %v1682, %v1699
    %v1702 = vtanh.pop %v1670
    %1704 = vrot.lane.b32.xlu0 %v1702, 32
    %v1705 = vpop.permute.xlu0 %1704
    %v1707 = vmul.f32 %v1682, %v1705
    %1709 = vrot.lane.b32.xlu0 %v1707, 32
    %v1710 = vpop.permute.xlu0 %1709
    %v1712 = vadd.f32 %v1701, %v1710
    %v1713 = vtanh.pop %v1697
    %1715 = vrot.lane.b32.xlu0 %v1713, 32
    %v1716 = vpop.permute.xlu0 %1715
    %v1718 = vmul.f32 %v1676, %v1716
    %v1719 = vtanh.pop %v1712
    %1721 = vrot.lane.b32.xlu0 %v1719, 32
    %v1722 = vpop.permute.xlu0 %1721
    %v1724 = vmul.f32 %v1682, %v1722
    %v1725 = vadd.f32 %v1516, %v1718
    %v1727 = vrot.slane %v1724, 6
    %v1729 = vadd.f32 %v1725, %v1727
    %1731 = vrot.lane.b32.xlu0 %v1718, 64
    %v1732 = vpop.permute.xlu0 %1731
    %v1733 = vsel %vm27, %v1732, 0
    %1735 = vmatprep.subr.mxu0 0.0
    %1736 = vmatpush1.msra.mxu0 %v659
    %1737 = vmatprep.subr.mxu0 0.0
    %1738 = vmatpush1.msra.mxu0 %v660
    %1739 = vmatprep.subr.mxu0 0.0
    %1740 = vmatpush1.msra.mxu0 %v661
    %1741 = vmatprep.subr.mxu0 0.0
    %1742 = vmatpush1.msra.mxu0 %v662
    %1743 = vmatprep.subr.mxu0 0.0
    %1744 = vmatpush1.msra.mxu0 0.0
    %1745 = vmatprep.subr.mxu0 0.0
    %1746 = vmatpush1.msra.mxu0 0.0
    %1747 = vmatprep.subr.mxu0 0.0
    %1748 = vmatpush1.msra.mxu0 0.0
    %1749 = vmatprep.subr.mxu0 0.0
    %1750 = vmatpush1.msra.mxu0 0.0
    %1751 = vmatprep.subr.mxu0 0.0
    %1752 = vmatpush1.msra.mxu0 0.0
    %1753 = vmatprep.subr.mxu0 0.0
    %1754 = vmatpush1.msra.mxu0 0.0
    %1755 = vmatprep.subr.mxu0 0.0
    %1756 = vmatpush1.msra.mxu0 0.0
    %1757 = vmatprep.subr.mxu0 0.0
    %1758 = vmatpush1.msra.mxu0 0.0
    %1759 = vmatprep.subr.mxu0 0.0
    %1760 = vmatpush1.msra.mxu0 0.0
    %1761 = vmatprep.subr.mxu0 0.0
    %1762 = vmatpush1.msra.mxu0 0.0
    %1763 = vmatprep.subr.mxu0 0.0
    %1764 = vmatpush1.msra.mxu0 0.0
    %1765 = vmatprep.subr.mxu0 0.0
    %1766 = vmatpush1.msra.mxu0 0.0
    %1767 = vmatprep.subr.mxu0 0.0
    %1768 = vmatpush1.msra.mxu0 0.0
    %1769 = vmatprep.subr.mxu0 0.0
    %1770 = vmatpush1.msra.mxu0 0.0
    %1771 = vmatprep.subr.mxu0 0.0
    %1772 = vmatpush1.msra.mxu0 0.0
    %1773 = vmatprep.subr.mxu0 0.0
    %1774 = vmatpush1.msra.mxu0 0.0
    %1775 = vmatprep.subr.mxu0 0.0
    %1776 = vmatpush1.msra.mxu0 0.0
    %1777 = vmatprep.subr.mxu0 0.0
    %1778 = vmatpush1.msra.mxu0 0.0
    %1779 = vmatprep.subr.mxu0 0.0
    %1780 = vmatpush1.msra.mxu0 0.0
    %1781 = vmatprep.subr.mxu0 0.0
    %1782 = vmatpush1.msra.mxu0 0.0
    %1783 = vmatprep.subr.mxu0 0.0
    %1784 = vmatpush1.msra.mxu0 0.0
    %1785 = vmatprep.subr.mxu0 0.0
    %1786 = vmatpush1.msra.mxu0 0.0
    %1787 = vmatprep.subr.mxu0 0.0
    %1788 = vmatpush1.msra.mxu0 0.0
    %1789 = vmatprep.subr.mxu0 0.0
    %1790 = vmatpush1.msra.mxu0 0.0
    %1791 = vmatprep.subr.mxu0 0.0
    %1792 = vmatpush1.msra.mxu0 0.0
    %1793 = vmatprep.subr.mxu0 0.0
    %1794 = vmatpush1.msra.mxu0 0.0
    %1795 = vmatprep.subr.mxu0 0.0
    %1796 = vmatpush1.msra.mxu0 0.0
    %1797 = vmatprep.subr.mxu0 0.0
    %1798 = vmatpush1.msra.mxu0 0.0
    %1799 = vmatprep.mubr.f32.mxu0 0.0
    %1800 = vmatmul.mubr.f32.gmra.mrb[0].mxu0 %v1733
    %v1801 = vpop.f32.mrb[0].mxu0
    %v1802 = vadd.f32 0.0, %v1801
    %v1803 = vpop.f32.mrb[0].mxu0
    %1804 = vdwg.mxu0
    %v1806 = vrot.slane %v1802, 6
    %v1808 = vadd.f32 %v643, %v1806
    %1809 = vrot.lane.b32.xlu0 %v1727, 64
    %v1810 = vpop.permute.xlu0 %1809
    %v1811 = vsel %vm27, %v1810, 0
    %1813 = vmatprep.subr.mxu0 0.0
    %1814 = vmatpush1.msra.mxu0 %v663
    %1815 = vmatprep.subr.mxu0 0.0
    %1816 = vmatpush1.msra.mxu0 %v664
    %1817 = vmatprep.subr.mxu0 0.0
    %1818 = vmatpush1.msra.mxu0 %v665
    %1819 = vmatprep.subr.mxu0 0.0
    %1820 = vmatpush1.msra.mxu0 %v666
    %1821 = vmatprep.subr.mxu0 0.0
    %1822 = vmatpush1.msra.mxu0 0.0
    %1823 = vmatprep.subr.mxu0 0.0
    %1824 = vmatpush1.msra.mxu0 0.0
    %1825 = vmatprep.subr.mxu0 0.0
    %1826 = vmatpush1.msra.mxu0 0.0
    %1827 = vmatprep.subr.mxu0 0.0
    %1828 = vmatpush1.msra.mxu0 0.0
    %1829 = vmatprep.subr.mxu0 0.0
    %1830 = vmatpush1.msra.mxu0 0.0
    %1831 = vmatprep.subr.mxu0 0.0
    %1832 = vmatpush1.msra.mxu0 0.0
    %1833 = vmatprep.subr.mxu0 0.0
    %1834 = vmatpush1.msra.mxu0 0.0
    %1835 = vmatprep.subr.mxu0 0.0
    %1836 = vmatpush1.msra.mxu0 0.0
    %1837 = vmatprep.subr.mxu0 0.0
    %1838 = vmatpush1.msra.mxu0 0.0
    %1839 = vmatprep.subr.mxu0 0.0
    %1840 = vmatpush1.msra.mxu0 0.0
    %1841 = vmatprep.subr.mxu0 0.0
    %1842 = vmatpush1.msra.mxu0 0.0
    %1843 = vmatprep.subr.mxu0 0.0
    %1844 = vmatpush1.msra.mxu0 0.0
    %1845 = vmatprep.subr.mxu0 0.0
    %1846 = vmatpush1.msra.mxu0 0.0
    %1847 = vmatprep.subr.mxu0 0.0
    %1848 = vmatpush1.msra.mxu0 0.0
    %1849 = vmatprep.subr.mxu0 0.0
    %1850 = vmatpush1.msra.mxu0 0.0
    %1851 = vmatprep.subr.mxu0 0.0
    %1852 = vmatpush1.msra.mxu0 0.0
    %1853 = vmatprep.subr.mxu0 0.0
    %1854 = vmatpush1.msra.mxu0 0.0
    %1855 = vmatprep.subr.mxu0 0.0
    %1856 = vmatpush1.msra.mxu0 0.0
    %1857 = vmatprep.subr.mxu0 0.0
    %1858 = vmatpush1.msra.mxu0 0.0
    %1859 = vmatprep.subr.mxu0 0.0
    %1860 = vmatpush1.msra.mxu0 0.0
    %1861 = vmatprep.subr.mxu0 0.0
    %1862 = vmatpush1.msra.mxu0 0.0
    %1863 = vmatprep.subr.mxu0 0.0
    %1864 = vmatpush1.msra.mxu0 0.0
    %1865 = vmatprep.subr.mxu0 0.0
    %1866 = vmatpush1.msra.mxu0 0.0
    %1867 = vmatprep.subr.mxu0 0.0
    %1868 = vmatpush1.msra.mxu0 0.0
    %1869 = vmatprep.subr.mxu0 0.0
    %1870 = vmatpush1.msra.mxu0 0.0
    %1871 = vmatprep.subr.mxu0 0.0
    %1872 = vmatpush1.msra.mxu0 0.0
    %1873 = vmatprep.subr.mxu0 0.0
    %1874 = vmatpush1.msra.mxu0 0.0
    %1875 = vmatprep.subr.mxu0 0.0
    %1876 = vmatpush1.msra.mxu0 0.0
    %1877 = vmatprep.mubr.f32.mxu0 0.0
    %1878 = vmatmul.mubr.f32.gmra.mrb[0].mxu0 %v1811
    %v1879 = vpop.f32.mrb[0].mxu0
    %v1880 = vadd.f32 0.0, %v1879
    %v1881 = vpop.f32.mrb[0].mxu0
    %1882 = vdwg.mxu0
    %v1884 = vrot.slane %v1880, 4
    %v1886 = vadd.f32 %v651, %v1884
    %v1887 = vxor.u32 %v1808, 2147483648
    %v1888 = vmul.f32 %v1887, 1.442695
    %v1889 = vpow.pop %v1888
    %v1890 = vadd.f32 %v1889, 1.0
    %v1891 = vrcp.pop %v1890
    %v1892 = vmul.f32 1.0, %v1891
    %v1893 = vxor.u32 %v1886, 2147483648
    %v1894 = vmul.f32 %v1893, 1.442695
    %v1895 = vpow.pop %v1894
    %v1896 = vadd.f32 %v1895, 1.0
    %v1897 = vrcp.pop %v1896
    %v1898 = vmul.f32 1.0, %v1897
    %v1900 = vrot.slane %v1697, 6
    %v1902 = vmul.f32 %v1892, %v1900
    %v1903 = vtanh.pop %v1808
    %1905 = vrot.lane.b32.xlu0 %v1903, 32
    %v1906 = vpop.permute.xlu0 %1905
    %v1908 = vmul.f32 %v1892, %v1906
    %1910 = vrot.lane.b32.xlu0 %v1908, 32
    %v1911 = vpop.permute.xlu0 %1910
    %v1913 = vadd.f32 %v1902, %v1911
    %v1915 = vrot.slane %v1712, 2
    %v1917 = vmul.f32 %v1898, %v1915
    %v1918 = vtanh.pop %v1886
    %1920 = vrot.lane.b32.xlu0 %v1918, 32
    %v1921 = vpop.permute.xlu0 %1920
    %v1923 = vmul.f32 %v1898, %v1921
    %1925 = vrot.lane.b32.xlu0 %v1923, 32
    %v1926 = vpop.permute.xlu0 %1925
    %v1928 = vadd.f32 %v1917, %v1926
    %v1929 = vtanh.pop %v1913
    %1931 = vrot.lane.b32.xlu0 %v1929, 32
    %v1932 = vpop.permute.xlu0 %1931
    %v1934 = vmul.f32 %v1892, %v1932
    %v1935 = vtanh.pop %v1928
    %1937 = vrot.lane.b32.xlu0 %v1935, 32
    %v1938 = vpop.permute.xlu0 %1937
    %v1940 = vmul.f32 %v1898, %v1938
    %v1942 = vrot.slane %v1934, 2
    %v1944 = vadd.f32 %v1729, %v1942
    %v1946 = vrot.slane %v1940, 4
    %v1948 = vadd.f32 %v1944, %v1946
    %1949 = vrot.lane.b32.xlu0 %v1942, 64
    %v1950 = vpop.permute.xlu0 %1949
    %v1951 = vsel %vm27, %v1950, 0
    %1953 = vmatprep.subr.mxu0 0.0
    %1954 = vmatpush1.msra.mxu0 %v659
    %1955 = vmatprep.subr.mxu0 0.0
    %1956 = vmatpush1.msra.mxu0 %v660
    %1957 = vmatprep.subr.mxu0 0.0
    %1958 = vmatpush1.msra.mxu0 %v661
    %1959 = vmatprep.subr.mxu0 0.0
    %1960 = vmatpush1.msra.mxu0 %v662
    %1961 = vmatprep.subr.mxu0 0.0
    %1962 = vmatpush1.msra.mxu0 0.0
    %1963 = vmatprep.subr.mxu0 0.0
    %1964 = vmatpush1.msra.mxu0 0.0
    %1965 = vmatprep.subr.mxu0 0.0
    %1966 = vmatpush1.msra.mxu0 0.0
    %1967 = vmatprep.subr.mxu0 0.0
    %1968 = vmatpush1.msra.mxu0 0.0
    %1969 = vmatprep.subr.mxu0 0.0
    %1970 = vmatpush1.msra.mxu0 0.0
    %1971 = vmatprep.subr.mxu0 0.0
    %1972 = vmatpush1.msra.mxu0 0.0
    %1973 = vmatprep.subr.mxu0 0.0
    %1974 = vmatpush1.msra.mxu0 0.0
    %1975 = vmatprep.subr.mxu0 0.0
    %1976 = vmatpush1.msra.mxu0 0.0
    %1977 = vmatprep.subr.mxu0 0.0
    %1978 = vmatpush1.msra.mxu0 0.0
    %1979 = vmatprep.subr.mxu0 0.0
    %1980 = vmatpush1.msra.mxu0 0.0
    %1981 = vmatprep.subr.mxu0 0.0
    %1982 = vmatpush1.msra.mxu0 0.0
    %1983 = vmatprep.subr.mxu0 0.0
    %1984 = vmatpush1.msra.mxu0 0.0
    %1985 = vmatprep.subr.mxu0 0.0
    %1986 = vmatpush1.msra.mxu0 0.0
    %1987 = vmatprep.subr.mxu0 0.0
    %1988 = vmatpush1.msra.mxu0 0.0
    %1989 = vmatprep.subr.mxu0 0.0
    %1990 = vmatpush1.msra.mxu0 0.0
    %1991 = vmatprep.subr.mxu0 0.0
    %1992 = vmatpush1.msra.mxu0 0.0
    %1993 = vmatprep.subr.mxu0 0.0
    %1994 = vmatpush1.msra.mxu0 0.0
    %1995 = vmatprep.subr.mxu0 0.0
    %1996 = vmatpush1.msra.mxu0 0.0
    %1997 = vmatprep.subr.mxu0 0.0
    %1998 = vmatpush1.msra.mxu0 0.0
    %1999 = vmatprep.subr.mxu0 0.0
    %2000 = vmatpush1.msra.mxu0 0.0
    %2001 = vmatprep.subr.mxu0 0.0
    %2002 = vmatpush1.msra.mxu0 0.0
    %2003 = vmatprep.subr.mxu0 0.0
    %2004 = vmatpush1.msra.mxu0 0.0
    %2005 = vmatprep.subr.mxu0 0.0
    %2006 = vmatpush1.msra.mxu0 0.0
    %2007 = vmatprep.subr.mxu0 0.0
    %2008 = vmatpush1.msra.mxu0 0.0
    %2009 = vmatprep.subr.mxu0 0.0
    %2010 = vmatpush1.msra.mxu0 0.0
    %2011 = vmatprep.subr.mxu0 0.0
    %2012 = vmatpush1.msra.mxu0 0.0
    %2013 = vmatprep.subr.mxu0 0.0
    %2014 = vmatpush1.msra.mxu0 0.0
    %2015 = vmatprep.subr.mxu0 0.0
    %2016 = vmatpush1.msra.mxu0 0.0
    %2017 = vmatprep.mubr.f32.mxu0 0.0
    %2018 = vmatmul.mubr.f32.gmra.mrb[0].mxu0 %v1951
    %v2019 = vpop.f32.mrb[0].mxu0
    %v2020 = vadd.f32 0.0, %v2019
    %v2021 = vpop.f32.mrb[0].mxu0
    %2022 = vdwg.mxu0
    %v2024 = vrot.slane %v2020, 4
    %v2026 = vadd.f32 %v643, %v2024
    %2027 = vrot.lane.b32.xlu0 %v1946, 64
    %v2028 = vpop.permute.xlu0 %2027
    %v2029 = vsel %vm27, %v2028, 0
    %2031 = vmatprep.subr.mxu0 0.0
    %2032 = vmatpush1.msra.mxu0 %v663
    %2033 = vmatprep.subr.mxu0 0.0
    %2034 = vmatpush1.msra.mxu0 %v664
    %2035 = vmatprep.subr.mxu0 0.0
    %2036 = vmatpush1.msra.mxu0 %v665
    %2037 = vmatprep.subr.mxu0 0.0
    %2038 = vmatpush1.msra.mxu0 %v666
    %2039 = vmatprep.subr.mxu0 0.0
    %2040 = vmatpush1.msra.mxu0 0.0
    %2041 = vmatprep.subr.mxu0 0.0
    %2042 = vmatpush1.msra.mxu0 0.0
    %2043 = vmatprep.subr.mxu0 0.0
    %2044 = vmatpush1.msra.mxu0 0.0
    %2045 = vmatprep.subr.mxu0 0.0
    %2046 = vmatpush1.msra.mxu0 0.0
    %2047 = vmatprep.subr.mxu0 0.0
    %2048 = vmatpush1.msra.mxu0 0.0
    %2049 = vmatprep.subr.mxu0 0.0
    %2050 = vmatpush1.msra.mxu0 0.0
    %2051 = vmatprep.subr.mxu0 0.0
    %2052 = vmatpush1.msra.mxu0 0.0
    %2053 = vmatprep.subr.mxu0 0.0
    %2054 = vmatpush1.msra.mxu0 0.0
    %2055 = vmatprep.subr.mxu0 0.0
    %2056 = vmatpush1.msra.mxu0 0.0
    %2057 = vmatprep.subr.mxu0 0.0
    %2058 = vmatpush1.msra.mxu0 0.0
    %2059 = vmatprep.subr.mxu0 0.0
    %2060 = vmatpush1.msra.mxu0 0.0
    %2061 = vmatprep.subr.mxu0 0.0
    %2062 = vmatpush1.msra.mxu0 0.0
    %2063 = vmatprep.subr.mxu0 0.0
    %2064 = vmatpush1.msra.mxu0 0.0
    %2065 = vmatprep.subr.mxu0 0.0
    %2066 = vmatpush1.msra.mxu0 0.0
    %2067 = vmatprep.subr.mxu0 0.0
    %2068 = vmatpush1.msra.mxu0 0.0
    %2069 = vmatprep.subr.mxu0 0.0
    %2070 = vmatpush1.msra.mxu0 0.0
    %2071 = vmatprep.subr.mxu0 0.0
    %2072 = vmatpush1.msra.mxu0 0.0
    %2073 = vmatprep.subr.mxu0 0.0
    %2074 = vmatpush1.msra.mxu0 0.0
    %2075 = vmatprep.subr.mxu0 0.0
    %2076 = vmatpush1.msra.mxu0 0.0
    %2077 = vmatprep.subr.mxu0 0.0
    %2078 = vmatpush1.msra.mxu0 0.0
    %2079 = vmatprep.subr.mxu0 0.0
    %2080 = vmatpush1.msra.mxu0 0.0
    %2081 = vmatprep.subr.mxu0 0.0
    %2082 = vmatpush1.msra.mxu0 0.0
    %2083 = vmatprep.subr.mxu0 0.0
    %2084 = vmatpush1.msra.mxu0 0.0
    %2085 = vmatprep.subr.mxu0 0.0
    %2086 = vmatpush1.msra.mxu0 0.0
    %2087 = vmatprep.subr.mxu0 0.0
    %2088 = vmatpush1.msra.mxu0 0.0
    %2089 = vmatprep.subr.mxu0 0.0
    %2090 = vmatpush1.msra.mxu0 0.0
    %2091 = vmatprep.subr.mxu0 0.0
    %2092 = vmatpush1.msra.mxu0 0.0
    %2093 = vmatprep.subr.mxu0 0.0
    %2094 = vmatpush1.msra.mxu0 0.0
    %2095 = vmatprep.mubr.f32.mxu0 0.0
    %2096 = vmatmul.mubr.f32.gmra.mrb[0].mxu0 %v2029
    %v2097 = vpop.f32.mrb[0].mxu0
    %v2098 = vadd.f32 0.0, %v2097
    %v2099 = vpop.f32.mrb[0].mxu0
    %2100 = vdwg.mxu0
    %v2102 = vrot.slane %v2098, 6
    %v2104 = vadd.f32 %v651, %v2102
    %v2105 = vxor.u32 %v2026, 2147483648
    %v2106 = vmul.f32 %v2105, 1.442695
    %v2107 = vpow.pop %v2106
    %v2108 = vadd.f32 %v2107, 1.0
    %v2109 = vrcp.pop %v2108
    %v2110 = vmul.f32 1.0, %v2109
    %v2111 = vxor.u32 %v2104, 2147483648
    %v2112 = vmul.f32 %v2111, 1.442695
    %v2113 = vpow.pop %v2112
    %v2114 = vadd.f32 %v2113, 1.0
    %v2115 = vrcp.pop %v2114
    %v2116 = vmul.f32 1.0, %v2115
    %v2118 = vrot.slane %v1913, 6
    %v2120 = vmul.f32 %v2110, %v2118
    %v2121 = vtanh.pop %v2026
    %2123 = vrot.lane.b32.xlu0 %v2121, 32
    %v2124 = vpop.permute.xlu0 %2123
    %v2126 = vmul.f32 %v2110, %v2124
    %2128 = vrot.lane.b32.xlu0 %v2126, 32
    %v2129 = vpop.permute.xlu0 %2128
    %v2131 = vadd.f32 %v2120, %v2129
    %v2133 = vrot.slane %v1928, 2
    %v2135 = vmul.f32 %v2116, %v2133
    %v2136 = vtanh.pop %v2104
    %2138 = vrot.lane.b32.xlu0 %v2136, 32
    %v2139 = vpop.permute.xlu0 %2138
    %v2141 = vmul.f32 %v2116, %v2139
    %2143 = vrot.lane.b32.xlu0 %v2141, 32
    %v2144 = vpop.permute.xlu0 %2143
    %v2146 = vadd.f32 %v2135, %v2144
    %v2147 = vtanh.pop %v2131
    %2149 = vrot.lane.b32.xlu0 %v2147, 32
    %v2150 = vpop.permute.xlu0 %2149
    %v2152 = vmul.f32 %v2110, %v2150
    %v2153 = vtanh.pop %v2146
    %2155 = vrot.lane.b32.xlu0 %v2153, 32
    %v2156 = vpop.permute.xlu0 %2155
    %v2158 = vmul.f32 %v2116, %v2156
    %v2160 = vrot.slane %v2152, 4
    %v2162 = vadd.f32 %v1948, %v2160
    %v2164 = vrot.slane %v2158, 2
    %v2166 = vadd.f32 %v2162, %v2164
    %2167 = vrot.lane.b32.xlu0 %v2160, 64
    %v2168 = vpop.permute.xlu0 %2167
    %v2169 = vsel %vm27, %v2168, 0
    %2171 = vmatprep.subr.mxu0 0.0
    %2172 = vmatpush1.msra.mxu0 %v659
    %2173 = vmatprep.subr.mxu0 0.0
    %2174 = vmatpush1.msra.mxu0 %v660
    %2175 = vmatprep.subr.mxu0 0.0
    %2176 = vmatpush1.msra.mxu0 %v661
    %2177 = vmatprep.subr.mxu0 0.0
    %2178 = vmatpush1.msra.mxu0 %v662
    %2179 = vmatprep.subr.mxu0 0.0
    %2180 = vmatpush1.msra.mxu0 0.0
    %2181 = vmatprep.subr.mxu0 0.0
    %2182 = vmatpush1.msra.mxu0 0.0
    %2183 = vmatprep.subr.mxu0 0.0
    %2184 = vmatpush1.msra.mxu0 0.0
    %2185 = vmatprep.subr.mxu0 0.0
    %2186 = vmatpush1.msra.mxu0 0.0
    %2187 = vmatprep.subr.mxu0 0.0
    %2188 = vmatpush1.msra.mxu0 0.0
    %2189 = vmatprep.subr.mxu0 0.0
    %2190 = vmatpush1.msra.mxu0 0.0
    %2191 = vmatprep.subr.mxu0 0.0
    %2192 = vmatpush1.msra.mxu0 0.0
    %2193 = vmatprep.subr.mxu0 0.0
    %2194 = vmatpush1.msra.mxu0 0.0
    %2195 = vmatprep.subr.mxu0 0.0
    %2196 = vmatpush1.msra.mxu0 0.0
    %2197 = vmatprep.subr.mxu0 0.0
    %2198 = vmatpush1.msra.mxu0 0.0
    %2199 = vmatprep.subr.mxu0 0.0
    %2200 = vmatpush1.msra.mxu0 0.0
    %2201 = vmatprep.subr.mxu0 0.0
    %2202 = vmatpush1.msra.mxu0 0.0
    %2203 = vmatprep.subr.mxu0 0.0
    %2204 = vmatpush1.msra.mxu0 0.0
    %2205 = vmatprep.subr.mxu0 0.0
    %2206 = vmatpush1.msra.mxu0 0.0
    %2207 = vmatprep.subr.mxu0 0.0
    %2208 = vmatpush1.msra.mxu0 0.0
    %2209 = vmatprep.subr.mxu0 0.0
    %2210 = vmatpush1.msra.mxu0 0.0
    %2211 = vmatprep.subr.mxu0 0.0
    %2212 = vmatpush1.msra.mxu0 0.0
    %2213 = vmatprep.subr.mxu0 0.0
    %2214 = vmatpush1.msra.mxu0 0.0
    %2215 = vmatprep.subr.mxu0 0.0
    %2216 = vmatpush1.msra.mxu0 0.0
    %2217 = vmatprep.subr.mxu0 0.0
    %2218 = vmatpush1.msra.mxu0 0.0
    %2219 = vmatprep.subr.mxu0 0.0
    %2220 = vmatpush1.msra.mxu0 0.0
    %2221 = vmatprep.subr.mxu0 0.0
    %2222 = vmatpush1.msra.mxu0 0.0
    %2223 = vmatprep.subr.mxu0 0.0
    %2224 = vmatpush1.msra.mxu0 0.0
    %2225 = vmatprep.subr.mxu0 0.0
    %2226 = vmatpush1.msra.mxu0 0.0
    %2227 = vmatprep.subr.mxu0 0.0
    %2228 = vmatpush1.msra.mxu0 0.0
    %2229 = vmatprep.subr.mxu0 0.0
    %2230 = vmatpush1.msra.mxu0 0.0
    %2231 = vmatprep.subr.mxu0 0.0
    %2232 = vmatpush1.msra.mxu0 0.0
    %2233 = vmatprep.subr.mxu0 0.0
    %2234 = vmatpush1.msra.mxu0 0.0
    %2235 = vmatprep.mubr.f32.mxu0 0.0
    %2236 = vmatmul.mubr.f32.gmra.mrb[0].mxu0 %v2169
    %v2237 = vpop.f32.mrb[0].mxu0
    %v2238 = vadd.f32 0.0, %v2237
    %v2239 = vpop.f32.mrb[0].mxu0
    %2240 = vdwg.mxu0
    %v2242 = vrot.slane %v2238, 2
    %v2244 = vadd.f32 %v643, %v2242
    %2245 = vrot.lane.b32.xlu0 %v2164, 64
    %v2246 = vpop.permute.xlu0 %2245
    %v2247 = vsel %vm27, %v2246, 0
    %2249 = vmatprep.subr.mxu0 0.0
    %2250 = vmatpush1.msra.mxu0 %v663
    %2251 = vmatprep.subr.mxu0 0.0
    %2252 = vmatpush1.msra.mxu0 %v664
    %2253 = vmatprep.subr.mxu0 0.0
    %2254 = vmatpush1.msra.mxu0 %v665
    %2255 = vmatprep.subr.mxu0 0.0
    %2256 = vmatpush1.msra.mxu0 %v666
    %2257 = vmatprep.subr.mxu0 0.0
    %2258 = vmatpush1.msra.mxu0 0.0
    %2259 = vmatprep.subr.mxu0 0.0
    %2260 = vmatpush1.msra.mxu0 0.0
    %2261 = vmatprep.subr.mxu0 0.0
    %2262 = vmatpush1.msra.mxu0 0.0
    %2263 = vmatprep.subr.mxu0 0.0
    %2264 = vmatpush1.msra.mxu0 0.0
    %2265 = vmatprep.subr.mxu0 0.0
    %2266 = vmatpush1.msra.mxu0 0.0
    %2267 = vmatprep.subr.mxu0 0.0
    %2268 = vmatpush1.msra.mxu0 0.0
    %2269 = vmatprep.subr.mxu0 0.0
    %2270 = vmatpush1.msra.mxu0 0.0
    %2271 = vmatprep.subr.mxu0 0.0
    %2272 = vmatpush1.msra.mxu0 0.0
    %2273 = vmatprep.subr.mxu0 0.0
    %2274 = vmatpush1.msra.mxu0 0.0
    %2275 = vmatprep.subr.mxu0 0.0
    %2276 = vmatpush1.msra.mxu0 0.0
    %2277 = vmatprep.subr.mxu0 0.0
    %2278 = vmatpush1.msra.mxu0 0.0
    %2279 = vmatprep.subr.mxu0 0.0
    %2280 = vmatpush1.msra.mxu0 0.0
    %2281 = vmatprep.subr.mxu0 0.0
    %2282 = vmatpush1.msra.mxu0 0.0
    %2283 = vmatprep.subr.mxu0 0.0
    %2284 = vmatpush1.msra.mxu0 0.0
    %2285 = vmatprep.subr.mxu0 0.0
    %2286 = vmatpush1.msra.mxu0 0.0
    %2287 = vmatprep.subr.mxu0 0.0
    %2288 = vmatpush1.msra.mxu0 0.0
    %2289 = vmatprep.subr.mxu0 0.0
    %2290 = vmatpush1.msra.mxu0 0.0
    %2291 = vmatprep.subr.mxu0 0.0
    %2292 = vmatpush1.msra.mxu0 0.0
    %2293 = vmatprep.subr.mxu0 0.0
    %2294 = vmatpush1.msra.mxu0 0.0
    %2295 = vmatprep.subr.mxu0 0.0
    %2296 = vmatpush1.msra.mxu0 0.0
    %2297 = vmatprep.subr.mxu0 0.0
    %2298 = vmatpush1.msra.mxu0 0.0
    %2299 = vmatprep.subr.mxu0 0.0
    %2300 = vmatpush1.msra.mxu0 0.0
    %2301 = vmatprep.subr.mxu0 0.0
    %2302 = vmatpush1.msra.mxu0 0.0
    %2303 = vmatprep.subr.mxu0 0.0
    %2304 = vmatpush1.msra.mxu0 0.0
    %2305 = vmatprep.subr.mxu0 0.0
    %2306 = vmatpush1.msra.mxu0 0.0
    %2307 = vmatprep.subr.mxu0 0.0
    %2308 = vmatpush1.msra.mxu0 0.0
    %2309 = vmatprep.subr.mxu0 0.0
    %2310 = vmatpush1.msra.mxu0 0.0
    %2311 = vmatprep.subr.mxu0 0.0
    %2312 = vmatpush1.msra.mxu0 0.0
    %2313 = vmatprep.mubr.f32.mxu0 0.0
    %2314 = vmatmul.mubr.f32.gmra.mrb[0].mxu0 %v2247
    %v2315 = vpop.f32.mrb[0].mxu0
    %v2316 = vadd.f32 0.0, %v2315
    %v2317 = vpop.f32.mrb[0].mxu0
    %2318 = vdwg.mxu0
    %v2319 = vadd.f32 %v651, %v2316
    %v2320 = vxor.u32 %v2244, 2147483648
    %v2321 = vmul.f32 %v2320, 1.442695
    %v2322 = vpow.pop %v2321
    %v2323 = vadd.f32 %v2322, 1.0
    %v2324 = vrcp.pop %v2323
    %v2325 = vmul.f32 1.0, %v2324
    %v2326 = vxor.u32 %v2319, 2147483648
    %v2327 = vmul.f32 %v2326, 1.442695
    %v2328 = vpow.pop %v2327
    %v2329 = vadd.f32 %v2328, 1.0
    %v2330 = vrcp.pop %v2329
    %v2331 = vmul.f32 1.0, %v2330
    %v2333 = vrot.slane %v2131, 6
    %v2335 = vmul.f32 %v2325, %v2333
    %v2336 = vtanh.pop %v2244
    %2338 = vrot.lane.b32.xlu0 %v2336, 32
    %v2339 = vpop.permute.xlu0 %2338
    %v2341 = vmul.f32 %v2325, %v2339
    %2343 = vrot.lane.b32.xlu0 %v2341, 32
    %v2344 = vpop.permute.xlu0 %2343
    %v2346 = vadd.f32 %v2335, %v2344
    %v2348 = vrot.slane %v2146, 2
    %v2350 = vmul.f32 %v2331, %v2348
    %v2351 = vtanh.pop %v2319
    %2353 = vrot.lane.b32.xlu0 %v2351, 32
    %v2354 = vpop.permute.xlu0 %2353
    %v2356 = vmul.f32 %v2331, %v2354
    %2358 = vrot.lane.b32.xlu0 %v2356, 32
    %v2359 = vpop.permute.xlu0 %2358
    %v2361 = vadd.f32 %v2350, %v2359
    %v2362 = vtanh.pop %v2346
    %2364 = vrot.lane.b32.xlu0 %v2362, 32
    %v2365 = vpop.permute.xlu0 %2364
    %v2367 = vmul.f32 %v2325, %v2365
    %v2368 = vtanh.pop %v2361
    %2370 = vrot.lane.b32.xlu0 %v2368, 32
    %v2371 = vpop.permute.xlu0 %2370
    %v2373 = vmul.f32 %v2331, %v2371
    %v2375 = vrot.slane %v2367, 6
    %v2377 = vadd.f32 %v2166, %v2375
    %v2378 = vadd.f32 %v2377, %v2373
    %2379 = vrot.lane.b32.xlu0 %v2375, 64
    %v2380 = vpop.permute.xlu0 %2379
    %v2381 = vsel %vm27, %v2380, 0
    %2383 = vmatprep.subr.mxu0 0.0
    %2384 = vmatpush1.msra.mxu0 %v659
    %2385 = vmatprep.subr.mxu0 0.0
    %2386 = vmatpush1.msra.mxu0 %v660
    %2387 = vmatprep.subr.mxu0 0.0
    %2388 = vmatpush1.msra.mxu0 %v661
    %2389 = vmatprep.subr.mxu0 0.0
    %2390 = vmatpush1.msra.mxu0 %v662
    %2391 = vmatprep.subr.mxu0 0.0
    %2392 = vmatpush1.msra.mxu0 0.0
    %2393 = vmatprep.subr.mxu0 0.0
    %2394 = vmatpush1.msra.mxu0 0.0
    %2395 = vmatprep.subr.mxu0 0.0
    %2396 = vmatpush1.msra.mxu0 0.0
    %2397 = vmatprep.subr.mxu0 0.0
    %2398 = vmatpush1.msra.mxu0 0.0
    %2399 = vmatprep.subr.mxu0 0.0
    %2400 = vmatpush1.msra.mxu0 0.0
    %2401 = vmatprep.subr.mxu0 0.0
    %2402 = vmatpush1.msra.mxu0 0.0
    %2403 = vmatprep.subr.mxu0 0.0
    %2404 = vmatpush1.msra.mxu0 0.0
    %2405 = vmatprep.subr.mxu0 0.0
    %2406 = vmatpush1.msra.mxu0 0.0
    %2407 = vmatprep.subr.mxu0 0.0
    %2408 = vmatpush1.msra.mxu0 0.0
    %2409 = vmatprep.subr.mxu0 0.0
    %2410 = vmatpush1.msra.mxu0 0.0
    %2411 = vmatprep.subr.mxu0 0.0
    %2412 = vmatpush1.msra.mxu0 0.0
    %2413 = vmatprep.subr.mxu0 0.0
    %2414 = vmatpush1.msra.mxu0 0.0
    %2415 = vmatprep.subr.mxu0 0.0
    %2416 = vmatpush1.msra.mxu0 0.0
    %2417 = vmatprep.subr.mxu0 0.0
    %2418 = vmatpush1.msra.mxu0 0.0
    %2419 = vmatprep.subr.mxu0 0.0
    %2420 = vmatpush1.msra.mxu0 0.0
    %2421 = vmatprep.subr.mxu0 0.0
    %2422 = vmatpush1.msra.mxu0 0.0
    %2423 = vmatprep.subr.mxu0 0.0
    %2424 = vmatpush1.msra.mxu0 0.0
    %2425 = vmatprep.subr.mxu0 0.0
    %2426 = vmatpush1.msra.mxu0 0.0
    %2427 = vmatprep.subr.mxu0 0.0
    %2428 = vmatpush1.msra.mxu0 0.0
    %2429 = vmatprep.subr.mxu0 0.0
    %2430 = vmatpush1.msra.mxu0 0.0
    %2431 = vmatprep.subr.mxu0 0.0
    %2432 = vmatpush1.msra.mxu0 0.0
    %2433 = vmatprep.subr.mxu0 0.0
    %2434 = vmatpush1.msra.mxu0 0.0
    %2435 = vmatprep.subr.mxu0 0.0
    %2436 = vmatpush1.msra.mxu0 0.0
    %2437 = vmatprep.subr.mxu0 0.0
    %2438 = vmatpush1.msra.mxu0 0.0
    %2439 = vmatprep.subr.mxu0 0.0
    %2440 = vmatpush1.msra.mxu0 0.0
    %2441 = vmatprep.subr.mxu0 0.0
    %2442 = vmatpush1.msra.mxu0 0.0
    %2443 = vmatprep.subr.mxu0 0.0
    %2444 = vmatpush1.msra.mxu0 0.0
    %2445 = vmatprep.subr.mxu0 0.0
    %2446 = vmatpush1.msra.mxu0 0.0
    %2447 = vmatprep.mubr.f32.mxu0 0.0
    %2448 = vmatmul.mubr.f32.gmra.mrb[0].mxu0 %v2381
    %v2449 = vpop.f32.mrb[0].mxu0
    %v2450 = vadd.f32 0.0, %v2449
    %v2451 = vpop.f32.mrb[0].mxu0
    %2452 = vdwg.mxu0
    %v2453 = vadd.f32 %v649, %v2450
    %2455 = vrot.lane.b32.xlu0 %v2373, 64
    %v2456 = vpop.permute.xlu0 %2455
    %v2457 = vsel %vm27, %v2456, 0
    %2459 = vmatprep.subr.mxu0 0.0
    %2460 = vmatpush1.msra.mxu0 %v663
    %2461 = vmatprep.subr.mxu0 0.0
    %2462 = vmatpush1.msra.mxu0 %v664
    %2463 = vmatprep.subr.mxu0 0.0
    %2464 = vmatpush1.msra.mxu0 %v665
    %2465 = vmatprep.subr.mxu0 0.0
    %2466 = vmatpush1.msra.mxu0 %v666
    %2467 = vmatprep.subr.mxu0 0.0
    %2468 = vmatpush1.msra.mxu0 0.0
    %2469 = vmatprep.subr.mxu0 0.0
    %2470 = vmatpush1.msra.mxu0 0.0
    %2471 = vmatprep.subr.mxu0 0.0
    %2472 = vmatpush1.msra.mxu0 0.0
    %2473 = vmatprep.subr.mxu0 0.0
    %2474 = vmatpush1.msra.mxu0 0.0
    %2475 = vmatprep.subr.mxu0 0.0
    %2476 = vmatpush1.msra.mxu0 0.0
    %2477 = vmatprep.subr.mxu0 0.0
    %2478 = vmatpush1.msra.mxu0 0.0
    %2479 = vmatprep.subr.mxu0 0.0
    %2480 = vmatpush1.msra.mxu0 0.0
    %2481 = vmatprep.subr.mxu0 0.0
    %2482 = vmatpush1.msra.mxu0 0.0
    %2483 = vmatprep.subr.mxu0 0.0
    %2484 = vmatpush1.msra.mxu0 0.0
    %2485 = vmatprep.subr.mxu0 0.0
    %2486 = vmatpush1.msra.mxu0 0.0
    %2487 = vmatprep.subr.mxu0 0.0
    %2488 = vmatpush1.msra.mxu0 0.0
    %2489 = vmatprep.subr.mxu0 0.0
    %2490 = vmatpush1.msra.mxu0 0.0
    %2491 = vmatprep.subr.mxu0 0.0
    %2492 = vmatpush1.msra.mxu0 0.0
    %2493 = vmatprep.subr.mxu0 0.0
    %2494 = vmatpush1.msra.mxu0 0.0
    %2495 = vmatprep.subr.mxu0 0.0
    %2496 = vmatpush1.msra.mxu0 0.0
    %2497 = vmatprep.subr.mxu0 0.0
    %2498 = vmatpush1.msra.mxu0 0.0
    %2499 = vmatprep.subr.mxu0 0.0
    %2500 = vmatpush1.msra.mxu0 0.0
    %2501 = vmatprep.subr.mxu0 0.0
    %2502 = vmatpush1.msra.mxu0 0.0
    %2503 = vmatprep.subr.mxu0 0.0
    %2504 = vmatpush1.msra.mxu0 0.0
    %2505 = vmatprep.subr.mxu0 0.0
    %2506 = vmatpush1.msra.mxu0 0.0
    %2507 = vmatprep.subr.mxu0 0.0
    %2508 = vmatpush1.msra.mxu0 0.0
    %2509 = vmatprep.subr.mxu0 0.0
    %2510 = vmatpush1.msra.mxu0 0.0
    %2511 = vmatprep.subr.mxu0 0.0
    %2512 = vmatpush1.msra.mxu0 0.0
    %2513 = vmatprep.subr.mxu0 0.0
    %2514 = vmatpush1.msra.mxu0 0.0
    %2515 = vmatprep.subr.mxu0 0.0
    %2516 = vmatpush1.msra.mxu0 0.0
    %2517 = vmatprep.subr.mxu0 0.0
    %2518 = vmatpush1.msra.mxu0 0.0
    %2519 = vmatprep.subr.mxu0 0.0
    %2520 = vmatpush1.msra.mxu0 0.0
    %2521 = vmatprep.subr.mxu0 0.0
    %2522 = vmatpush1.msra.mxu0 0.0
    %2523 = vmatprep.mubr.f32.mxu0 0.0
    %2524 = vmatmul.mubr.f32.gmra.mrb[0].mxu0 %v2457
    %v2525 = vpop.f32.mrb[0].mxu0
    %v2526 = vadd.f32 0.0, %v2525
    %v2527 = vpop.f32.mrb[0].mxu0
    %2528 = vdwg.mxu0
    %v2530 = vrot.slane %v2526, 2
    %v2532 = vadd.f32 %v645, %v2530
    %v2533 = vxor.u32 %v2453, 2147483648
    %v2534 = vmul.f32 %v2533, 1.442695
    %v2535 = vpow.pop %v2534
    %v2536 = vadd.f32 %v2535, 1.0
    %v2537 = vrcp.pop %v2536
    %v2538 = vmul.f32 1.0, %v2537
    %v2539 = vxor.u32 %v2532, 2147483648
    %v2540 = vmul.f32 %v2539, 1.442695
    %v2541 = vpow.pop %v2540
    %v2542 = vadd.f32 %v2541, 1.0
    %v2543 = vrcp.pop %v2542
    %v2544 = vmul.f32 1.0, %v2543
    %v2546 = vrot.slane %v2346, 6
    %v2548 = vmul.f32 %v2538, %v2546
    %v2549 = vtanh.pop %v2453
    %2551 = vrot.lane.b32.xlu0 %v2549, 32
    %v2552 = vpop.permute.xlu0 %2551
    %v2554 = vmul.f32 %v2538, %v2552
    %2556 = vrot.lane.b32.xlu0 %v2554, 32
    %v2557 = vpop.permute.xlu0 %2556
    %v2559 = vadd.f32 %v2548, %v2557
    %v2561 = vrot.slane %v2361, 2
    %v2563 = vmul.f32 %v2544, %v2561
    %v2564 = vtanh.pop %v2532
    %2566 = vrot.lane.b32.xlu0 %v2564, 32
    %v2567 = vpop.permute.xlu0 %2566
    %v2569 = vmul.f32 %v2544, %v2567
    %2571 = vrot.lane.b32.xlu0 %v2569, 32
    %v2572 = vpop.permute.xlu0 %2571
    %v2574 = vadd.f32 %v2563, %v2572
    %v2575 = vtanh.pop %v2559
    %2577 = vrot.lane.b32.xlu0 %v2575, 32
    %v2578 = vpop.permute.xlu0 %2577
    %v2580 = vmul.f32 %v2538, %v2578
    %v2581 = vtanh.pop %v2574
    %2583 = vrot.lane.b32.xlu0 %v2581, 32
    %v2584 = vpop.permute.xlu0 %2583
    %v2586 = vmul.f32 %v2544, %v2584
    %v2587 = vadd.f32 %v2378, %v2580
    %v2589 = vrot.slane %v2586, 6
    %v2591 = vadd.f32 %v2587, %v2589
    %2593 = vrot.lane.b32.xlu0 %v2580, 64
    %v2594 = vpop.permute.xlu0 %2593
    %v2595 = vsel %vm27, %v2594, 0
    %2597 = vmatprep.subr.mxu0 0.0
    %2598 = vmatpush1.msra.mxu0 %v659
    %2599 = vmatprep.subr.mxu0 0.0
    %2600 = vmatpush1.msra.mxu0 %v660
    %2601 = vmatprep.subr.mxu0 0.0
    %2602 = vmatpush1.msra.mxu0 %v661
    %2603 = vmatprep.subr.mxu0 0.0
    %2604 = vmatpush1.msra.mxu0 %v662
    %2605 = vmatprep.subr.mxu0 0.0
    %2606 = vmatpush1.msra.mxu0 0.0
    %2607 = vmatprep.subr.mxu0 0.0
    %2608 = vmatpush1.msra.mxu0 0.0
    %2609 = vmatprep.subr.mxu0 0.0
    %2610 = vmatpush1.msra.mxu0 0.0
    %2611 = vmatprep.subr.mxu0 0.0
    %2612 = vmatpush1.msra.mxu0 0.0
    %2613 = vmatprep.subr.mxu0 0.0
    %2614 = vmatpush1.msra.mxu0 0.0
    %2615 = vmatprep.subr.mxu0 0.0
    %2616 = vmatpush1.msra.mxu0 0.0
    %2617 = vmatprep.subr.mxu0 0.0
    %2618 = vmatpush1.msra.mxu0 0.0
    %2619 = vmatprep.subr.mxu0 0.0
    %2620 = vmatpush1.msra.mxu0 0.0
    %2621 = vmatprep.subr.mxu0 0.0
    %2622 = vmatpush1.msra.mxu0 0.0
    %2623 = vmatprep.subr.mxu0 0.0
    %2624 = vmatpush1.msra.mxu0 0.0
    %2625 = vmatprep.subr.mxu0 0.0
    %2626 = vmatpush1.msra.mxu0 0.0
    %2627 = vmatprep.subr.mxu0 0.0
    %2628 = vmatpush1.msra.mxu0 0.0
    %2629 = vmatprep.subr.mxu0 0.0
    %2630 = vmatpush1.msra.mxu0 0.0
    %2631 = vmatprep.subr.mxu0 0.0
    %2632 = vmatpush1.msra.mxu0 0.0
    %2633 = vmatprep.subr.mxu0 0.0
    %2634 = vmatpush1.msra.mxu0 0.0
    %2635 = vmatprep.subr.mxu0 0.0
    %2636 = vmatpush1.msra.mxu0 0.0
    %2637 = vmatprep.subr.mxu0 0.0
    %2638 = vmatpush1.msra.mxu0 0.0
    %2639 = vmatprep.subr.mxu0 0.0
    %2640 = vmatpush1.msra.mxu0 0.0
    %2641 = vmatprep.subr.mxu0 0.0
    %2642 = vmatpush1.msra.mxu0 0.0
    %2643 = vmatprep.subr.mxu0 0.0
    %2644 = vmatpush1.msra.mxu0 0.0
    %2645 = vmatprep.subr.mxu0 0.0
    %2646 = vmatpush1.msra.mxu0 0.0
    %2647 = vmatprep.subr.mxu0 0.0
    %2648 = vmatpush1.msra.mxu0 0.0
    %2649 = vmatprep.subr.mxu0 0.0
    %2650 = vmatpush1.msra.mxu0 0.0
    %2651 = vmatprep.subr.mxu0 0.0
    %2652 = vmatpush1.msra.mxu0 0.0
    %2653 = vmatprep.subr.mxu0 0.0
    %2654 = vmatpush1.msra.mxu0 0.0
    %2655 = vmatprep.subr.mxu0 0.0
    %2656 = vmatpush1.msra.mxu0 0.0
    %2657 = vmatprep.subr.mxu0 0.0
    %2658 = vmatpush1.msra.mxu0 0.0
    %2659 = vmatprep.subr.mxu0 0.0
    %2660 = vmatpush1.msra.mxu0 0.0
    %2661 = vmatprep.mubr.f32.mxu0 0.0
    %2662 = vmatmul.mubr.f32.gmra.mrb[0].mxu0 %v2595
    %v2663 = vpop.f32.mrb[0].mxu0
    %v2664 = vadd.f32 0.0, %v2663
    %v2665 = vpop.f32.mrb[0].mxu0
    %2666 = vdwg.mxu0
    %v2668 = vrot.slane %v2664, 6
    %v2670 = vadd.f32 %v649, %v2668
    %2671 = vrot.lane.b32.xlu0 %v2589, 64
    %v2672 = vpop.permute.xlu0 %2671
    %v2673 = vsel %vm27, %v2672, 0
    %2675 = vmatprep.subr.mxu0 0.0
    %2676 = vmatpush1.msra.mxu0 %v663
    %2677 = vmatprep.subr.mxu0 0.0
    %2678 = vmatpush1.msra.mxu0 %v664
    %2679 = vmatprep.subr.mxu0 0.0
    %2680 = vmatpush1.msra.mxu0 %v665
    %2681 = vmatprep.subr.mxu0 0.0
    %2682 = vmatpush1.msra.mxu0 %v666
    %2683 = vmatprep.subr.mxu0 0.0
    %2684 = vmatpush1.msra.mxu0 0.0
    %2685 = vmatprep.subr.mxu0 0.0
    %2686 = vmatpush1.msra.mxu0 0.0
    %2687 = vmatprep.subr.mxu0 0.0
    %2688 = vmatpush1.msra.mxu0 0.0
    %2689 = vmatprep.subr.mxu0 0.0
    %2690 = vmatpush1.msra.mxu0 0.0
    %2691 = vmatprep.subr.mxu0 0.0
    %2692 = vmatpush1.msra.mxu0 0.0
    %2693 = vmatprep.subr.mxu0 0.0
    %2694 = vmatpush1.msra.mxu0 0.0
    %2695 = vmatprep.subr.mxu0 0.0
    %2696 = vmatpush1.msra.mxu0 0.0
    %2697 = vmatprep.subr.mxu0 0.0
    %2698 = vmatpush1.msra.mxu0 0.0
    %2699 = vmatprep.subr.mxu0 0.0
    %2700 = vmatpush1.msra.mxu0 0.0
    %2701 = vmatprep.subr.mxu0 0.0
    %2702 = vmatpush1.msra.mxu0 0.0
    %2703 = vmatprep.subr.mxu0 0.0
    %2704 = vmatpush1.msra.mxu0 0.0
    %2705 = vmatprep.subr.mxu0 0.0
    %2706 = vmatpush1.msra.mxu0 0.0
    %2707 = vmatprep.subr.mxu0 0.0
    %2708 = vmatpush1.msra.mxu0 0.0
    %2709 = vmatprep.subr.mxu0 0.0
    %2710 = vmatpush1.msra.mxu0 0.0
    %2711 = vmatprep.subr.mxu0 0.0
    %2712 = vmatpush1.msra.mxu0 0.0
    %2713 = vmatprep.subr.mxu0 0.0
    %2714 = vmatpush1.msra.mxu0 0.0
    %2715 = vmatprep.subr.mxu0 0.0
    %2716 = vmatpush1.msra.mxu0 0.0
    %2717 = vmatprep.subr.mxu0 0.0
    %2718 = vmatpush1.msra.mxu0 0.0
    %2719 = vmatprep.subr.mxu0 0.0
    %2720 = vmatpush1.msra.mxu0 0.0
    %2721 = vmatprep.subr.mxu0 0.0
    %2722 = vmatpush1.msra.mxu0 0.0
    %2723 = vmatprep.subr.mxu0 0.0
    %2724 = vmatpush1.msra.mxu0 0.0
    %2725 = vmatprep.subr.mxu0 0.0
    %2726 = vmatpush1.msra.mxu0 0.0
    %2727 = vmatprep.subr.mxu0 0.0
    %2728 = vmatpush1.msra.mxu0 0.0
    %2729 = vmatprep.subr.mxu0 0.0
    %2730 = vmatpush1.msra.mxu0 0.0
    %2731 = vmatprep.subr.mxu0 0.0
    %2732 = vmatpush1.msra.mxu0 0.0
    %2733 = vmatprep.subr.mxu0 0.0
    %2734 = vmatpush1.msra.mxu0 0.0
    %2735 = vmatprep.subr.mxu0 0.0
    %2736 = vmatpush1.msra.mxu0 0.0
    %2737 = vmatprep.subr.mxu0 0.0
    %2738 = vmatpush1.msra.mxu0 0.0
    %2739 = vmatprep.mubr.f32.mxu0 0.0
    %2740 = vmatmul.mubr.f32.gmra.mrb[0].mxu0 %v2673
    %v2741 = vpop.f32.mrb[0].mxu0
    %v2742 = vadd.f32 0.0, %v2741
    %v2743 = vpop.f32.mrb[0].mxu0
    %2744 = vdwg.mxu0
    %v2746 = vrot.slane %v2742, 4
    %v2748 = vadd.f32 %v645, %v2746
    %v2749 = vxor.u32 %v2670, 2147483648
    %v2750 = vmul.f32 %v2749, 1.442695
    %v2751 = vpow.pop %v2750
    %v2752 = vadd.f32 %v2751, 1.0
    %v2753 = vrcp.pop %v2752
    %v2754 = vmul.f32 1.0, %v2753
    %v2755 = vxor.u32 %v2748, 2147483648
    %v2756 = vmul.f32 %v2755, 1.442695
    %v2757 = vpow.pop %v2756
    %v2758 = vadd.f32 %v2757, 1.0
    %v2759 = vrcp.pop %v2758
    %v2760 = vmul.f32 1.0, %v2759
    %v2762 = vrot.slane %v2559, 6
    %v2764 = vmul.f32 %v2754, %v2762
    %v2765 = vtanh.pop %v2670
    %2767 = vrot.lane.b32.xlu0 %v2765, 32
    %v2768 = vpop.permute.xlu0 %2767
    %v2770 = vmul.f32 %v2754, %v2768
    %2772 = vrot.lane.b32.xlu0 %v2770, 32
    %v2773 = vpop.permute.xlu0 %2772
    %v2775 = vadd.f32 %v2764, %v2773
    %v2777 = vrot.slane %v2574, 2
    %v2779 = vmul.f32 %v2760, %v2777
    %v2780 = vtanh.pop %v2748
    %2782 = vrot.lane.b32.xlu0 %v2780, 32
    %v2783 = vpop.permute.xlu0 %2782
    %v2785 = vmul.f32 %v2760, %v2783
    %2787 = vrot.lane.b32.xlu0 %v2785, 32
    %v2788 = vpop.permute.xlu0 %2787
    %v2790 = vadd.f32 %v2779, %v2788
    %v2791 = vtanh.pop %v2775
    %2793 = vrot.lane.b32.xlu0 %v2791, 32
    %v2794 = vpop.permute.xlu0 %2793
    %v2796 = vmul.f32 %v2754, %v2794
    %v2797 = vtanh.pop %v2790
    %2799 = vrot.lane.b32.xlu0 %v2797, 32
    %v2800 = vpop.permute.xlu0 %2799
    %v2802 = vmul.f32 %v2760, %v2800
    %v2804 = vrot.slane %v2796, 2
    %v2806 = vadd.f32 %v2591, %v2804
    %v2808 = vrot.slane %v2802, 4
    %v2810 = vadd.f32 %v2806, %v2808
    %2811 = vrot.lane.b32.xlu0 %v2804, 64
    %v2812 = vpop.permute.xlu0 %2811
    %v2813 = vsel %vm27, %v2812, 0
    %2815 = vmatprep.subr.mxu0 0.0
    %2816 = vmatpush1.msra.mxu0 %v659
    %2817 = vmatprep.subr.mxu0 0.0
    %2818 = vmatpush1.msra.mxu0 %v660
    %2819 = vmatprep.subr.mxu0 0.0
    %2820 = vmatpush1.msra.mxu0 %v661
    %2821 = vmatprep.subr.mxu0 0.0
    %2822 = vmatpush1.msra.mxu0 %v662
    %2823 = vmatprep.subr.mxu0 0.0
    %2824 = vmatpush1.msra.mxu0 0.0
    %2825 = vmatprep.subr.mxu0 0.0
    %2826 = vmatpush1.msra.mxu0 0.0
    %2827 = vmatprep.subr.mxu0 0.0
    %2828 = vmatpush1.msra.mxu0 0.0
    %2829 = vmatprep.subr.mxu0 0.0
    %2830 = vmatpush1.msra.mxu0 0.0
    %2831 = vmatprep.subr.mxu0 0.0
    %2832 = vmatpush1.msra.mxu0 0.0
    %2833 = vmatprep.subr.mxu0 0.0
    %2834 = vmatpush1.msra.mxu0 0.0
    %2835 = vmatprep.subr.mxu0 0.0
    %2836 = vmatpush1.msra.mxu0 0.0
    %2837 = vmatprep.subr.mxu0 0.0
    %2838 = vmatpush1.msra.mxu0 0.0
    %2839 = vmatprep.subr.mxu0 0.0
    %2840 = vmatpush1.msra.mxu0 0.0
    %2841 = vmatprep.subr.mxu0 0.0
    %2842 = vmatpush1.msra.mxu0 0.0
    %2843 = vmatprep.subr.mxu0 0.0
    %2844 = vmatpush1.msra.mxu0 0.0
    %2845 = vmatprep.subr.mxu0 0.0
    %2846 = vmatpush1.msra.mxu0 0.0
    %2847 = vmatprep.subr.mxu0 0.0
    %2848 = vmatpush1.msra.mxu0 0.0
    %2849 = vmatprep.subr.mxu0 0.0
    %2850 = vmatpush1.msra.mxu0 0.0
    %2851 = vmatprep.subr.mxu0 0.0
    %2852 = vmatpush1.msra.mxu0 0.0
    %2853 = vmatprep.subr.mxu0 0.0
    %2854 = vmatpush1.msra.mxu0 0.0
    %2855 = vmatprep.subr.mxu0 0.0
    %2856 = vmatpush1.msra.mxu0 0.0
    %2857 = vmatprep.subr.mxu0 0.0
    %2858 = vmatpush1.msra.mxu0 0.0
    %2859 = vmatprep.subr.mxu0 0.0
    %2860 = vmatpush1.msra.mxu0 0.0
    %2861 = vmatprep.subr.mxu0 0.0
    %2862 = vmatpush1.msra.mxu0 0.0
    %2863 = vmatprep.subr.mxu0 0.0
    %2864 = vmatpush1.msra.mxu0 0.0
    %2865 = vmatprep.subr.mxu0 0.0
    %2866 = vmatpush1.msra.mxu0 0.0
    %2867 = vmatprep.subr.mxu0 0.0
    %2868 = vmatpush1.msra.mxu0 0.0
    %2869 = vmatprep.subr.mxu0 0.0
    %2870 = vmatpush1.msra.mxu0 0.0
    %2871 = vmatprep.subr.mxu0 0.0
    %2872 = vmatpush1.msra.mxu0 0.0
    %2873 = vmatprep.subr.mxu0 0.0
    %2874 = vmatpush1.msra.mxu0 0.0
    %2875 = vmatprep.subr.mxu0 0.0
    %2876 = vmatpush1.msra.mxu0 0.0
    %2877 = vmatprep.subr.mxu0 0.0
    %2878 = vmatpush1.msra.mxu0 0.0
    %2879 = vmatprep.mubr.f32.mxu0 0.0
    %2880 = vmatmul.mubr.f32.gmra.mrb[0].mxu0 %v2813
    %v2881 = vpop.f32.mrb[0].mxu0
    %v2882 = vadd.f32 0.0, %v2881
    %v2883 = vpop.f32.mrb[0].mxu0
    %2884 = vdwg.mxu0
    %v2886 = vrot.slane %v2882, 4
    %v2888 = vadd.f32 %v649, %v2886
    %2889 = vrot.lane.b32.xlu0 %v2808, 64
    %v2890 = vpop.permute.xlu0 %2889
    %v2891 = vsel %vm27, %v2890, 0
    %2893 = vmatprep.subr.mxu0 0.0
    %2894 = vmatpush1.msra.mxu0 %v663
    %2895 = vmatprep.subr.mxu0 0.0
    %2896 = vmatpush1.msra.mxu0 %v664
    %2897 = vmatprep.subr.mxu0 0.0
    %2898 = vmatpush1.msra.mxu0 %v665
    %2899 = vmatprep.subr.mxu0 0.0
    %2900 = vmatpush1.msra.mxu0 %v666
    %2901 = vmatprep.subr.mxu0 0.0
    %2902 = vmatpush1.msra.mxu0 0.0
    %2903 = vmatprep.subr.mxu0 0.0
    %2904 = vmatpush1.msra.mxu0 0.0
    %2905 = vmatprep.subr.mxu0 0.0
    %2906 = vmatpush1.msra.mxu0 0.0
    %2907 = vmatprep.subr.mxu0 0.0
    %2908 = vmatpush1.msra.mxu0 0.0
    %2909 = vmatprep.subr.mxu0 0.0
    %2910 = vmatpush1.msra.mxu0 0.0
    %2911 = vmatprep.subr.mxu0 0.0
    %2912 = vmatpush1.msra.mxu0 0.0
    %2913 = vmatprep.subr.mxu0 0.0
    %2914 = vmatpush1.msra.mxu0 0.0
    %2915 = vmatprep.subr.mxu0 0.0
    %2916 = vmatpush1.msra.mxu0 0.0
    %2917 = vmatprep.subr.mxu0 0.0
    %2918 = vmatpush1.msra.mxu0 0.0
    %2919 = vmatprep.subr.mxu0 0.0
    %2920 = vmatpush1.msra.mxu0 0.0
    %2921 = vmatprep.subr.mxu0 0.0
    %2922 = vmatpush1.msra.mxu0 0.0
    %2923 = vmatprep.subr.mxu0 0.0
    %2924 = vmatpush1.msra.mxu0 0.0
    %2925 = vmatprep.subr.mxu0 0.0
    %2926 = vmatpush1.msra.mxu0 0.0
    %2927 = vmatprep.subr.mxu0 0.0
    %2928 = vmatpush1.msra.mxu0 0.0
    %2929 = vmatprep.subr.mxu0 0.0
    %2930 = vmatpush1.msra.mxu0 0.0
    %2931 = vmatprep.subr.mxu0 0.0
    %2932 = vmatpush1.msra.mxu0 0.0
    %2933 = vmatprep.subr.mxu0 0.0
    %2934 = vmatpush1.msra.mxu0 0.0
    %2935 = vmatprep.subr.mxu0 0.0
    %2936 = vmatpush1.msra.mxu0 0.0
    %2937 = vmatprep.subr.mxu0 0.0
    %2938 = vmatpush1.msra.mxu0 0.0
    %2939 = vmatprep.subr.mxu0 0.0
    %2940 = vmatpush1.msra.mxu0 0.0
    %2941 = vmatprep.subr.mxu0 0.0
    %2942 = vmatpush1.msra.mxu0 0.0
    %2943 = vmatprep.subr.mxu0 0.0
    %2944 = vmatpush1.msra.mxu0 0.0
    %2945 = vmatprep.subr.mxu0 0.0
    %2946 = vmatpush1.msra.mxu0 0.0
    %2947 = vmatprep.subr.mxu0 0.0
    %2948 = vmatpush1.msra.mxu0 0.0
    %2949 = vmatprep.subr.mxu0 0.0
    %2950 = vmatpush1.msra.mxu0 0.0
    %2951 = vmatprep.subr.mxu0 0.0
    %2952 = vmatpush1.msra.mxu0 0.0
    %2953 = vmatprep.subr.mxu0 0.0
    %2954 = vmatpush1.msra.mxu0 0.0
    %2955 = vmatprep.subr.mxu0 0.0
    %2956 = vmatpush1.msra.mxu0 0.0
    %2957 = vmatprep.mubr.f32.mxu0 0.0
    %2958 = vmatmul.mubr.f32.gmra.mrb[0].mxu0 %v2891
    %v2959 = vpop.f32.mrb[0].mxu0
    %v2960 = vadd.f32 0.0, %v2959
    %v2961 = vpop.f32.mrb[0].mxu0
    %2962 = vdwg.mxu0
    %v2964 = vrot.slane %v2960, 6
    %v2966 = vadd.f32 %v645, %v2964
    %v2967 = vxor.u32 %v2888, 2147483648
    %v2968 = vmul.f32 %v2967, 1.442695
    %v2969 = vpow.pop %v2968
    %v2970 = vadd.f32 %v2969, 1.0
    %v2971 = vrcp.pop %v2970
    %v2972 = vmul.f32 1.0, %v2971
    %v2973 = vxor.u32 %v2966, 2147483648
    %v2974 = vmul.f32 %v2973, 1.442695
    %v2975 = vpow.pop %v2974
    %v2976 = vadd.f32 %v2975, 1.0
    %v2977 = vrcp.pop %v2976
    %v2978 = vmul.f32 1.0, %v2977
    %v2980 = vrot.slane %v2775, 6
    %v2982 = vmul.f32 %v2972, %v2980
    %v2983 = vtanh.pop %v2888
    %2985 = vrot.lane.b32.xlu0 %v2983, 32
    %v2986 = vpop.permute.xlu0 %2985
    %v2988 = vmul.f32 %v2972, %v2986
    %2990 = vrot.lane.b32.xlu0 %v2988, 32
    %v2991 = vpop.permute.xlu0 %2990
    %v2993 = vadd.f32 %v2982, %v2991
    %v2995 = vrot.slane %v2790, 2
    %v2997 = vmul.f32 %v2978, %v2995
    %v2998 = vtanh.pop %v2966
    %3000 = vrot.lane.b32.xlu0 %v2998, 32
    %v3001 = vpop.permute.xlu0 %3000
    %v3003 = vmul.f32 %v2978, %v3001
    %3005 = vrot.lane.b32.xlu0 %v3003, 32
    %v3006 = vpop.permute.xlu0 %3005
    %v3008 = vadd.f32 %v2997, %v3006
    %v3009 = vtanh.pop %v2993
    %3011 = vrot.lane.b32.xlu0 %v3009, 32
    %v3012 = vpop.permute.xlu0 %3011
    %v3014 = vmul.f32 %v2972, %v3012
    %v3015 = vtanh.pop %v3008
    %3017 = vrot.lane.b32.xlu0 %v3015, 32
    %v3018 = vpop.permute.xlu0 %3017
    %v3020 = vmul.f32 %v2978, %v3018
    %v3022 = vrot.slane %v3014, 4
    %v3024 = vadd.f32 %v2810, %v3022
    %v3026 = vrot.slane %v3020, 2
    %v3028 = vadd.f32 %v3024, %v3026
    %3029 = vrot.lane.b32.xlu0 %v3022, 64
    %v3030 = vpop.permute.xlu0 %3029
    %v3031 = vsel %vm27, %v3030, 0
    %3033 = vmatprep.subr.mxu0 0.0
    %3034 = vmatpush1.msra.mxu0 %v659
    %3035 = vmatprep.subr.mxu0 0.0
    %3036 = vmatpush1.msra.mxu0 %v660
    %3037 = vmatprep.subr.mxu0 0.0
    %3038 = vmatpush1.msra.mxu0 %v661
    %3039 = vmatprep.subr.mxu0 0.0
    %3040 = vmatpush1.msra.mxu0 %v662
    %3041 = vmatprep.subr.mxu0 0.0
    %3042 = vmatpush1.msra.mxu0 0.0
    %3043 = vmatprep.subr.mxu0 0.0
    %3044 = vmatpush1.msra.mxu0 0.0
    %3045 = vmatprep.subr.mxu0 0.0
    %3046 = vmatpush1.msra.mxu0 0.0
    %3047 = vmatprep.subr.mxu0 0.0
    %3048 = vmatpush1.msra.mxu0 0.0
    %3049 = vmatprep.subr.mxu0 0.0
    %3050 = vmatpush1.msra.mxu0 0.0
    %3051 = vmatprep.subr.mxu0 0.0
    %3052 = vmatpush1.msra.mxu0 0.0
    %3053 = vmatprep.subr.mxu0 0.0
    %3054 = vmatpush1.msra.mxu0 0.0
    %3055 = vmatprep.subr.mxu0 0.0
    %3056 = vmatpush1.msra.mxu0 0.0
    %3057 = vmatprep.subr.mxu0 0.0
    %3058 = vmatpush1.msra.mxu0 0.0
    %3059 = vmatprep.subr.mxu0 0.0
    %3060 = vmatpush1.msra.mxu0 0.0
    %3061 = vmatprep.subr.mxu0 0.0
    %3062 = vmatpush1.msra.mxu0 0.0
    %3063 = vmatprep.subr.mxu0 0.0
    %3064 = vmatpush1.msra.mxu0 0.0
    %3065 = vmatprep.subr.mxu0 0.0
    %3066 = vmatpush1.msra.mxu0 0.0
    %3067 = vmatprep.subr.mxu0 0.0
    %3068 = vmatpush1.msra.mxu0 0.0
    %3069 = vmatprep.subr.mxu0 0.0
    %3070 = vmatpush1.msra.mxu0 0.0
    %3071 = vmatprep.subr.mxu0 0.0
    %3072 = vmatpush1.msra.mxu0 0.0
    %3073 = vmatprep.subr.mxu0 0.0
    %3074 = vmatpush1.msra.mxu0 0.0
    %3075 = vmatprep.subr.mxu0 0.0
    %3076 = vmatpush1.msra.mxu0 0.0
    %3077 = vmatprep.subr.mxu0 0.0
    %3078 = vmatpush1.msra.mxu0 0.0
    %3079 = vmatprep.subr.mxu0 0.0
    %3080 = vmatpush1.msra.mxu0 0.0
    %3081 = vmatprep.subr.mxu0 0.0
    %3082 = vmatpush1.msra.mxu0 0.0
    %3083 = vmatprep.subr.mxu0 0.0
    %3084 = vmatpush1.msra.mxu0 0.0
    %3085 = vmatprep.subr.mxu0 0.0
    %3086 = vmatpush1.msra.mxu0 0.0
    %3087 = vmatprep.subr.mxu0 0.0
    %3088 = vmatpush1.msra.mxu0 0.0
    %3089 = vmatprep.subr.mxu0 0.0
    %3090 = vmatpush1.msra.mxu0 0.0
    %3091 = vmatprep.subr.mxu0 0.0
    %3092 = vmatpush1.msra.mxu0 0.0
    %3093 = vmatprep.subr.mxu0 0.0
    %3094 = vmatpush1.msra.mxu0 0.0
    %3095 = vmatprep.subr.mxu0 0.0
    %3096 = vmatpush1.msra.mxu0 0.0
    %3097 = vmatprep.mubr.f32.mxu0 0.0
    %3098 = vmatmul.mubr.f32.gmra.mrb[0].mxu0 %v3031
    %v3099 = vpop.f32.mrb[0].mxu0
    %v3100 = vadd.f32 0.0, %v3099
    %v3101 = vpop.f32.mrb[0].mxu0
    %3102 = vdwg.mxu0
    %v3104 = vrot.slane %v3100, 2
    %v3106 = vadd.f32 %v649, %v3104
    %3107 = vrot.lane.b32.xlu0 %v3026, 64
    %v3108 = vpop.permute.xlu0 %3107
    %v3109 = vsel %vm27, %v3108, 0
    %3111 = vmatprep.subr.mxu0 0.0
    %3112 = vmatpush1.msra.mxu0 %v663
    %3113 = vmatprep.subr.mxu0 0.0
    %3114 = vmatpush1.msra.mxu0 %v664
    %3115 = vmatprep.subr.mxu0 0.0
    %3116 = vmatpush1.msra.mxu0 %v665
    %3117 = vmatprep.subr.mxu0 0.0
    %3118 = vmatpush1.msra.mxu0 %v666
    %3119 = vmatprep.subr.mxu0 0.0
    %3120 = vmatpush1.msra.mxu0 0.0
    %3121 = vmatprep.subr.mxu0 0.0
    %3122 = vmatpush1.msra.mxu0 0.0
    %3123 = vmatprep.subr.mxu0 0.0
    %3124 = vmatpush1.msra.mxu0 0.0
    %3125 = vmatprep.subr.mxu0 0.0
    %3126 = vmatpush1.msra.mxu0 0.0
    %3127 = vmatprep.subr.mxu0 0.0
    %3128 = vmatpush1.msra.mxu0 0.0
    %3129 = vmatprep.subr.mxu0 0.0
    %3130 = vmatpush1.msra.mxu0 0.0
    %3131 = vmatprep.subr.mxu0 0.0
    %3132 = vmatpush1.msra.mxu0 0.0
    %3133 = vmatprep.subr.mxu0 0.0
    %3134 = vmatpush1.msra.mxu0 0.0
    %3135 = vmatprep.subr.mxu0 0.0
    %3136 = vmatpush1.msra.mxu0 0.0
    %3137 = vmatprep.subr.mxu0 0.0
    %3138 = vmatpush1.msra.mxu0 0.0
    %3139 = vmatprep.subr.mxu0 0.0
    %3140 = vmatpush1.msra.mxu0 0.0
    %3141 = vmatprep.subr.mxu0 0.0
    %3142 = vmatpush1.msra.mxu0 0.0
    %3143 = vmatprep.subr.mxu0 0.0
    %3144 = vmatpush1.msra.mxu0 0.0
    %3145 = vmatprep.subr.mxu0 0.0
    %3146 = vmatpush1.msra.mxu0 0.0
    %3147 = vmatprep.subr.mxu0 0.0
    %3148 = vmatpush1.msra.mxu0 0.0
    %3149 = vmatprep.subr.mxu0 0.0
    %3150 = vmatpush1.msra.mxu0 0.0
    %3151 = vmatprep.subr.mxu0 0.0
    %3152 = vmatpush1.msra.mxu0 0.0
    %3153 = vmatprep.subr.mxu0 0.0
    %3154 = vmatpush1.msra.mxu0 0.0
    %3155 = vmatprep.subr.mxu0 0.0
    %3156 = vmatpush1.msra.mxu0 0.0
    %3157 = vmatprep.subr.mxu0 0.0
    %3158 = vmatpush1.msra.mxu0 0.0
    %3159 = vmatprep.subr.mxu0 0.0
    %3160 = vmatpush1.msra.mxu0 0.0
    %3161 = vmatprep.subr.mxu0 0.0
    %3162 = vmatpush1.msra.mxu0 0.0
    %3163 = vmatprep.subr.mxu0 0.0
    %3164 = vmatpush1.msra.mxu0 0.0
    %3165 = vmatprep.subr.mxu0 0.0
    %3166 = vmatpush1.msra.mxu0 0.0
    %3167 = vmatprep.subr.mxu0 0.0
    %3168 = vmatpush1.msra.mxu0 0.0
    %3169 = vmatprep.subr.mxu0 0.0
    %3170 = vmatpush1.msra.mxu0 0.0
    %3171 = vmatprep.subr.mxu0 0.0
    %3172 = vmatpush1.msra.mxu0 0.0
    %3173 = vmatprep.subr.mxu0 0.0
    %3174 = vmatpush1.msra.mxu0 0.0
    %3175 = vmatprep.mubr.f32.mxu0 0.0
    %3176 = vmatmul.mubr.f32.gmra.mrb[0].mxu0 %v3109
    %v3177 = vpop.f32.mrb[0].mxu0
    %v3178 = vadd.f32 0.0, %v3177
    %v3179 = vpop.f32.mrb[0].mxu0
    %3180 = vdwg.mxu0
    %v3181 = vadd.f32 %v645, %v3178
    %v3182 = vxor.u32 %v3106, 2147483648
    %v3183 = vmul.f32 %v3182, 1.442695
    %v3184 = vpow.pop %v3183
    %v3185 = vadd.f32 %v3184, 1.0
    %v3186 = vrcp.pop %v3185
    %v3187 = vmul.f32 1.0, %v3186
    %v3188 = vxor.u32 %v3181, 2147483648
    %v3189 = vmul.f32 %v3188, 1.442695
    %v3190 = vpow.pop %v3189
    %v3191 = vadd.f32 %v3190, 1.0
    %v3192 = vrcp.pop %v3191
    %v3193 = vmul.f32 1.0, %v3192
    %v3195 = vrot.slane %v2993, 6
    %v3197 = vmul.f32 %v3187, %v3195
    %v3198 = vtanh.pop %v3106
    %3200 = vrot.lane.b32.xlu0 %v3198, 32
    %v3201 = vpop.permute.xlu0 %3200
    %v3203 = vmul.f32 %v3187, %v3201
    %3205 = vrot.lane.b32.xlu0 %v3203, 32
    %v3206 = vpop.permute.xlu0 %3205
    %v3208 = vadd.f32 %v3197, %v3206
    %v3210 = vrot.slane %v3008, 2
    %v3212 = vmul.f32 %v3193, %v3210
    %v3213 = vtanh.pop %v3181
    %3215 = vrot.lane.b32.xlu0 %v3213, 32
    %v3216 = vpop.permute.xlu0 %3215
    %v3218 = vmul.f32 %v3193, %v3216
    %3220 = vrot.lane.b32.xlu0 %v3218, 32
    %v3221 = vpop.permute.xlu0 %3220
    %v3223 = vadd.f32 %v3212, %v3221
    %v3224 = vtanh.pop %v3208
    %3226 = vrot.lane.b32.xlu0 %v3224, 32
    %v3227 = vpop.permute.xlu0 %3226
    %v3229 = vmul.f32 %v3187, %v3227
    %v3230 = vtanh.pop %v3223
    %3232 = vrot.lane.b32.xlu0 %v3230, 32
    %v3233 = vpop.permute.xlu0 %3232
    %v3235 = vmul.f32 %v3193, %v3233
    %v3237 = vrot.slane %v3229, 6
    %v3239 = vadd.f32 %v3028, %v3237
    %v3240 = vadd.f32 %v3239, %v3235
    %3241 = vrot.lane.b32.xlu0 %v3237, 64
    %v3242 = vpop.permute.xlu0 %3241
    %v3243 = vsel %vm27, %v3242, 0
    %3245 = vmatprep.subr.mxu0 0.0
    %3246 = vmatpush1.msra.mxu0 %v659
    %3247 = vmatprep.subr.mxu0 0.0
    %3248 = vmatpush1.msra.mxu0 %v660
    %3249 = vmatprep.subr.mxu0 0.0
    %3250 = vmatpush1.msra.mxu0 %v661
    %3251 = vmatprep.subr.mxu0 0.0
    %3252 = vmatpush1.msra.mxu0 %v662
    %3253 = vmatprep.subr.mxu0 0.0
    %3254 = vmatpush1.msra.mxu0 0.0
    %3255 = vmatprep.subr.mxu0 0.0
    %3256 = vmatpush1.msra.mxu0 0.0
    %3257 = vmatprep.subr.mxu0 0.0
    %3258 = vmatpush1.msra.mxu0 0.0
    %3259 = vmatprep.subr.mxu0 0.0
    %3260 = vmatpush1.msra.mxu0 0.0
    %3261 = vmatprep.subr.mxu0 0.0
    %3262 = vmatpush1.msra.mxu0 0.0
    %3263 = vmatprep.subr.mxu0 0.0
    %3264 = vmatpush1.msra.mxu0 0.0
    %3265 = vmatprep.subr.mxu0 0.0
    %3266 = vmatpush1.msra.mxu0 0.0
    %3267 = vmatprep.subr.mxu0 0.0
    %3268 = vmatpush1.msra.mxu0 0.0
    %3269 = vmatprep.subr.mxu0 0.0
    %3270 = vmatpush1.msra.mxu0 0.0
    %3271 = vmatprep.subr.mxu0 0.0
    %3272 = vmatpush1.msra.mxu0 0.0
    %3273 = vmatprep.subr.mxu0 0.0
    %3274 = vmatpush1.msra.mxu0 0.0
    %3275 = vmatprep.subr.mxu0 0.0
    %3276 = vmatpush1.msra.mxu0 0.0
    %3277 = vmatprep.subr.mxu0 0.0
    %3278 = vmatpush1.msra.mxu0 0.0
    %3279 = vmatprep.subr.mxu0 0.0
    %3280 = vmatpush1.msra.mxu0 0.0
    %3281 = vmatprep.subr.mxu0 0.0
    %3282 = vmatpush1.msra.mxu0 0.0
    %3283 = vmatprep.subr.mxu0 0.0
    %3284 = vmatpush1.msra.mxu0 0.0
    %3285 = vmatprep.subr.mxu0 0.0
    %3286 = vmatpush1.msra.mxu0 0.0
    %3287 = vmatprep.subr.mxu0 0.0
    %3288 = vmatpush1.msra.mxu0 0.0
    %3289 = vmatprep.subr.mxu0 0.0
    %3290 = vmatpush1.msra.mxu0 0.0
    %3291 = vmatprep.subr.mxu0 0.0
    %3292 = vmatpush1.msra.mxu0 0.0
    %3293 = vmatprep.subr.mxu0 0.0
    %3294 = vmatpush1.msra.mxu0 0.0
    %3295 = vmatprep.subr.mxu0 0.0
    %3296 = vmatpush1.msra.mxu0 0.0
    %3297 = vmatprep.subr.mxu0 0.0
    %3298 = vmatpush1.msra.mxu0 0.0
    %3299 = vmatprep.subr.mxu0 0.0
    %3300 = vmatpush1.msra.mxu0 0.0
    %3301 = vmatprep.subr.mxu0 0.0
    %3302 = vmatpush1.msra.mxu0 0.0
    %3303 = vmatprep.subr.mxu0 0.0
    %3304 = vmatpush1.msra.mxu0 0.0
    %3305 = vmatprep.subr.mxu0 0.0
    %3306 = vmatpush1.msra.mxu0 0.0
    %3307 = vmatprep.subr.mxu0 0.0
    %3308 = vmatpush1.msra.mxu0 0.0
    %3309 = vmatprep.mubr.f32.mxu0 0.0
    %3310 = vmatmul.mubr.f32.gmra.mrb[0].mxu0 %v3243
    %v3311 = vpop.f32.mrb[0].mxu0
    %v3312 = vadd.f32 0.0, %v3311
    %v3313 = vpop.f32.mrb[0].mxu0
    %3314 = vdwg.mxu0
    %v3315 = vadd.f32 %v655, %v3312
    %3317 = vrot.lane.b32.xlu0 %v3235, 64
    %v3318 = vpop.permute.xlu0 %3317
    %v3319 = vsel %vm27, %v3318, 0
    %3321 = vmatprep.subr.mxu0 0.0
    %3322 = vmatpush1.msra.mxu0 %v663
    %3323 = vmatprep.subr.mxu0 0.0
    %3324 = vmatpush1.msra.mxu0 %v664
    %3325 = vmatprep.subr.mxu0 0.0
    %3326 = vmatpush1.msra.mxu0 %v665
    %3327 = vmatprep.subr.mxu0 0.0
    %3328 = vmatpush1.msra.mxu0 %v666
    %3329 = vmatprep.subr.mxu0 0.0
    %3330 = vmatpush1.msra.mxu0 0.0
    %3331 = vmatprep.subr.mxu0 0.0
    %3332 = vmatpush1.msra.mxu0 0.0
    %3333 = vmatprep.subr.mxu0 0.0
    %3334 = vmatpush1.msra.mxu0 0.0
    %3335 = vmatprep.subr.mxu0 0.0
    %3336 = vmatpush1.msra.mxu0 0.0
    %3337 = vmatprep.subr.mxu0 0.0
    %3338 = vmatpush1.msra.mxu0 0.0
    %3339 = vmatprep.subr.mxu0 0.0
    %3340 = vmatpush1.msra.mxu0 0.0
    %3341 = vmatprep.subr.mxu0 0.0
    %3342 = vmatpush1.msra.mxu0 0.0
    %3343 = vmatprep.subr.mxu0 0.0
    %3344 = vmatpush1.msra.mxu0 0.0
    %3345 = vmatprep.subr.mxu0 0.0
    %3346 = vmatpush1.msra.mxu0 0.0
    %3347 = vmatprep.subr.mxu0 0.0
    %3348 = vmatpush1.msra.mxu0 0.0
    %3349 = vmatprep.subr.mxu0 0.0
    %3350 = vmatpush1.msra.mxu0 0.0
    %3351 = vmatprep.subr.mxu0 0.0
    %3352 = vmatpush1.msra.mxu0 0.0
    %3353 = vmatprep.subr.mxu0 0.0
    %3354 = vmatpush1.msra.mxu0 0.0
    %3355 = vmatprep.subr.mxu0 0.0
    %3356 = vmatpush1.msra.mxu0 0.0
    %3357 = vmatprep.subr.mxu0 0.0
    %3358 = vmatpush1.msra.mxu0 0.0
    %3359 = vmatprep.subr.mxu0 0.0
    %3360 = vmatpush1.msra.mxu0 0.0
    %3361 = vmatprep.subr.mxu0 0.0
    %3362 = vmatpush1.msra.mxu0 0.0
    %3363 = vmatprep.subr.mxu0 0.0
    %3364 = vmatpush1.msra.mxu0 0.0
    %3365 = vmatprep.subr.mxu0 0.0
    %3366 = vmatpush1.msra.mxu0 0.0
    %3367 = vmatprep.subr.mxu0 0.0
    %3368 = vmatpush1.msra.mxu0 0.0
    %3369 = vmatprep.subr.mxu0 0.0
    %3370 = vmatpush1.msra.mxu0 0.0
    %3371 = vmatprep.subr.mxu0 0.0
    %3372 = vmatpush1.msra.mxu0 0.0
    %3373 = vmatprep.subr.mxu0 0.0
    %3374 = vmatpush1.msra.mxu0 0.0
    %3375 = vmatprep.subr.mxu0 0.0
    %3376 = vmatpush1.msra.mxu0 0.0
    %3377 = vmatprep.subr.mxu0 0.0
    %3378 = vmatpush1.msra.mxu0 0.0
    %3379 = vmatprep.subr.mxu0 0.0
    %3380 = vmatpush1.msra.mxu0 0.0
    %3381 = vmatprep.subr.mxu0 0.0
    %3382 = vmatpush1.msra.mxu0 0.0
    %3383 = vmatprep.subr.mxu0 0.0
    %3384 = vmatpush1.msra.mxu0 0.0
    %3385 = vmatprep.mubr.f32.mxu0 0.0
    %3386 = vmatmul.mubr.f32.gmra.mrb[0].mxu0 %v3319
    %v3387 = vpop.f32.mrb[0].mxu0
    %v3388 = vadd.f32 0.0, %v3387
    %v3389 = vpop.f32.mrb[0].mxu0
    %3390 = vdwg.mxu0
    %v3392 = vrot.slane %v3388, 2
    %v3394 = vadd.f32 %v639, %v3392
    %v3395 = vxor.u32 %v3315, 2147483648
    %v3396 = vmul.f32 %v3395, 1.442695
    %v3397 = vpow.pop %v3396
    %v3398 = vadd.f32 %v3397, 1.0
    %v3399 = vrcp.pop %v3398
    %v3400 = vmul.f32 1.0, %v3399
    %v3401 = vxor.u32 %v3394, 2147483648
    %v3402 = vmul.f32 %v3401, 1.442695
    %v3403 = vpow.pop %v3402
    %v3404 = vadd.f32 %v3403, 1.0
    %v3405 = vrcp.pop %v3404
    %v3406 = vmul.f32 1.0, %v3405
    %v3408 = vrot.slane %v3208, 6
    %v3410 = vmul.f32 %v3400, %v3408
    %v3411 = vtanh.pop %v3315
    %3413 = vrot.lane.b32.xlu0 %v3411, 32
    %v3414 = vpop.permute.xlu0 %3413
    %v3416 = vmul.f32 %v3400, %v3414
    %3418 = vrot.lane.b32.xlu0 %v3416, 32
    %v3419 = vpop.permute.xlu0 %3418
    %v3421 = vadd.f32 %v3410, %v3419
    %v3423 = vrot.slane %v3223, 2
    %v3425 = vmul.f32 %v3406, %v3423
    %v3426 = vtanh.pop %v3394
    %3428 = vrot.lane.b32.xlu0 %v3426, 32
    %v3429 = vpop.permute.xlu0 %3428
    %v3431 = vmul.f32 %v3406, %v3429
    %3433 = vrot.lane.b32.xlu0 %v3431, 32
    %v3434 = vpop.permute.xlu0 %3433
    %v3436 = vadd.f32 %v3425, %v3434
    %v3437 = vtanh.pop %v3421
    %3439 = vrot.lane.b32.xlu0 %v3437, 32
    %v3440 = vpop.permute.xlu0 %3439
    %v3442 = vmul.f32 %v3400, %v3440
    %v3443 = vtanh.pop %v3436
    %3445 = vrot.lane.b32.xlu0 %v3443, 32
    %v3446 = vpop.permute.xlu0 %3445
    %v3448 = vmul.f32 %v3406, %v3446
    %v3449 = vadd.f32 %v3240, %v3442
    %v3451 = vrot.slane %v3448, 6
    %v3453 = vadd.f32 %v3449, %v3451
    %3455 = vrot.lane.b32.xlu0 %v3442, 64
    %v3456 = vpop.permute.xlu0 %3455
    %v3457 = vsel %vm27, %v3456, 0
    %3459 = vmatprep.subr.mxu0 0.0
    %3460 = vmatpush1.msra.mxu0 %v659
    %3461 = vmatprep.subr.mxu0 0.0
    %3462 = vmatpush1.msra.mxu0 %v660
    %3463 = vmatprep.subr.mxu0 0.0
    %3464 = vmatpush1.msra.mxu0 %v661
    %3465 = vmatprep.subr.mxu0 0.0
    %3466 = vmatpush1.msra.mxu0 %v662
    %3467 = vmatprep.subr.mxu0 0.0
    %3468 = vmatpush1.msra.mxu0 0.0
    %3469 = vmatprep.subr.mxu0 0.0
    %3470 = vmatpush1.msra.mxu0 0.0
    %3471 = vmatprep.subr.mxu0 0.0
    %3472 = vmatpush1.msra.mxu0 0.0
    %3473 = vmatprep.subr.mxu0 0.0
    %3474 = vmatpush1.msra.mxu0 0.0
    %3475 = vmatprep.subr.mxu0 0.0
    %3476 = vmatpush1.msra.mxu0 0.0
    %3477 = vmatprep.subr.mxu0 0.0
    %3478 = vmatpush1.msra.mxu0 0.0
    %3479 = vmatprep.subr.mxu0 0.0
    %3480 = vmatpush1.msra.mxu0 0.0
    %3481 = vmatprep.subr.mxu0 0.0
    %3482 = vmatpush1.msra.mxu0 0.0
    %3483 = vmatprep.subr.mxu0 0.0
    %3484 = vmatpush1.msra.mxu0 0.0
    %3485 = vmatprep.subr.mxu0 0.0
    %3486 = vmatpush1.msra.mxu0 0.0
    %3487 = vmatprep.subr.mxu0 0.0
    %3488 = vmatpush1.msra.mxu0 0.0
    %3489 = vmatprep.subr.mxu0 0.0
    %3490 = vmatpush1.msra.mxu0 0.0
    %3491 = vmatprep.subr.mxu0 0.0
    %3492 = vmatpush1.msra.mxu0 0.0
    %3493 = vmatprep.subr.mxu0 0.0
    %3494 = vmatpush1.msra.mxu0 0.0
    %3495 = vmatprep.subr.mxu0 0.0
    %3496 = vmatpush1.msra.mxu0 0.0
    %3497 = vmatprep.subr.mxu0 0.0
    %3498 = vmatpush1.msra.mxu0 0.0
    %3499 = vmatprep.subr.mxu0 0.0
    %3500 = vmatpush1.msra.mxu0 0.0
    %3501 = vmatprep.subr.mxu0 0.0
    %3502 = vmatpush1.msra.mxu0 0.0
    %3503 = vmatprep.subr.mxu0 0.0
    %3504 = vmatpush1.msra.mxu0 0.0
    %3505 = vmatprep.subr.mxu0 0.0
    %3506 = vmatpush1.msra.mxu0 0.0
    %3507 = vmatprep.subr.mxu0 0.0
    %3508 = vmatpush1.msra.mxu0 0.0
    %3509 = vmatprep.subr.mxu0 0.0
    %3510 = vmatpush1.msra.mxu0 0.0
    %3511 = vmatprep.subr.mxu0 0.0
    %3512 = vmatpush1.msra.mxu0 0.0
    %3513 = vmatprep.subr.mxu0 0.0
    %3514 = vmatpush1.msra.mxu0 0.0
    %3515 = vmatprep.subr.mxu0 0.0
    %3516 = vmatpush1.msra.mxu0 0.0
    %3517 = vmatprep.subr.mxu0 0.0
    %3518 = vmatpush1.msra.mxu0 0.0
    %3519 = vmatprep.subr.mxu0 0.0
    %3520 = vmatpush1.msra.mxu0 0.0
    %3521 = vmatprep.subr.mxu0 0.0
    %3522 = vmatpush1.msra.mxu0 0.0
    %3523 = vmatprep.mubr.f32.mxu0 0.0
    %3524 = vmatmul.mubr.f32.gmra.mrb[0].mxu0 %v3457
    %v3525 = vpop.f32.mrb[0].mxu0
    %v3526 = vadd.f32 0.0, %v3525
    %v3527 = vpop.f32.mrb[0].mxu0
    %3528 = vdwg.mxu0
    %v3530 = vrot.slane %v3526, 6
    %v3532 = vadd.f32 %v655, %v3530
    %3533 = vrot.lane.b32.xlu0 %v3451, 64
    %v3534 = vpop.permute.xlu0 %3533
    %v3535 = vsel %vm27, %v3534, 0
    %3537 = vmatprep.subr.mxu0 0.0
    %3538 = vmatpush1.msra.mxu0 %v663
    %3539 = vmatprep.subr.mxu0 0.0
    %3540 = vmatpush1.msra.mxu0 %v664
    %3541 = vmatprep.subr.mxu0 0.0
    %3542 = vmatpush1.msra.mxu0 %v665
    %3543 = vmatprep.subr.mxu0 0.0
    %3544 = vmatpush1.msra.mxu0 %v666
    %3545 = vmatprep.subr.mxu0 0.0
    %3546 = vmatpush1.msra.mxu0 0.0
    %3547 = vmatprep.subr.mxu0 0.0
    %3548 = vmatpush1.msra.mxu0 0.0
    %3549 = vmatprep.subr.mxu0 0.0
    %3550 = vmatpush1.msra.mxu0 0.0
    %3551 = vmatprep.subr.mxu0 0.0
    %3552 = vmatpush1.msra.mxu0 0.0
    %3553 = vmatprep.subr.mxu0 0.0
    %3554 = vmatpush1.msra.mxu0 0.0
    %3555 = vmatprep.subr.mxu0 0.0
    %3556 = vmatpush1.msra.mxu0 0.0
    %3557 = vmatprep.subr.mxu0 0.0
    %3558 = vmatpush1.msra.mxu0 0.0
    %3559 = vmatprep.subr.mxu0 0.0
    %3560 = vmatpush1.msra.mxu0 0.0
    %3561 = vmatprep.subr.mxu0 0.0
    %3562 = vmatpush1.msra.mxu0 0.0
    %3563 = vmatprep.subr.mxu0 0.0
    %3564 = vmatpush1.msra.mxu0 0.0
    %3565 = vmatprep.subr.mxu0 0.0
    %3566 = vmatpush1.msra.mxu0 0.0
    %3567 = vmatprep.subr.mxu0 0.0
    %3568 = vmatpush1.msra.mxu0 0.0
    %3569 = vmatprep.subr.mxu0 0.0
    %3570 = vmatpush1.msra.mxu0 0.0
    %3571 = vmatprep.subr.mxu0 0.0
    %3572 = vmatpush1.msra.mxu0 0.0
    %3573 = vmatprep.subr.mxu0 0.0
    %3574 = vmatpush1.msra.mxu0 0.0
    %3575 = vmatprep.subr.mxu0 0.0
    %3576 = vmatpush1.msra.mxu0 0.0
    %3577 = vmatprep.subr.mxu0 0.0
    %3578 = vmatpush1.msra.mxu0 0.0
    %3579 = vmatprep.subr.mxu0 0.0
    %3580 = vmatpush1.msra.mxu0 0.0
    %3581 = vmatprep.subr.mxu0 0.0
    %3582 = vmatpush1.msra.mxu0 0.0
    %3583 = vmatprep.subr.mxu0 0.0
    %3584 = vmatpush1.msra.mxu0 0.0
    %3585 = vmatprep.subr.mxu0 0.0
    %3586 = vmatpush1.msra.mxu0 0.0
    %3587 = vmatprep.subr.mxu0 0.0
    %3588 = vmatpush1.msra.mxu0 0.0
    %3589 = vmatprep.subr.mxu0 0.0
    %3590 = vmatpush1.msra.mxu0 0.0
    %3591 = vmatprep.subr.mxu0 0.0
    %3592 = vmatpush1.msra.mxu0 0.0
    %3593 = vmatprep.subr.mxu0 0.0
    %3594 = vmatpush1.msra.mxu0 0.0
    %3595 = vmatprep.subr.mxu0 0.0
    %3596 = vmatpush1.msra.mxu0 0.0
    %3597 = vmatprep.subr.mxu0 0.0
    %3598 = vmatpush1.msra.mxu0 0.0
    %3599 = vmatprep.subr.mxu0 0.0
    %3600 = vmatpush1.msra.mxu0 0.0
    %3601 = vmatprep.mubr.f32.mxu0 0.0
    %3602 = vmatmul.mubr.f32.gmra.mrb[0].mxu0 %v3535
    %v3603 = vpop.f32.mrb[0].mxu0
    %v3604 = vadd.f32 0.0, %v3603
    %v3605 = vpop.f32.mrb[0].mxu0
    %3606 = vdwg.mxu0
    %v3608 = vrot.slane %v3604, 4
    %v3610 = vadd.f32 %v639, %v3608
    %v3611 = vxor.u32 %v3532, 2147483648
    %v3612 = vmul.f32 %v3611, 1.442695
    %v3613 = vpow.pop %v3612
    %v3614 = vadd.f32 %v3613, 1.0
    %v3615 = vrcp.pop %v3614
    %v3616 = vmul.f32 1.0, %v3615
    %v3617 = vxor.u32 %v3610, 2147483648
    %v3618 = vmul.f32 %v3617, 1.442695
    %v3619 = vpow.pop %v3618
    %v3620 = vadd.f32 %v3619, 1.0
    %v3621 = vrcp.pop %v3620
    %v3622 = vmul.f32 1.0, %v3621
    %v3624 = vrot.slane %v3421, 6
    %v3626 = vmul.f32 %v3616, %v3624
    %v3627 = vtanh.pop %v3532
    %3629 = vrot.lane.b32.xlu0 %v3627, 32
    %v3630 = vpop.permute.xlu0 %3629
    %v3632 = vmul.f32 %v3616, %v3630
    %3634 = vrot.lane.b32.xlu0 %v3632, 32
    %v3635 = vpop.permute.xlu0 %3634
    %v3637 = vadd.f32 %v3626, %v3635
    %v3639 = vrot.slane %v3436, 2
    %v3641 = vmul.f32 %v3622, %v3639
    %v3642 = vtanh.pop %v3610
    %3644 = vrot.lane.b32.xlu0 %v3642, 32
    %v3645 = vpop.permute.xlu0 %3644
    %v3647 = vmul.f32 %v3622, %v3645
    %3649 = vrot.lane.b32.xlu0 %v3647, 32
    %v3650 = vpop.permute.xlu0 %3649
    %v3652 = vadd.f32 %v3641, %v3650
    %v3653 = vtanh.pop %v3637
    %3655 = vrot.lane.b32.xlu0 %v3653, 32
    %v3656 = vpop.permute.xlu0 %3655
    %v3658 = vmul.f32 %v3616, %v3656
    %v3659 = vtanh.pop %v3652
    %3661 = vrot.lane.b32.xlu0 %v3659, 32
    %v3662 = vpop.permute.xlu0 %3661
    %v3664 = vmul.f32 %v3622, %v3662
    %v3666 = vrot.slane %v3658, 2
    %v3668 = vadd.f32 %v3453, %v3666
    %v3670 = vrot.slane %v3664, 4
    %v3672 = vadd.f32 %v3668, %v3670
    %3673 = vrot.lane.b32.xlu0 %v3666, 64
    %v3674 = vpop.permute.xlu0 %3673
    %v3675 = vsel %vm27, %v3674, 0
    %3677 = vmatprep.subr.mxu0 0.0
    %3678 = vmatpush1.msra.mxu0 %v659
    %3679 = vmatprep.subr.mxu0 0.0
    %3680 = vmatpush1.msra.mxu0 %v660
    %3681 = vmatprep.subr.mxu0 0.0
    %3682 = vmatpush1.msra.mxu0 %v661
    %3683 = vmatprep.subr.mxu0 0.0
    %3684 = vmatpush1.msra.mxu0 %v662
    %3685 = vmatprep.subr.mxu0 0.0
    %3686 = vmatpush1.msra.mxu0 0.0
    %3687 = vmatprep.subr.mxu0 0.0
    %3688 = vmatpush1.msra.mxu0 0.0
    %3689 = vmatprep.subr.mxu0 0.0
    %3690 = vmatpush1.msra.mxu0 0.0
    %3691 = vmatprep.subr.mxu0 0.0
    %3692 = vmatpush1.msra.mxu0 0.0
    %3693 = vmatprep.subr.mxu0 0.0
    %3694 = vmatpush1.msra.mxu0 0.0
    %3695 = vmatprep.subr.mxu0 0.0
    %3696 = vmatpush1.msra.mxu0 0.0
    %3697 = vmatprep.subr.mxu0 0.0
    %3698 = vmatpush1.msra.mxu0 0.0
    %3699 = vmatprep.subr.mxu0 0.0
    %3700 = vmatpush1.msra.mxu0 0.0
    %3701 = vmatprep.subr.mxu0 0.0
    %3702 = vmatpush1.msra.mxu0 0.0
    %3703 = vmatprep.subr.mxu0 0.0
    %3704 = vmatpush1.msra.mxu0 0.0
    %3705 = vmatprep.subr.mxu0 0.0
    %3706 = vmatpush1.msra.mxu0 0.0
    %3707 = vmatprep.subr.mxu0 0.0
    %3708 = vmatpush1.msra.mxu0 0.0
    %3709 = vmatprep.subr.mxu0 0.0
    %3710 = vmatpush1.msra.mxu0 0.0
    %3711 = vmatprep.subr.mxu0 0.0
    %3712 = vmatpush1.msra.mxu0 0.0
    %3713 = vmatprep.subr.mxu0 0.0
    %3714 = vmatpush1.msra.mxu0 0.0
    %3715 = vmatprep.subr.mxu0 0.0
    %3716 = vmatpush1.msra.mxu0 0.0
    %3717 = vmatprep.subr.mxu0 0.0
    %3718 = vmatpush1.msra.mxu0 0.0
    %3719 = vmatprep.subr.mxu0 0.0
    %3720 = vmatpush1.msra.mxu0 0.0
    %3721 = vmatprep.subr.mxu0 0.0
    %3722 = vmatpush1.msra.mxu0 0.0
    %3723 = vmatprep.subr.mxu0 0.0
    %3724 = vmatpush1.msra.mxu0 0.0
    %3725 = vmatprep.subr.mxu0 0.0
    %3726 = vmatpush1.msra.mxu0 0.0
    %3727 = vmatprep.subr.mxu0 0.0
    %3728 = vmatpush1.msra.mxu0 0.0
    %3729 = vmatprep.subr.mxu0 0.0
    %3730 = vmatpush1.msra.mxu0 0.0
    %3731 = vmatprep.subr.mxu0 0.0
    %3732 = vmatpush1.msra.mxu0 0.0
    %3733 = vmatprep.subr.mxu0 0.0
    %3734 = vmatpush1.msra.mxu0 0.0
    %3735 = vmatprep.subr.mxu0 0.0
    %3736 = vmatpush1.msra.mxu0 0.0
    %3737 = vmatprep.subr.mxu0 0.0
    %3738 = vmatpush1.msra.mxu0 0.0
    %3739 = vmatprep.subr.mxu0 0.0
    %3740 = vmatpush1.msra.mxu0 0.0
    %3741 = vmatprep.mubr.f32.mxu0 0.0
    %3742 = vmatmul.mubr.f32.gmra.mrb[0].mxu0 %v3675
    %v3743 = vpop.f32.mrb[0].mxu0
    %v3744 = vadd.f32 0.0, %v3743
    %v3745 = vpop.f32.mrb[0].mxu0
    %3746 = vdwg.mxu0
    %v3748 = vrot.slane %v3744, 4
    %v3750 = vadd.f32 %v655, %v3748
    %3751 = vrot.lane.b32.xlu0 %v3670, 64
    %v3752 = vpop.permute.xlu0 %3751
    %v3753 = vsel %vm27, %v3752, 0
    %3755 = vmatprep.subr.mxu0 0.0
    %3756 = vmatpush1.msra.mxu0 %v663
    %3757 = vmatprep.subr.mxu0 0.0
    %3758 = vmatpush1.msra.mxu0 %v664
    %3759 = vmatprep.subr.mxu0 0.0
    %3760 = vmatpush1.msra.mxu0 %v665
    %3761 = vmatprep.subr.mxu0 0.0
    %3762 = vmatpush1.msra.mxu0 %v666
    %3763 = vmatprep.subr.mxu0 0.0
    %3764 = vmatpush1.msra.mxu0 0.0
    %3765 = vmatprep.subr.mxu0 0.0
    %3766 = vmatpush1.msra.mxu0 0.0
    %3767 = vmatprep.subr.mxu0 0.0
    %3768 = vmatpush1.msra.mxu0 0.0
    %3769 = vmatprep.subr.mxu0 0.0
    %3770 = vmatpush1.msra.mxu0 0.0
    %3771 = vmatprep.subr.mxu0 0.0
    %3772 = vmatpush1.msra.mxu0 0.0
    %3773 = vmatprep.subr.mxu0 0.0
    %3774 = vmatpush1.msra.mxu0 0.0
    %3775 = vmatprep.subr.mxu0 0.0
    %3776 = vmatpush1.msra.mxu0 0.0
    %3777 = vmatprep.subr.mxu0 0.0
    %3778 = vmatpush1.msra.mxu0 0.0
    %3779 = vmatprep.subr.mxu0 0.0
    %3780 = vmatpush1.msra.mxu0 0.0
    %3781 = vmatprep.subr.mxu0 0.0
    %3782 = vmatpush1.msra.mxu0 0.0
    %3783 = vmatprep.subr.mxu0 0.0
    %3784 = vmatpush1.msra.mxu0 0.0
    %3785 = vmatprep.subr.mxu0 0.0
    %3786 = vmatpush1.msra.mxu0 0.0
    %3787 = vmatprep.subr.mxu0 0.0
    %3788 = vmatpush1.msra.mxu0 0.0
    %3789 = vmatprep.subr.mxu0 0.0
    %3790 = vmatpush1.msra.mxu0 0.0
    %3791 = vmatprep.subr.mxu0 0.0
    %3792 = vmatpush1.msra.mxu0 0.0
    %3793 = vmatprep.subr.mxu0 0.0
    %3794 = vmatpush1.msra.mxu0 0.0
    %3795 = vmatprep.subr.mxu0 0.0
    %3796 = vmatpush1.msra.mxu0 0.0
    %3797 = vmatprep.subr.mxu0 0.0
    %3798 = vmatpush1.msra.mxu0 0.0
    %3799 = vmatprep.subr.mxu0 0.0
    %3800 = vmatpush1.msra.mxu0 0.0
    %3801 = vmatprep.subr.mxu0 0.0
    %3802 = vmatpush1.msra.mxu0 0.0
    %3803 = vmatprep.subr.mxu0 0.0
    %3804 = vmatpush1.msra.mxu0 0.0
    %3805 = vmatprep.subr.mxu0 0.0
    %3806 = vmatpush1.msra.mxu0 0.0
    %3807 = vmatprep.subr.mxu0 0.0
    %3808 = vmatpush1.msra.mxu0 0.0
    %3809 = vmatprep.subr.mxu0 0.0
    %3810 = vmatpush1.msra.mxu0 0.0
    %3811 = vmatprep.subr.mxu0 0.0
    %3812 = vmatpush1.msra.mxu0 0.0
    %3813 = vmatprep.subr.mxu0 0.0
    %3814 = vmatpush1.msra.mxu0 0.0
    %3815 = vmatprep.subr.mxu0 0.0
    %3816 = vmatpush1.msra.mxu0 0.0
    %3817 = vmatprep.subr.mxu0 0.0
    %3818 = vmatpush1.msra.mxu0 0.0
    %3819 = vmatprep.mubr.f32.mxu0 0.0
    %3820 = vmatmul.mubr.f32.gmra.mrb[0].mxu0 %v3753
    %v3821 = vpop.f32.mrb[0].mxu0
    %v3822 = vadd.f32 0.0, %v3821
    %v3823 = vpop.f32.mrb[0].mxu0
    %3824 = vdwg.mxu0
    %v3826 = vrot.slane %v3822, 6
    %v3828 = vadd.f32 %v639, %v3826
    %v3829 = vxor.u32 %v3750, 2147483648
    %v3830 = vmul.f32 %v3829, 1.442695
    %v3831 = vpow.pop %v3830
    %v3832 = vadd.f32 %v3831, 1.0
    %v3833 = vrcp.pop %v3832
    %v3834 = vmul.f32 1.0, %v3833
    %v3835 = vxor.u32 %v3828, 2147483648
    %v3836 = vmul.f32 %v3835, 1.442695
    %v3837 = vpow.pop %v3836
    %v3838 = vadd.f32 %v3837, 1.0
    %v3839 = vrcp.pop %v3838
    %v3840 = vmul.f32 1.0, %v3839
    %v3842 = vrot.slane %v3637, 6
    %v3844 = vmul.f32 %v3834, %v3842
    %v3845 = vtanh.pop %v3750
    %3847 = vrot.lane.b32.xlu0 %v3845, 32
    %v3848 = vpop.permute.xlu0 %3847
    %v3850 = vmul.f32 %v3834, %v3848
    %3852 = vrot.lane.b32.xlu0 %v3850, 32
    %v3853 = vpop.permute.xlu0 %3852
    %v3855 = vadd.f32 %v3844, %v3853
    %v3857 = vrot.slane %v3652, 2
    %v3859 = vmul.f32 %v3840, %v3857
    %v3860 = vtanh.pop %v3828
    %3862 = vrot.lane.b32.xlu0 %v3860, 32
    %v3863 = vpop.permute.xlu0 %3862
    %v3865 = vmul.f32 %v3840, %v3863
    %3867 = vrot.lane.b32.xlu0 %v3865, 32
    %v3868 = vpop.permute.xlu0 %3867
    %v3870 = vadd.f32 %v3859, %v3868
    %v3871 = vtanh.pop %v3855
    %3873 = vrot.lane.b32.xlu0 %v3871, 32
    %v3874 = vpop.permute.xlu0 %3873
    %v3876 = vmul.f32 %v3834, %v3874
    %v3877 = vtanh.pop %v3870
    %3879 = vrot.lane.b32.xlu0 %v3877, 32
    %v3880 = vpop.permute.xlu0 %3879
    %v3882 = vmul.f32 %v3840, %v3880
    %v3884 = vrot.slane %v3876, 4
    %v3886 = vadd.f32 %v3672, %v3884
    %v3888 = vrot.slane %v3882, 2
    %v3890 = vadd.f32 %v3886, %v3888
    %3891 = vrot.lane.b32.xlu0 %v3884, 64
    %v3892 = vpop.permute.xlu0 %3891
    %v3893 = vsel %vm27, %v3892, 0
    %3895 = vmatprep.subr.mxu0 0.0
    %3896 = vmatpush1.msra.mxu0 %v659
    %3897 = vmatprep.subr.mxu0 0.0
    %3898 = vmatpush1.msra.mxu0 %v660
    %3899 = vmatprep.subr.mxu0 0.0
    %3900 = vmatpush1.msra.mxu0 %v661
    %3901 = vmatprep.subr.mxu0 0.0
    %3902 = vmatpush1.msra.mxu0 %v662
    %3903 = vmatprep.subr.mxu0 0.0
    %3904 = vmatpush1.msra.mxu0 0.0
    %3905 = vmatprep.subr.mxu0 0.0
    %3906 = vmatpush1.msra.mxu0 0.0
    %3907 = vmatprep.subr.mxu0 0.0
    %3908 = vmatpush1.msra.mxu0 0.0
    %3909 = vmatprep.subr.mxu0 0.0
    %3910 = vmatpush1.msra.mxu0 0.0
    %3911 = vmatprep.subr.mxu0 0.0
    %3912 = vmatpush1.msra.mxu0 0.0
    %3913 = vmatprep.subr.mxu0 0.0
    %3914 = vmatpush1.msra.mxu0 0.0
    %3915 = vmatprep.subr.mxu0 0.0
    %3916 = vmatpush1.msra.mxu0 0.0
    %3917 = vmatprep.subr.mxu0 0.0
    %3918 = vmatpush1.msra.mxu0 0.0
    %3919 = vmatprep.subr.mxu0 0.0
    %3920 = vmatpush1.msra.mxu0 0.0
    %3921 = vmatprep.subr.mxu0 0.0
    %3922 = vmatpush1.msra.mxu0 0.0
    %3923 = vmatprep.subr.mxu0 0.0
    %3924 = vmatpush1.msra.mxu0 0.0
    %3925 = vmatprep.subr.mxu0 0.0
    %3926 = vmatpush1.msra.mxu0 0.0
    %3927 = vmatprep.subr.mxu0 0.0
    %3928 = vmatpush1.msra.mxu0 0.0
    %3929 = vmatprep.subr.mxu0 0.0
    %3930 = vmatpush1.msra.mxu0 0.0
    %3931 = vmatprep.subr.mxu0 0.0
    %3932 = vmatpush1.msra.mxu0 0.0
    %3933 = vmatprep.subr.mxu0 0.0
    %3934 = vmatpush1.msra.mxu0 0.0
    %3935 = vmatprep.subr.mxu0 0.0
    %3936 = vmatpush1.msra.mxu0 0.0
    %3937 = vmatprep.subr.mxu0 0.0
    %3938 = vmatpush1.msra.mxu0 0.0
    %3939 = vmatprep.subr.mxu0 0.0
    %3940 = vmatpush1.msra.mxu0 0.0
    %3941 = vmatprep.subr.mxu0 0.0
    %3942 = vmatpush1.msra.mxu0 0.0
    %3943 = vmatprep.subr.mxu0 0.0
    %3944 = vmatpush1.msra.mxu0 0.0
    %3945 = vmatprep.subr.mxu0 0.0
    %3946 = vmatpush1.msra.mxu0 0.0
    %3947 = vmatprep.subr.mxu0 0.0
    %3948 = vmatpush1.msra.mxu0 0.0
    %3949 = vmatprep.subr.mxu0 0.0
    %3950 = vmatpush1.msra.mxu0 0.0
    %3951 = vmatprep.subr.mxu0 0.0
    %3952 = vmatpush1.msra.mxu0 0.0
    %3953 = vmatprep.subr.mxu0 0.0
    %3954 = vmatpush1.msra.mxu0 0.0
    %3955 = vmatprep.subr.mxu0 0.0
    %3956 = vmatpush1.msra.mxu0 0.0
    %3957 = vmatprep.subr.mxu0 0.0
    %3958 = vmatpush1.msra.mxu0 0.0
    %3959 = vmatprep.mubr.f32.mxu0 0.0
    %3960 = vmatmul.mubr.f32.gmra.mrb[0].mxu0 %v3893
    %v3961 = vpop.f32.mrb[0].mxu0
    %v3962 = vadd.f32 0.0, %v3961
    %v3963 = vpop.f32.mrb[0].mxu0
    %3964 = vdwg.mxu0
    %v3966 = vrot.slane %v3962, 2
    %v3968 = vadd.f32 %v655, %v3966
    %3969 = vrot.lane.b32.xlu0 %v3888, 64
    %v3970 = vpop.permute.xlu0 %3969
    %v3971 = vsel %vm27, %v3970, 0
    %3973 = vmatprep.subr.mxu0 0.0
    %3974 = vmatpush1.msra.mxu0 %v663
    %3975 = vmatprep.subr.mxu0 0.0
    %3976 = vmatpush1.msra.mxu0 %v664
    %3977 = vmatprep.subr.mxu0 0.0
    %3978 = vmatpush1.msra.mxu0 %v665
    %3979 = vmatprep.subr.mxu0 0.0
    %3980 = vmatpush1.msra.mxu0 %v666
    %3981 = vmatprep.subr.mxu0 0.0
    %3982 = vmatpush1.msra.mxu0 0.0
    %3983 = vmatprep.subr.mxu0 0.0
    %3984 = vmatpush1.msra.mxu0 0.0
    %3985 = vmatprep.subr.mxu0 0.0
    %3986 = vmatpush1.msra.mxu0 0.0
    %3987 = vmatprep.subr.mxu0 0.0
    %3988 = vmatpush1.msra.mxu0 0.0
    %3989 = vmatprep.subr.mxu0 0.0
    %3990 = vmatpush1.msra.mxu0 0.0
    %3991 = vmatprep.subr.mxu0 0.0
    %3992 = vmatpush1.msra.mxu0 0.0
    %3993 = vmatprep.subr.mxu0 0.0
    %3994 = vmatpush1.msra.mxu0 0.0
    %3995 = vmatprep.subr.mxu0 0.0
    %3996 = vmatpush1.msra.mxu0 0.0
    %3997 = vmatprep.subr.mxu0 0.0
    %3998 = vmatpush1.msra.mxu0 0.0
    %3999 = vmatprep.subr.mxu0 0.0
    %4000 = vmatpush1.msra.mxu0 0.0
    %4001 = vmatprep.subr.mxu0 0.0
    %4002 = vmatpush1.msra.mxu0 0.0
    %4003 = vmatprep.subr.mxu0 0.0
    %4004 = vmatpush1.msra.mxu0 0.0
    %4005 = vmatprep.subr.mxu0 0.0
    %4006 = vmatpush1.msra.mxu0 0.0
    %4007 = vmatprep.subr.mxu0 0.0
    %4008 = vmatpush1.msra.mxu0 0.0
    %4009 = vmatprep.subr.mxu0 0.0
    %4010 = vmatpush1.msra.mxu0 0.0
    %4011 = vmatprep.subr.mxu0 0.0
    %4012 = vmatpush1.msra.mxu0 0.0
    %4013 = vmatprep.subr.mxu0 0.0
    %4014 = vmatpush1.msra.mxu0 0.0
    %4015 = vmatprep.subr.mxu0 0.0
    %4016 = vmatpush1.msra.mxu0 0.0
    %4017 = vmatprep.subr.mxu0 0.0
    %4018 = vmatpush1.msra.mxu0 0.0
    %4019 = vmatprep.subr.mxu0 0.0
    %4020 = vmatpush1.msra.mxu0 0.0
    %4021 = vmatprep.subr.mxu0 0.0
    %4022 = vmatpush1.msra.mxu0 0.0
    %4023 = vmatprep.subr.mxu0 0.0
    %4024 = vmatpush1.msra.mxu0 0.0
    %4025 = vmatprep.subr.mxu0 0.0
    %4026 = vmatpush1.msra.mxu0 0.0
    %4027 = vmatprep.subr.mxu0 0.0
    %4028 = vmatpush1.msra.mxu0 0.0
    %4029 = vmatprep.subr.mxu0 0.0
    %4030 = vmatpush1.msra.mxu0 0.0
    %4031 = vmatprep.subr.mxu0 0.0
    %4032 = vmatpush1.msra.mxu0 0.0
    %4033 = vmatprep.subr.mxu0 0.0
    %4034 = vmatpush1.msra.mxu0 0.0
    %4035 = vmatprep.subr.mxu0 0.0
    %4036 = vmatpush1.msra.mxu0 0.0
    %4037 = vmatprep.mubr.f32.mxu0 0.0
    %4038 = vmatmul.mubr.f32.gmra.mrb[0].mxu0 %v3971
    %v4039 = vpop.f32.mrb[0].mxu0
    %v4040 = vadd.f32 0.0, %v4039
    %v4041 = vpop.f32.mrb[0].mxu0
    %4042 = vdwg.mxu0
    %v4043 = vadd.f32 %v639, %v4040
    %v4044 = vxor.u32 %v3968, 2147483648
    %v4045 = vmul.f32 %v4044, 1.442695
    %v4046 = vpow.pop %v4045
    %v4047 = vadd.f32 %v4046, 1.0
    %v4048 = vrcp.pop %v4047
    %v4049 = vmul.f32 1.0, %v4048
    %v4050 = vxor.u32 %v4043, 2147483648
    %v4051 = vmul.f32 %v4050, 1.442695
    %v4052 = vpow.pop %v4051
    %v4053 = vadd.f32 %v4052, 1.0
    %v4054 = vrcp.pop %v4053
    %v4055 = vmul.f32 1.0, %v4054
    %v4057 = vrot.slane %v3855, 6
    %v4059 = vmul.f32 %v4049, %v4057
    %v4060 = vtanh.pop %v3968
    %4062 = vrot.lane.b32.xlu0 %v4060, 32
    %v4063 = vpop.permute.xlu0 %4062
    %v4065 = vmul.f32 %v4049, %v4063
    %4067 = vrot.lane.b32.xlu0 %v4065, 32
    %v4068 = vpop.permute.xlu0 %4067
    %v4070 = vadd.f32 %v4059, %v4068
    %v4072 = vrot.slane %v3870, 2
    %v4074 = vmul.f32 %v4055, %v4072
    %v4075 = vtanh.pop %v4043
    %4077 = vrot.lane.b32.xlu0 %v4075, 32
    %v4078 = vpop.permute.xlu0 %4077
    %v4080 = vmul.f32 %v4055, %v4078
    %4082 = vrot.lane.b32.xlu0 %v4080, 32
    %v4083 = vpop.permute.xlu0 %4082
    %v4085 = vadd.f32 %v4074, %v4083
    %v4086 = vtanh.pop %v4070
    %4088 = vrot.lane.b32.xlu0 %v4086, 32
    %v4089 = vpop.permute.xlu0 %4088
    %v4091 = vmul.f32 %v4049, %v4089
    %v4092 = vtanh.pop %v4085
    %4094 = vrot.lane.b32.xlu0 %v4092, 32
    %v4095 = vpop.permute.xlu0 %4094
    %v4097 = vmul.f32 %v4055, %v4095
    %v4099 = vrot.slane %v4091, 6
    %v4101 = vadd.f32 %v3890, %v4099
    %v4102 = vadd.f32 %v4101, %v4097
    %v4103 = vmul.f32 %v4102, 0.0625
    %v4104 = vld [vmem:[%s1 + $0x120] sm:$0xff]
    %v4105 = vld [vmem:[%s1 + $0x128] sm:$0xff]
    %v4106 = vld [vmem:[%s1 + $0x130] sm:$0xff]
    %v4107 = vld [vmem:[%s1 + $0x138] sm:$0xff]
    %v4108 = vlaneseq
    %v4109 = vshrl.u32 %v4108, 7
    %v4110 = vsub.s32 3, %v4109
    %v4111 = vrot.slane %v22, %v4110
    %4113 = vrot.lane.b32.xlu0 %v4103, 64
    %v4114 = vpop.permute.xlu0 %4113
    %v4115 = vsel %vm27, %v4114, 0
    %4117 = vmatprep.subr.mxu0 0.0
    %4118 = vmatpush1.msra.mxu0 %v4104
    %4119 = vmatprep.subr.mxu0 0.0
    %4120 = vmatpush1.msra.mxu0 %v4105
    %4121 = vmatprep.subr.mxu0 0.0
    %4122 = vmatpush1.msra.mxu0 %v4106
    %4123 = vmatprep.subr.mxu0 0.0
    %4124 = vmatpush1.msra.mxu0 %v4107
    %4125 = vmatprep.subr.mxu0 0.0
    %4126 = vmatpush1.msra.mxu0 0.0
    %4127 = vmatprep.subr.mxu0 0.0
    %4128 = vmatpush1.msra.mxu0 0.0
    %4129 = vmatprep.subr.mxu0 0.0
    %4130 = vmatpush1.msra.mxu0 0.0
    %4131 = vmatprep.subr.mxu0 0.0
    %4132 = vmatpush1.msra.mxu0 0.0
    %4133 = vmatprep.subr.mxu0 0.0
    %4134 = vmatpush1.msra.mxu0 0.0
    %4135 = vmatprep.subr.mxu0 0.0
    %4136 = vmatpush1.msra.mxu0 0.0
    %4137 = vmatprep.subr.mxu0 0.0
    %4138 = vmatpush1.msra.mxu0 0.0
    %4139 = vmatprep.subr.mxu0 0.0
    %4140 = vmatpush1.msra.mxu0 0.0
    %4141 = vmatprep.subr.mxu0 0.0
    %4142 = vmatpush1.msra.mxu0 0.0
    %4143 = vmatprep.subr.mxu0 0.0
    %4144 = vmatpush1.msra.mxu0 0.0
    %4145 = vmatprep.subr.mxu0 0.0
    %4146 = vmatpush1.msra.mxu0 0.0
    %4147 = vmatprep.subr.mxu0 0.0
    %4148 = vmatpush1.msra.mxu0 0.0
    %4149 = vmatprep.subr.mxu0 0.0
    %4150 = vmatpush1.msra.mxu0 0.0
    %4151 = vmatprep.subr.mxu0 0.0
    %4152 = vmatpush1.msra.mxu0 0.0
    %4153 = vmatprep.subr.mxu0 0.0
    %4154 = vmatpush1.msra.mxu0 0.0
    %4155 = vmatprep.subr.mxu0 0.0
    %4156 = vmatpush1.msra.mxu0 0.0
    %4157 = vmatprep.subr.mxu0 0.0
    %4158 = vmatpush1.msra.mxu0 0.0
    %4159 = vmatprep.subr.mxu0 0.0
    %4160 = vmatpush1.msra.mxu0 0.0
    %4161 = vmatprep.subr.mxu0 0.0
    %4162 = vmatpush1.msra.mxu0 0.0
    %4163 = vmatprep.subr.mxu0 0.0
    %4164 = vmatpush1.msra.mxu0 0.0
    %4165 = vmatprep.subr.mxu0 0.0
    %4166 = vmatpush1.msra.mxu0 0.0
    %4167 = vmatprep.subr.mxu0 0.0
    %4168 = vmatpush1.msra.mxu0 0.0
    %4169 = vmatprep.subr.mxu0 0.0
    %4170 = vmatpush1.msra.mxu0 0.0
    %4171 = vmatprep.subr.mxu0 0.0
    %4172 = vmatpush1.msra.mxu0 0.0
    %4173 = vmatprep.subr.mxu0 0.0
    %4174 = vmatpush1.msra.mxu0 0.0
    %4175 = vmatprep.subr.mxu0 0.0
    %4176 = vmatpush1.msra.mxu0 0.0
    %4177 = vmatprep.subr.mxu0 0.0
    %4178 = vmatpush1.msra.mxu0 0.0
    %4179 = vmatprep.subr.mxu0 0.0
    %4180 = vmatpush1.msra.mxu0 0.0
    %4181 = vmatprep.mubr.f32.mxu0 0.0
    %4182 = vmatmul.mubr.f32.gmra.mrb[0].mxu0 %v4115
    %v4183 = vpop.f32.mrb[0].mxu0
    %v4184 = vadd.f32 %v4111, %v4183
    %v4185 = vpop.f32.mrb[0].mxu0
    %4186 = vdwg.mxu0
    %vm4187 = vcmask 123904
    %v4188 = vsel %vm4187, %v4184, -inf
    %4189 = vmax.xlane.f32.xlu0 %v4188
    %v4190 = vpop.xlane.xlu0 %4189
    %v4191 = vsub.f32 %v4184, %v4190
    %v4192 = vmul.f32 %v4191, 1.442695
    %v4193 = vpow.pop %v4192
    %v4194 = vsel %vm4187, %v4193, 0.0
    %4195 = vadd.xlane.f32.xlu0 %v4194
    %v4196 = vpop.xlane.xlu0 %4195
    %v4197 = vrcp.pop %v4196
    %v4198 = vmul.f32 %v4193, %v4197
    %4199 = vst.msk [vmem:[#allocation3] sm:$0x3] %vm4187, %v4198
    // Predicated region
    $region14: #{tpu_custom_call.1} parent=1 // pred_check
      _
    $region15: #{tpu_custom_call.1} parent=1 // pred_check_branch
      %4201 = sbr.rel (0) target = $region17
    $region16: #{tpu_custom_call.1} parent=1 // pred_region
      %s4203 = ssub.s32 32, 32
      %4204 = vsyncadd [#allocation4], %s4203
      %s4206 = sshll.u32 [#allocation3], 4
      %s4207 = int_to_ptr.vmem [resolvable:$true] %s4206
      %4209 = dma.vmem_to_hbm [thread:$0]  %s4207, 32, %s3, [#allocation4]
    $region17: #{tpu_custom_call.1} parent=1 // pred_fallthru
      _
    // Predicated region
    $region18: #{tpu_custom_call.1} parent=1 // pred_check
      _
    $region19: #{tpu_custom_call.1} parent=1 // pred_check_branch
      %4211 = sbr.rel (0) target = $region21
    $region20: #{tpu_custom_call.1} parent=1 // pred_region
      %4212 = dma.done [#allocation4], 32
    $region21: #{tpu_custom_call.1} parent=1 // pred_fallthru
      _
    %4213 = vsyncpa [#allocation4], 1

</llo_original>
